<compile_context>
chip_gen: v7x
topology: tpu7x:2x2x1
jax: 0.10.0
libtpu: 0.0.40
codegen_flags: <defaults>
</compile_context>

<pallas_src>
import jax
import jax.numpy as jnp
from jax.experimental import pallas as pl
from jax.experimental.pallas import tpu as pltpu


# Logical sizes from the PyTorch module and their lane-aligned padded versions.
FEAT_PAD = 128                 # num_features (e.g. 20) padded for the first dot
TRUNK_PAD = (128, 256, 512)    # 100 -> 128, 200 -> 256, 400 -> 512
HEAD_HIDDEN = 512
OUT_PAD = 128                  # lane-dense output block; Q uses cols [:num_actions]
DEFAULT_TB = 128               # batch tile (multiple of 128; use 256 on v6e/v7x)


def dueling_net_kernel(
    x_ref,
    w1_ref, b1_ref,
    w2_ref, b2_ref,
    w3_ref, b3_ref,
    wh_ref, bh_ref,
    wo_ref, bo_ref,
    out_ref,
):
    """One batch tile of the DuelingNet forward, fully VMEM-resident.

    Weights are bf16 (in, out); biases are f32 rows (1, out).  Every matmul
    accumulates in f32 on the MXU; elementwise math stays f32 and activations
    are cast back to bf16 only as the next dot's LHS.  The dueling combine is
    already folded into (wo, bo), so the last dot writes Q directly.
    """

    def linear_relu(h, w_ref, b_ref):
        y = jnp.dot(h, w_ref[...], preferred_element_type=jnp.float32) + b_ref[...]
        return jnp.maximum(y, 0.0).astype(jnp.bfloat16)

    h = x_ref[...]                         # (TB, 128)  bf16
    h = linear_relu(h, w1_ref, b1_ref)     # (TB, 128)
    h = linear_relu(h, w2_ref, b2_ref)     # (TB, 256)
    h = linear_relu(h, w3_ref, b3_ref)     # (TB, 512)
    h = linear_relu(h, wh_ref, bh_ref)     # (TB, 1024) = [hidden_adv | hidden_val]

    # Folded dueling combine: Q = h @ wo + bo, lane-dense (TB, 128) f32 store.
    out_ref[...] = (
        jnp.dot(h, wo_ref[...], preferred_element_type=jnp.float32) + bo_ref[...]
    )


def prepare_params(params, num_actions):
    """One-time packing of PyTorch-convention params into kernel arguments.

    Transposes weights to (in, out), zero-pads every dim to lane multiples,
    fuses the two head-hidden layers, folds the dueling combine
    (val + adv - mean(adv)) into the final weight/bias, and casts weights to
    bf16 (biases stay f32).  Call once at init, not per forward.
    """

    def wt(name):  # (out, in) -> (in, out), f32
        return jnp.transpose(params[name + "_w"]).astype(jnp.float32)

    def bias(name):
        return params[name + "_b"].astype(jnp.float32)

    def pad2(a, rows, cols):
        return jnp.pad(a, ((0, rows - a.shape[0]), (0, cols - a.shape[1])))

    def pad1(a, cols):
        return jnp.pad(a, ((0, cols - a.shape[0]),))

    p1, p2, p3 = TRUNK_PAD

    w1 = pad2(wt("l1"), FEAT_PAD, p1)      # K padded 20 -> 128
    b1 = pad1(bias("l1"), p1)
    w2 = pad2(wt("l2"), p1, p2)
    b2 = pad1(bias("l2"), p2)
    w3 = pad2(wt("l3"), p2, p3)
    b3 = pad1(bias("l3"), p3)

    # Fuse hidden_adv || hidden_val into one (512, 1024) matmul.
    wh = pad2(jnp.concatenate([wt("hidden_adv"), wt("hidden_val")], axis=1),
              p3, 2 * HEAD_HIDDEN)
    bh = jnp.concatenate([bias("hidden_adv"), bias("hidden_val")])

    # Fold the dueling combine into the final (1024, A) matrix:
    #   Q[b,j] = sum_k ha[b,k] (Wa[k,j] - mean_j' Wa[k,j'])
    #          + sum_k hv[b,k] Wv[k]
    #          + (ba[j] - mean(ba) + bv)
    wa = wt("adv")                                   # (512, A)
    wv = wt("val")                                   # (512, 1)
    ba = bias("adv")                                 # (A,)
    bv = bias("val")                                 # (1,)
    wa_c = wa - jnp.mean(wa, axis=1, keepdims=True)
    wv_rep = jnp.broadcast_to(wv, (HEAD_HIDDEN, num_actions))
    wo = pad2(jnp.concatenate([wa_c, wv_rep], axis=0), 2 * HEAD_HIDDEN, OUT_PAD)
    bo = pad1(ba - jnp.mean(ba) + bv[0], OUT_PAD)

    def as_w(a):  # bf16 weights: halves HBM->VMEM DMA, MXU-native
        return a.astype(jnp.bfloat16)

    def as_b(a):  # f32 (1, out) bias rows: broadcast over the batch sublanes
        return a.reshape(1, -1).astype(jnp.float32)

    return (as_w(w1), as_b(b1), as_w(w2), as_b(b2), as_w(w3), as_b(b3),
            as_w(wh), as_b(bh), as_w(wo), as_b(bo))


def dueling_net_forward(x, packed, num_actions, *, tb=DEFAULT_TB):
    """x: (B, num_features) f32/bf16; packed: output of prepare_params.

    Returns Q-values of shape (B, num_actions), f32.
    """
    B, F = x.shape
    assert F <= FEAT_PAD, "num_features exceeds FEAT_PAD; bump FEAT_PAD"

    b_pad = max(tb, ((B + tb - 1) // tb) * tb)
    x_p = jnp.zeros((b_pad, FEAT_PAD), jnp.bfloat16)
    x_p = x_p.at[:B, :F].set(x.astype(jnp.bfloat16))

    grid = (b_pad // tb,)

    # x / out move with the batch tile; all params use a constant index_map so
    # Pallas keeps them VMEM-resident after the first fetch.
    weight_specs = [pl.BlockSpec(a.shape, lambda i: (0, 0)) for a in packed]
    in_specs = [pl.BlockSpec((tb, FEAT_PAD), lambda i: (i, 0))] + weight_specs
    out_specs = pl.BlockSpec((tb, OUT_PAD), lambda i: (i, 0))

    weights = packed[0::2]
    flops = 2 * b_pad * sum(int(w.size) for w in weights)
    bytes_accessed = (int(x_p.size) * x_p.dtype.itemsize
                      + sum(int(a.size) * a.dtype.itemsize for a in packed)
                      + b_pad * OUT_PAD * 4)

    out = pl.pallas_call(
        dueling_net_kernel,
        grid=grid,
        in_specs=in_specs,
        out_specs=out_specs,
        out_shape=jax.ShapeDtypeStruct((b_pad, OUT_PAD), jnp.float32),
        compiler_params=pltpu.CompilerParams(
            dimension_semantics=("parallel",)),   # v7x: split batch tiles over 2 TCs
        cost_estimate=pl.CostEstimate(
            flops=flops, transcendentals=0, bytes_accessed=bytes_accessed),
    )(x_p, *packed)

    return out[:B, :num_actions]


def init_params(key, num_features, num_actions):
    """Deterministic init matching the module: xavier_uniform_ weights, bias=0.01."""
    layer_dims = {
        "l1": (100, num_features),
        "l2": (200, 100),
        "l3": (400, 200),
        "hidden_adv": (512, 400),
        "hidden_val": (512, 400),
        "adv": (num_actions, 512),
        "val": (1, 512),
    }
    params = {}
    for name, (fan_out, fan_in) in layer_dims.items():
        key, sub = jax.random.split(key)
        limit = (6.0 / (fan_in + fan_out)) ** 0.5  # xavier uniform bound
        params[name + "_w"] = jax.random.uniform(
            sub, (fan_out, fan_in), minval=-limit, maxval=limit, dtype=jnp.float32)
        params[name + "_b"] = jnp.full((fan_out,), 0.01, dtype=jnp.float32)
    return params


def reference_forward(x, params):
    """Pure-JAX f32 reference mirroring the PyTorch forward."""
    def lin(h, name):
        return h @ params[name + "_w"].T + params[name + "_b"]

    h = jax.nn.relu(lin(x, "l1"))
    h = jax.nn.relu(lin(h, "l2"))
    h = jax.nn.relu(lin(h, "l3"))
    ha = jax.nn.relu(lin(h, "hidden_adv"))
    hv = jax.nn.relu(lin(h, "hidden_val"))
    adv = lin(ha, "adv")
    val = lin(hv, "val")
    return val + adv - jnp.mean(adv, axis=1, keepdims=True)


if __name__ == "__main__":
    num_features = 20
    num_actions = 5
    batch = 8  # small test; production callers should stack >= 128/256 states per call

    key = jax.random.PRNGKey(0)
    key, xk = jax.random.split(key)
    x = jax.random.normal(xk, (batch, num_features), dtype=jnp.float32)
    params = init_params(key, num_features, num_actions)

    # One-time packing (transpose / pad / fuse / fold-combine / bf16) — hoisted
    # out of the per-call forward path.
    packed = prepare_params(params, num_actions)

    q = dueling_net_forward(x, packed, num_actions)
    q = jax.block_until_ready(q)

    q_ref = reference_forward(x, params)
    assert q.shape == (batch, num_actions)
    # bf16 weights/activations: loosened tolerance vs the full-f32 reference.
    assert jnp.allclose(q, q_ref, atol=5e-2, rtol=5e-2), "mismatch vs reference"

    print("KERNEL_OK")
</pallas_src>

<mosaic_0001>
module attributes {stable_mosaic.version = 11 : i64} {
  func.func @dueling_net_kernel(%arg0: i32, %arg1: memref<128x128xbf16, #tpu.memory_space<vmem>>, %arg2: memref<128x128xbf16, #tpu.memory_space<vmem>>, %arg3: memref<1x128xf32, #tpu.memory_space<vmem>>, %arg4: memref<128x256xbf16, #tpu.memory_space<vmem>>, %arg5: memref<1x256xf32, #tpu.memory_space<vmem>>, %arg6: memref<256x512xbf16, #tpu.memory_space<vmem>>, %arg7: memref<1x512xf32, #tpu.memory_space<vmem>>, %arg8: memref<512x1024xbf16, #tpu.memory_space<vmem>>, %arg9: memref<1x1024xf32, #tpu.memory_space<vmem>>, %arg10: memref<1024x128xbf16, #tpu.memory_space<vmem>>, %arg11: memref<1x128xf32, #tpu.memory_space<vmem>>, %arg12: memref<128x128xf32, #tpu.memory_space<vmem>>) attributes {dimension_semantics = [#tpu.dimension_semantics<parallel>], iteration_bounds = array<i64: 1>, scalar_prefetch = 0 : i64, scratch_operands = 0 : i64, tpu.core_type = #tpu.core_type<tc>, window_params = [{transform_indices = @transform_0, window_bounds = array<i64: 128, 128>}, {pipeline_mode = #tpu.pipeline_mode<synchronous>, transform_indices = @transform_1, window_bounds = array<i64: 128, 128>}, {pipeline_mode = #tpu.pipeline_mode<synchronous>, transform_indices = @transform_2, window_bounds = array<i64: 1, 128>}, {pipeline_mode = #tpu.pipeline_mode<synchronous>, transform_indices = @transform_3, window_bounds = array<i64: 128, 256>}, {pipeline_mode = #tpu.pipeline_mode<synchronous>, transform_indices = @transform_4, window_bounds = array<i64: 1, 256>}, {pipeline_mode = #tpu.pipeline_mode<synchronous>, transform_indices = @transform_5, window_bounds = array<i64: 256, 512>}, {pipeline_mode = #tpu.pipeline_mode<synchronous>, transform_indices = @transform_6, window_bounds = array<i64: 1, 512>}, {pipeline_mode = #tpu.pipeline_mode<synchronous>, transform_indices = @transform_7, window_bounds = array<i64: 512, 1024>}, {pipeline_mode = #tpu.pipeline_mode<synchronous>, transform_indices = @transform_8, window_bounds = array<i64: 1, 1024>}, {pipeline_mode = #tpu.pipeline_mode<synchronous>, transform_indices = @transform_9, window_bounds = array<i64: 1024, 128>}, {pipeline_mode = #tpu.pipeline_mode<synchronous>, transform_indices = @transform_10, window_bounds = array<i64: 1, 128>}, {transform_indices = @transform_11, window_bounds = array<i64: 128, 128>}]} {
    %c0 = arith.constant 0 : index
    %c0_0 = arith.constant 0 : index
    %0 = vector.load %arg1[%c0, %c0_0] : memref<128x128xbf16, #tpu.memory_space<vmem>>, vector<128x128xbf16>
    %c0_1 = arith.constant 0 : index
    %c0_2 = arith.constant 0 : index
    %1 = vector.load %arg2[%c0_1, %c0_2] : memref<128x128xbf16, #tpu.memory_space<vmem>>, vector<128x128xbf16>
    %cst = arith.constant dense<0.000000e+00> : vector<128x128xf32>
    %2 = tpu.matmul %0, %1, %cst {dimension_numbers = #tpu.dot_dimension_numbers<[1], [0], [0], [1], [0, 0, 1, 1], [], []>} : vector<128x128xbf16>, vector<128x128xbf16>, vector<128x128xf32> -> vector<128x128xf32>
    %c0_3 = arith.constant 0 : index
    %c0_4 = arith.constant 0 : index
    %3 = vector.load %arg3[%c0_3, %c0_4] : memref<1x128xf32, #tpu.memory_space<vmem>>, vector<1x128xf32>
    %4 = vector.broadcast %3 : vector<1x128xf32> to vector<128x128xf32>
    %5 = arith.addf %2, %4 : vector<128x128xf32>
    %cst_5 = arith.constant 0.000000e+00 : f32
    %6 = vector.broadcast %cst_5 : f32 to vector<128x128xf32>
    %7 = arith.maximumf %5, %6 : vector<128x128xf32>
    %8 = arith.truncf %7 : vector<128x128xf32> to vector<128x128xbf16>
    %c0_6 = arith.constant 0 : index
    %c0_7 = arith.constant 0 : index
    %9 = vector.load %arg4[%c0_6, %c0_7] : memref<128x256xbf16, #tpu.memory_space<vmem>>, vector<128x256xbf16>
    %cst_8 = arith.constant dense<0.000000e+00> : vector<128x256xf32>
    %10 = tpu.matmul %8, %9, %cst_8 {dimension_numbers = #tpu.dot_dimension_numbers<[1], [0], [0], [1], [0, 0, 1, 1], [], []>} : vector<128x128xbf16>, vector<128x256xbf16>, vector<128x256xf32> -> vector<128x256xf32>
    %c0_9 = arith.constant 0 : index
    %c0_10 = arith.constant 0 : index
    %11 = vector.load %arg5[%c0_9, %c0_10] : memref<1x256xf32, #tpu.memory_space<vmem>>, vector<1x256xf32>
    %12 = vector.broadcast %11 : vector<1x256xf32> to vector<128x256xf32>
    %13 = arith.addf %10, %12 : vector<128x256xf32>
    %cst_11 = arith.constant 0.000000e+00 : f32
    %14 = vector.broadcast %cst_11 : f32 to vector<128x256xf32>
    %15 = arith.maximumf %13, %14 : vector<128x256xf32>
    %16 = arith.truncf %15 : vector<128x256xf32> to vector<128x256xbf16>
    %c0_12 = arith.constant 0 : index
    %c0_13 = arith.constant 0 : index
    %17 = vector.load %arg6[%c0_12, %c0_13] : memref<256x512xbf16, #tpu.memory_space<vmem>>, vector<256x512xbf16>
    %cst_14 = arith.constant dense<0.000000e+00> : vector<128x512xf32>
    %18 = tpu.matmul %16, %17, %cst_14 {dimension_numbers = #tpu.dot_dimension_numbers<[1], [0], [0], [1], [0, 0, 1, 1], [], []>} : vector<128x256xbf16>, vector<256x512xbf16>, vector<128x512xf32> -> vector<128x512xf32>
    %c0_15 = arith.constant 0 : index
    %c0_16 = arith.constant 0 : index
    %19 = vector.load %arg7[%c0_15, %c0_16] : memref<1x512xf32, #tpu.memory_space<vmem>>, vector<1x512xf32>
    %20 = vector.broadcast %19 : vector<1x512xf32> to vector<128x512xf32>
    %21 = arith.addf %18, %20 : vector<128x512xf32>
    %cst_17 = arith.constant 0.000000e+00 : f32
    %22 = vector.broadcast %cst_17 : f32 to vector<128x512xf32>
    %23 = arith.maximumf %21, %22 : vector<128x512xf32>
    %24 = arith.truncf %23 : vector<128x512xf32> to vector<128x512xbf16>
    %c0_18 = arith.constant 0 : index
    %c0_19 = arith.constant 0 : index
    %25 = vector.load %arg8[%c0_18, %c0_19] : memref<512x1024xbf16, #tpu.memory_space<vmem>>, vector<512x1024xbf16>
    %cst_20 = arith.constant dense<0.000000e+00> : vector<128x1024xf32>
    %26 = tpu.matmul %24, %25, %cst_20 {dimension_numbers = #tpu.dot_dimension_numbers<[1], [0], [0], [1], [0, 0, 1, 1], [], []>} : vector<128x512xbf16>, vector<512x1024xbf16>, vector<128x1024xf32> -> vector<128x1024xf32>
    %c0_21 = arith.constant 0 : index
    %c0_22 = arith.constant 0 : index
    %27 = vector.load %arg9[%c0_21, %c0_22] : memref<1x1024xf32, #tpu.memory_space<vmem>>, vector<1x1024xf32>
    %28 = vector.broadcast %27 : vector<1x1024xf32> to vector<128x1024xf32>
    %29 = arith.addf %26, %28 : vector<128x1024xf32>
    %cst_23 = arith.constant 0.000000e+00 : f32
    %30 = vector.broadcast %cst_23 : f32 to vector<128x1024xf32>
    %31 = arith.maximumf %29, %30 : vector<128x1024xf32>
    %32 = arith.truncf %31 : vector<128x1024xf32> to vector<128x1024xbf16>
    %c0_24 = arith.constant 0 : index
    %c0_25 = arith.constant 0 : index
    %33 = vector.load %arg10[%c0_24, %c0_25] : memref<1024x128xbf16, #tpu.memory_space<vmem>>, vector<1024x128xbf16>
    %cst_26 = arith.constant dense<0.000000e+00> : vector<128x128xf32>
    %34 = tpu.matmul %32, %33, %cst_26 {dimension_numbers = #tpu.dot_dimension_numbers<[1], [0], [0], [1], [0, 0, 1, 1], [], []>} : vector<128x1024xbf16>, vector<1024x128xbf16>, vector<128x128xf32> -> vector<128x128xf32>
    %c0_27 = arith.constant 0 : index
    %c0_28 = arith.constant 0 : index
    %35 = vector.load %arg11[%c0_27, %c0_28] : memref<1x128xf32, #tpu.memory_space<vmem>>, vector<1x128xf32>
    %36 = vector.broadcast %35 : vector<1x128xf32> to vector<128x128xf32>
    %37 = arith.addf %34, %36 : vector<128x128xf32>
    %c0_29 = arith.constant 0 : index
    %c0_30 = arith.constant 0 : index
    %38 = vector.load %arg12[%c0_29, %c0_30] : memref<128x128xf32, #tpu.memory_space<vmem>>, vector<128x128xf32>
    tpu.vector_store %arg12[%c0_29, %c0_30], %37 {strides = array<i32>} : memref<128x128xf32, #tpu.memory_space<vmem>>, vector<128x128xf32>,
    return
  }
  func.func @transform_0(%arg0: i32) -> (i32, i32) {
    %c0_i32 = arith.constant 0 : i32
    %c0_i32_0 = arith.constant 0 : i32
    return %arg0, %c0_i32 : i32, i32
  }
  func.func @transform_1(%arg0: i32) -> (i32, i32) {
    %c0_i32 = arith.constant 0 : i32
    %c0_i32_0 = arith.constant 0 : i32
    %c0_i32_1 = arith.constant 0 : i32
    return %c0_i32, %c0_i32_0 : i32, i32
  }
  func.func @transform_2(%arg0: i32) -> (i32, i32) {
    %c0_i32 = arith.constant 0 : i32
    %c0_i32_0 = arith.constant 0 : i32
    %c0_i32_1 = arith.constant 0 : i32
    return %c0_i32, %c0_i32_0 : i32, i32
  }
  func.func @transform_3(%arg0: i32) -> (i32, i32) {
    %c0_i32 = arith.constant 0 : i32
    %c0_i32_0 = arith.constant 0 : i32
    %c0_i32_1 = arith.constant 0 : i32
    return %c0_i32, %c0_i32_0 : i32, i32
  }
  func.func @transform_4(%arg0: i32) -> (i32, i32) {
    %c0_i32 = arith.constant 0 : i32
    %c0_i32_0 = arith.constant 0 : i32
    %c0_i32_1 = arith.constant 0 : i32
    return %c0_i32, %c0_i32_0 : i32, i32
  }
  func.func @transform_5(%arg0: i32) -> (i32, i32) {
    %c0_i32 = arith.constant 0 : i32
    %c0_i32_0 = arith.constant 0 : i32
    %c0_i32_1 = arith.constant 0 : i32
    return %c0_i32, %c0_i32_0 : i32, i32
  }
  func.func @transform_6(%arg0: i32) -> (i32, i32) {
    %c0_i32 = arith.constant 0 : i32
    %c0_i32_0 = arith.constant 0 : i32
    %c0_i32_1 = arith.constant 0 : i32
    return %c0_i32, %c0_i32_0 : i32, i32
  }
  func.func @transform_7(%arg0: i32) -> (i32, i32) {
    %c0_i32 = arith.constant 0 : i32
    %c0_i32_0 = arith.constant 0 : i32
    %c0_i32_1 = arith.constant 0 : i32
    return %c0_i32, %c0_i32_0 : i32, i32
  }
  func.func @transform_8(%arg0: i32) -> (i32, i32) {
    %c0_i32 = arith.constant 0 : i32
    %c0_i32_0 = arith.constant 0 : i32
    %c0_i32_1 = arith.constant 0 : i32
    return %c0_i32, %c0_i32_0 : i32, i32
  }
  func.func @transform_9(%arg0: i32) -> (i32, i32) {
    %c0_i32 = arith.constant 0 : i32
    %c0_i32_0 = arith.constant 0 : i32
    %c0_i32_1 = arith.constant 0 : i32
    return %c0_i32, %c0_i32_0 : i32, i32
  }
  func.func @transform_10(%arg0: i32) -> (i32, i32) {
    %c0_i32 = arith.constant 0 : i32
    %c0_i32_0 = arith.constant 0 : i32
    %c0_i32_1 = arith.constant 0 : i32
    return %c0_i32, %c0_i32_0 : i32, i32
  }
  func.func @transform_11(%arg0: i32) -> (i32, i32) {
    %c0_i32 = arith.constant 0 : i32
    %c0_i32_0 = arith.constant 0 : i32
    return %arg0, %c0_i32 : i32, i32
  }
}

</mosaic_0001>

<llo_original>
// kernel: tpu_custom_call.1
$region0: #{tpu_custom_call.1}
  #allocation0 [shape = 'u32[]', space=smem, size = 0x4, offset = 0x4, fixed_abs, tag = 'smem constant byte address 0x4 - core index']
  #allocation1 [shape = 'u32[144,128]{1,0:T(1,128)}', space=vmem, size = 0x12000, scoped, tag = 'internal scratch']
  %s0 = inlined_call_operand.hbm [shape: bf16[128,128], index: 0, kind: input, shape index: {}]
  %s1 = inlined_call_operand.hbm [shape: bf16[128,128], index: 1, kind: input, shape index: {}]
  %s2 = inlined_call_operand.vmem [shape: f32[1,128], index: 2, kind: input, shape index: {}]
  %s3 = inlined_call_operand.hbm [shape: bf16[128,256], index: 3, kind: input, shape index: {}]
  %s4 = inlined_call_operand.vmem [shape: f32[1,256], index: 4, kind: input, shape index: {}]
  %s5 = inlined_call_operand.hbm [shape: bf16[256,512], index: 5, kind: input, shape index: {}]
  %s6 = inlined_call_operand.vmem [shape: f32[1,512], index: 6, kind: input, shape index: {}]
  %s7 = inlined_call_operand.hbm [shape: bf16[512,1024], index: 7, kind: input, shape index: {}]
  %s8 = inlined_call_operand.vmem [shape: f32[1,1024], index: 8, kind: input, shape index: {}]
  %s9 = inlined_call_operand.hbm [shape: bf16[1024,128], index: 9, kind: input, shape index: {}]
  %s10 = inlined_call_operand.vmem [shape: f32[1,128], index: 10, kind: input, shape index: {}]
  %s11 = inlined_call_operand.hbm [shape: f32[128,128], index: 11, kind: output, shape index: {}]
  %s12 = sld [smem:[#allocation0]]
  $region78: #{tpu_custom_call.1} parent=0
    _
  %s14 = ssub.s32 1, %s12
  %s15 = scalar_select 0, %s14, %s12
  $region1: #{tpu_custom_call.1} parent=0
    #allocation2 [shape = 'u8[32768]{0}', space=vmem, size = 0x8000, scoped, tag = 'input window, operand 0, single buffered']
    #allocation3 [shape = 's32[1]{0}', space=sflag, size = 0x4, scoped, tag = 'scoped memory for tpu_custom_call.1']
    #allocation4 [shape = 's32[1]{0}', space=sflag, size = 0x4, scoped, tag = 'scoped memory for tpu_custom_call.1']
    #allocation5 [shape = 'u8[32768]{0}', space=vmem, size = 0x8000, scoped, tag = 'input window, operand 1, single buffered']
    #allocation6 [shape = 's32[1]{0}', space=sflag, size = 0x4, scoped, tag = 'scoped memory for tpu_custom_call.1']
    #allocation7 [shape = 'u8[65536]{0}', space=vmem, size = 0x10000, scoped, tag = 'input window, operand 3, single buffered']
    #allocation8 [shape = 'u8[262144]{0}', space=vmem, size = 0x40000, scoped, tag = 'input window, operand 5, single buffered']
    #allocation9 [shape = 's32[1]{0}', space=sflag, size = 0x4, scoped, tag = 'scoped memory for tpu_custom_call.1']
    #allocation10 [shape = 'u8[1048576]{0}', space=vmem, size = 0x100000, scoped, tag = 'input window, operand 7, single buffered']
    #allocation11 [shape = 'u8[262144]{0}', space=vmem, size = 0x40000, scoped, tag = 'input window, operand 9, single buffered']
    #allocation12 [shape = 's32[1]{0}', space=sflag, size = 0x4, scoped, tag = 'scoped memory for tpu_custom_call.1']
    #allocation13 [shape = 'u8[65536]{0}', space=vmem, size = 0x10000, scoped, tag = 'output window, operand 0, single buffered']
    %16 = vsyncpa [#allocation3], 0
    %17 = vsyncpa [#allocation6], 0
    %18 = vsyncpa [#allocation9], 0
    %19 = vsyncpa [#allocation12], 0
    %20 = vsyncpa [#allocation4], 0
    // Predicated region
    $region2: #{tpu_custom_call.1} parent=1 // pred_check
      _
    $region3: #{tpu_custom_call.1} parent=1 // pred_check_branch
      %22 = sbr.rel (0) target = $region5
    $region4: #{tpu_custom_call.1} parent=1 // pred_region
      %s24 = ssub.s32 1024, 1024
      %25 = vsyncadd [#allocation3], %s24
      %s26 = sshll.u32 [#allocation2], 4
      %s27 = int_to_ptr.vmem [resolvable:$true] %s26
      %32 = dma.hbm_to_vmem [thread:$0]  %s0, 1024, %s27, [#allocation3], 64, 64, 4
    $region5: #{tpu_custom_call.1} parent=1 // pred_fallthru
      _
    // Predicated region
    $region6: #{tpu_custom_call.1} parent=1 // pred_check
      _
    $region7: #{tpu_custom_call.1} parent=1 // pred_check_branch
      %34 = sbr.rel (0) target = $region9
    $region8: #{tpu_custom_call.1} parent=1 // pred_region
      %s36 = ssub.s32 1024, 1024
      %37 = vsyncadd [#allocation6], %s36
      %s38 = sshll.u32 [#allocation5], 4
      %s39 = int_to_ptr.vmem [resolvable:$true] %s38
      %44 = dma.hbm_to_vmem [thread:$0]  %s1, 1024, %s39, [#allocation6], 64, 64, 4
    $region9: #{tpu_custom_call.1} parent=1 // pred_fallthru
      _
    // Predicated region
    $region10: #{tpu_custom_call.1} parent=1 // pred_check
      _
    $region11: #{tpu_custom_call.1} parent=1 // pred_check_branch
      %46 = sbr.rel (0) target = $region13
    $region12: #{tpu_custom_call.1} parent=1 // pred_region
      _
    $region13: #{tpu_custom_call.1} parent=1 // pred_fallthru
      _
    // Predicated region
    $region14: #{tpu_custom_call.1} parent=1 // pred_check
      _
    $region15: #{tpu_custom_call.1} parent=1 // pred_check_branch
      %48 = sbr.rel (0) target = $region17
    $region16: #{tpu_custom_call.1} parent=1 // pred_region
      %s50 = ssub.s32 2048, 2048
      %51 = vsyncadd [#allocation6], %s50
      %s52 = sshll.u32 [#allocation7], 4
      %s53 = int_to_ptr.vmem [resolvable:$true] %s52
      %58 = dma.hbm_to_vmem [thread:$0]  %s3, 2048, %s53, [#allocation6], 128, 128, 8
    $region17: #{tpu_custom_call.1} parent=1 // pred_fallthru
      _
    // Predicated region
    $region18: #{tpu_custom_call.1} parent=1 // pred_check
      _
    $region19: #{tpu_custom_call.1} parent=1 // pred_check_branch
      %60 = sbr.rel (0) target = $region21
    $region20: #{tpu_custom_call.1} parent=1 // pred_region
      _
    $region21: #{tpu_custom_call.1} parent=1 // pred_fallthru
      _
    // Predicated region
    $region22: #{tpu_custom_call.1} parent=1 // pred_check
      _
    $region23: #{tpu_custom_call.1} parent=1 // pred_check_branch
      %62 = sbr.rel (0) target = $region25
    $region24: #{tpu_custom_call.1} parent=1 // pred_region
      %s64 = ssub.s32 8192, 8192
      %65 = vsyncadd [#allocation9], %s64
      %s66 = sshll.u32 [#allocation8], 4
      %s67 = int_to_ptr.vmem [resolvable:$true] %s66
      %72 = dma.hbm_to_vmem [thread:$0]  %s5, 8192, %s67, [#allocation9], 256, 256, 16
    $region25: #{tpu_custom_call.1} parent=1 // pred_fallthru
      _
    // Predicated region
    $region26: #{tpu_custom_call.1} parent=1 // pred_check
      _
    $region27: #{tpu_custom_call.1} parent=1 // pred_check_branch
      %74 = sbr.rel (0) target = $region29
    $region28: #{tpu_custom_call.1} parent=1 // pred_region
      _
    $region29: #{tpu_custom_call.1} parent=1 // pred_fallthru
      _
    // Predicated region
    $region30: #{tpu_custom_call.1} parent=1 // pred_check
      _
    $region31: #{tpu_custom_call.1} parent=1 // pred_check_branch
      %76 = sbr.rel (0) target = $region33
    $region32: #{tpu_custom_call.1} parent=1 // pred_region
      %s78 = ssub.s32 32768, 32768
      %79 = vsyncadd [#allocation9], %s78
      %s80 = sshll.u32 [#allocation10], 4
      %s81 = int_to_ptr.vmem [resolvable:$true] %s80
      %86 = dma.hbm_to_vmem [thread:$0]  %s7, 32768, %s81, [#allocation9], 512, 512, 32
    $region33: #{tpu_custom_call.1} parent=1 // pred_fallthru
      _
    // Predicated region
    $region34: #{tpu_custom_call.1} parent=1 // pred_check
      _
    $region35: #{tpu_custom_call.1} parent=1 // pred_check_branch
      %88 = sbr.rel (0) target = $region37
    $region36: #{tpu_custom_call.1} parent=1 // pred_region
      _
    $region37: #{tpu_custom_call.1} parent=1 // pred_fallthru
      _
    // Predicated region
    $region38: #{tpu_custom_call.1} parent=1 // pred_check
      _
    $region39: #{tpu_custom_call.1} parent=1 // pred_check_branch
      %90 = sbr.rel (0) target = $region41
    $region40: #{tpu_custom_call.1} parent=1 // pred_region
      %s92 = ssub.s32 8192, 8192
      %93 = vsyncadd [#allocation12], %s92
      %s94 = sshll.u32 [#allocation11], 4
      %s95 = int_to_ptr.vmem [resolvable:$true] %s94
      %100 = dma.hbm_to_vmem [thread:$0]  %s9, 8192, %s95, [#allocation12], 64, 64, 4
    $region41: #{tpu_custom_call.1} parent=1 // pred_fallthru
      _
    // Predicated region
    $region42: #{tpu_custom_call.1} parent=1 // pred_check
      _
    $region43: #{tpu_custom_call.1} parent=1 // pred_check_branch
      %102 = sbr.rel (0) target = $region45
    $region44: #{tpu_custom_call.1} parent=1 // pred_region
      _
    $region45: #{tpu_custom_call.1} parent=1 // pred_fallthru
      _
    // Predicated region
    $region46: #{tpu_custom_call.1} parent=1 // pred_check
      _
    $region47: #{tpu_custom_call.1} parent=1 // pred_check_branch
      %104 = sbr.rel (0) target = $region49
    $region48: #{tpu_custom_call.1} parent=1 // pred_region
      %105 = dma.done [#allocation3], 1024
    $region49: #{tpu_custom_call.1} parent=1 // pred_fallthru
      _
    // Predicated region
    $region50: #{tpu_custom_call.1} parent=1 // pred_check
      _
    $region51: #{tpu_custom_call.1} parent=1 // pred_check_branch
      %107 = sbr.rel (0) target = $region53
    $region52: #{tpu_custom_call.1} parent=1 // pred_region
      %108 = dma.done [#allocation6], 1024
    $region53: #{tpu_custom_call.1} parent=1 // pred_fallthru
      _
    // Predicated region
    $region54: #{tpu_custom_call.1} parent=1 // pred_check
      _
    $region55: #{tpu_custom_call.1} parent=1 // pred_check_branch
      %110 = sbr.rel (0) target = $region57
    $region56: #{tpu_custom_call.1} parent=1 // pred_region
      %111 = dma.done [#allocation6], 2048
    $region57: #{tpu_custom_call.1} parent=1 // pred_fallthru
      _
    // Predicated region
    $region58: #{tpu_custom_call.1} parent=1 // pred_check
      _
    $region59: #{tpu_custom_call.1} parent=1 // pred_check_branch
      %113 = sbr.rel (0) target = $region61
    $region60: #{tpu_custom_call.1} parent=1 // pred_region
      %114 = dma.done [#allocation9], 8192
    $region61: #{tpu_custom_call.1} parent=1 // pred_fallthru
      _
    // Predicated region
    $region62: #{tpu_custom_call.1} parent=1 // pred_check
      _
    $region63: #{tpu_custom_call.1} parent=1 // pred_check_branch
      %116 = sbr.rel (0) target = $region65
    $region64: #{tpu_custom_call.1} parent=1 // pred_region
      %117 = dma.done [#allocation9], 32768
    $region65: #{tpu_custom_call.1} parent=1 // pred_fallthru
      _
    // Predicated region
    $region66: #{tpu_custom_call.1} parent=1 // pred_check
      _
    $region67: #{tpu_custom_call.1} parent=1 // pred_check_branch
      %119 = sbr.rel (0) target = $region69
    $region68: #{tpu_custom_call.1} parent=1 // pred_region
      %120 = dma.done [#allocation12], 8192
    $region69: #{tpu_custom_call.1} parent=1 // pred_fallthru
      _
    %v122 = vld [vmem:[#allocation2] sm:$0xf]
    %v123 = vld [vmem:[#allocation2 + $0x4] sm:$0xf]
    %v124 = vld [vmem:[#allocation2 + $0x8] sm:$0xf]
    %v125 = vld [vmem:[#allocation2 + $0xc] sm:$0xf]
    %v126 = vld [vmem:[#allocation2 + $0x10] sm:$0xf]
    %v127 = vld [vmem:[#allocation2 + $0x14] sm:$0xf]
    %v128 = vld [vmem:[#allocation2 + $0x18] sm:$0xf]
    %v129 = vld [vmem:[#allocation2 + $0x1c] sm:$0xf]
    %v130 = vld [vmem:[#allocation2 + $0x20] sm:$0xf]
    %v131 = vld [vmem:[#allocation2 + $0x24] sm:$0xf]
    %v132 = vld [vmem:[#allocation2 + $0x28] sm:$0xf]
    %v133 = vld [vmem:[#allocation2 + $0x2c] sm:$0xf]
    %v134 = vld [vmem:[#allocation2 + $0x30] sm:$0xf]
    %v135 = vld [vmem:[#allocation2 + $0x34] sm:$0xf]
    %v136 = vld [vmem:[#allocation2 + $0x38] sm:$0xf]
    %v137 = vld [vmem:[#allocation2 + $0x3c] sm:$0xf]
    %v138 = vld [vmem:[#allocation5] sm:$0xf]
    %v139 = vld [vmem:[#allocation5 + $0x4] sm:$0xf]
    %v140 = vld [vmem:[#allocation5 + $0x8] sm:$0xf]
    %v141 = vld [vmem:[#allocation5 + $0xc] sm:$0xf]
    %v142 = vld [vmem:[#allocation5 + $0x10] sm:$0xf]
    %v143 = vld [vmem:[#allocation5 + $0x14] sm:$0xf]
    %v144 = vld [vmem:[#allocation5 + $0x18] sm:$0xf]
    %v145 = vld [vmem:[#allocation5 + $0x1c] sm:$0xf]
    %v146 = vld [vmem:[#allocation5 + $0x20] sm:$0xf]
    %v147 = vld [vmem:[#allocation5 + $0x24] sm:$0xf]
    %v148 = vld [vmem:[#allocation5 + $0x28] sm:$0xf]
    %v149 = vld [vmem:[#allocation5 + $0x2c] sm:$0xf]
    %v150 = vld [vmem:[#allocation5 + $0x30] sm:$0xf]
    %v151 = vld [vmem:[#allocation5 + $0x34] sm:$0xf]
    %v152 = vld [vmem:[#allocation5 + $0x38] sm:$0xf]
    %v153 = vld [vmem:[#allocation5 + $0x3c] sm:$0xf]
    %v154 = vld [vmem:[%s2] sm:$0x1]
    %v156 = vlaneseq
    %v157 = vshrl.u32 %v156, 7
    %v158 = vsub.s32 0, %v157
    %v159 = vrot.slane %v154, %v158
    %v177 = vunpack.c.l.b16 %v122
    %v178 = vunpack.c.l.b16 %v123
    %v179 = vunpack.c.l.b16 %v124
    %v180 = vunpack.c.l.b16 %v125
    %v181 = vunpack.c.l.b16 %v126
    %v182 = vunpack.c.l.b16 %v127
    %v183 = vunpack.c.l.b16 %v128
    %v184 = vunpack.c.l.b16 %v129
    %v185 = vunpack.c.l.b16 %v130
    %v186 = vunpack.c.l.b16 %v131
    %v187 = vunpack.c.l.b16 %v132
    %v188 = vunpack.c.l.b16 %v133
    %v189 = vunpack.c.l.b16 %v134
    %v190 = vunpack.c.l.b16 %v135
    %v191 = vunpack.c.l.b16 %v136
    %v192 = vunpack.c.l.b16 %v137
    %v193 = vpack.c.b16 %v178, %v177
    %v194 = vpack.c.b16 %v180, %v179
    %v195 = vpack.c.b16 %v182, %v181
    %v196 = vpack.c.b16 %v184, %v183
    %v197 = vpack.c.b16 %v186, %v185
    %v198 = vpack.c.b16 %v188, %v187
    %v199 = vpack.c.b16 %v190, %v189
    %v200 = vpack.c.b16 %v192, %v191
    %v225 = vunpack.c.l.b16 %v138
    %v226 = vunpack.c.l.b16 %v139
    %v227 = vunpack.c.l.b16 %v140
    %v228 = vunpack.c.l.b16 %v141
    %v229 = vunpack.c.l.b16 %v142
    %v230 = vunpack.c.l.b16 %v143
    %v231 = vunpack.c.l.b16 %v144
    %v232 = vunpack.c.l.b16 %v145
    %v233 = vunpack.c.l.b16 %v146
    %v234 = vunpack.c.l.b16 %v147
    %v235 = vunpack.c.l.b16 %v148
    %v236 = vunpack.c.l.b16 %v149
    %v237 = vunpack.c.l.b16 %v150
    %v238 = vunpack.c.l.b16 %v151
    %v239 = vunpack.c.l.b16 %v152
    %v240 = vunpack.c.l.b16 %v153
    %v241 = vpack.c.b16 %v226, %v225
    %v242 = vpack.c.b16 %v228, %v227
    %v243 = vpack.c.b16 %v230, %v229
    %v244 = vpack.c.b16 %v232, %v231
    %v245 = vpack.c.b16 %v234, %v233
    %v246 = vpack.c.b16 %v236, %v235
    %v247 = vpack.c.b16 %v238, %v237
    %v248 = vpack.c.b16 %v240, %v239
    %257 = vmatprep.subr.bf16.mxu0 0
    %258 = vmatpush1.bf16.msra.mxu0 %v241
    %259 = vmatprep.subr.bf16.mxu0 0
    %260 = vmatpush1.bf16.msra.mxu0 %v242
    %261 = vmatprep.subr.bf16.mxu0 0
    %262 = vmatpush1.bf16.msra.mxu0 %v243
    %263 = vmatprep.subr.bf16.mxu0 0
    %264 = vmatpush1.bf16.msra.mxu0 %v244
    %265 = vmatprep.subr.bf16.mxu0 0
    %266 = vmatpush1.bf16.msra.mxu0 %v245
    %267 = vmatprep.subr.bf16.mxu0 0
    %268 = vmatpush1.bf16.msra.mxu0 %v246
    %269 = vmatprep.subr.bf16.mxu0 0
    %270 = vmatpush1.bf16.msra.mxu0 %v247
    %271 = vmatprep.subr.bf16.mxu0 0
    %272 = vmatpush1.bf16.msra.mxu0 %v248
    %273 = vmatprep.subr.bf16.mxu0 0
    %274 = vmatpush1.bf16.msra.mxu0 0
    %275 = vmatprep.subr.bf16.mxu0 0
    %276 = vmatpush1.bf16.msra.mxu0 0
    %277 = vmatprep.subr.bf16.mxu0 0
    %278 = vmatpush1.bf16.msra.mxu0 0
    %279 = vmatprep.subr.bf16.mxu0 0
    %280 = vmatpush1.bf16.msra.mxu0 0
    %281 = vmatprep.subr.bf16.mxu0 0
    %282 = vmatpush1.bf16.msra.mxu0 0
    %283 = vmatprep.subr.bf16.mxu0 0
    %284 = vmatpush1.bf16.msra.mxu0 0
    %285 = vmatprep.subr.bf16.mxu0 0
    %286 = vmatpush1.bf16.msra.mxu0 0
    %287 = vmatprep.subr.bf16.mxu0 0
    %288 = vmatpush1.bf16.msra.mxu0 0
    %289 = vmatprep.mubr.bf16.mxu0 0
    %290 = vmatmul.mubr.bf16.gmra.mrb[0].mxu0 %v193
    %v291 = vpop.f32.mrb[0].mxu0
    %v292 = vadd.f32 %v159, %v291
    %v293 = vpop.f32.mrb[0].mxu0
    %v294 = vpop.f32.mrb[0].mxu0
    %v295 = vadd.f32 %v159, %v294
    %v296 = vpop.f32.mrb[0].mxu0
    %297 = vmatprep.mubr.bf16.mxu0 0
    %298 = vmatmul.mubr.bf16.gmra.mrb[0].mxu0 %v194
    %v299 = vpop.f32.mrb[0].mxu0
    %v300 = vadd.f32 %v159, %v299
    %v301 = vpop.f32.mrb[0].mxu0
    %v302 = vpop.f32.mrb[0].mxu0
    %v303 = vadd.f32 %v159, %v302
    %v304 = vpop.f32.mrb[0].mxu0
    %305 = vmatprep.mubr.bf16.mxu0 0
    %306 = vmatmul.mubr.bf16.gmra.mrb[0].mxu0 %v195
    %v307 = vpop.f32.mrb[0].mxu0
    %v308 = vadd.f32 %v159, %v307
    %v309 = vpop.f32.mrb[0].mxu0
    %v310 = vpop.f32.mrb[0].mxu0
    %v311 = vadd.f32 %v159, %v310
    %v312 = vpop.f32.mrb[0].mxu0
    %313 = vmatprep.mubr.bf16.mxu0 0
    %314 = vmatmul.mubr.bf16.gmra.mrb[0].mxu0 %v196
    %v315 = vpop.f32.mrb[0].mxu0
    %v316 = vadd.f32 %v159, %v315
    %v317 = vpop.f32.mrb[0].mxu0
    %v318 = vpop.f32.mrb[0].mxu0
    %v319 = vadd.f32 %v159, %v318
    %v320 = vpop.f32.mrb[0].mxu0
    %321 = vmatprep.mubr.bf16.mxu0 0
    %322 = vmatmul.mubr.bf16.gmra.mrb[0].mxu0 %v197
    %v323 = vpop.f32.mrb[0].mxu0
    %v324 = vadd.f32 %v159, %v323
    %v325 = vpop.f32.mrb[0].mxu0
    %v326 = vpop.f32.mrb[0].mxu0
    %v327 = vadd.f32 %v159, %v326
    %v328 = vpop.f32.mrb[0].mxu0
    %329 = vmatprep.mubr.bf16.mxu0 0
    %330 = vmatmul.mubr.bf16.gmra.mrb[0].mxu0 %v198
    %v331 = vpop.f32.mrb[0].mxu0
    %v332 = vadd.f32 %v159, %v331
    %v333 = vpop.f32.mrb[0].mxu0
    %v334 = vpop.f32.mrb[0].mxu0
    %v335 = vadd.f32 %v159, %v334
    %v336 = vpop.f32.mrb[0].mxu0
    %337 = vmatprep.mubr.bf16.mxu0 0
    %338 = vmatmul.mubr.bf16.gmra.mrb[0].mxu0 %v199
    %v339 = vpop.f32.mrb[0].mxu0
    %v340 = vadd.f32 %v159, %v339
    %v341 = vpop.f32.mrb[0].mxu0
    %v342 = vpop.f32.mrb[0].mxu0
    %v343 = vadd.f32 %v159, %v342
    %v344 = vpop.f32.mrb[0].mxu0
    %345 = vmatprep.mubr.bf16.mxu0 0
    %346 = vmatmul.mubr.bf16.gmra.mrb[0].mxu0 %v200
    %v347 = vpop.f32.mrb[0].mxu0
    %v348 = vadd.f32 %v159, %v347
    %v349 = vpop.f32.mrb[0].mxu0
    %v350 = vpop.f32.mrb[0].mxu0
    %v351 = vadd.f32 %v159, %v350
    %v352 = vpop.f32.mrb[0].mxu0
    %353 = vdwg.mxu0
    %v354 = vmax.f32 %v292, 0.0
    %v355 = vmax.f32 %v295, 0.0
    %v356 = vmax.f32 %v300, 0.0
    %v357 = vmax.f32 %v303, 0.0
    %v358 = vmax.f32 %v308, 0.0
    %v359 = vmax.f32 %v311, 0.0
    %v360 = vmax.f32 %v316, 0.0
    %v361 = vmax.f32 %v319, 0.0
    %v362 = vmax.f32 %v324, 0.0
    %v363 = vmax.f32 %v327, 0.0
    %v364 = vmax.f32 %v332, 0.0
    %v365 = vmax.f32 %v335, 0.0
    %v366 = vmax.f32 %v340, 0.0
    %v367 = vmax.f32 %v343, 0.0
    %v368 = vmax.f32 %v348, 0.0
    %v369 = vmax.f32 %v351, 0.0
    %v370 = vpack.c.bf16 %v355, %v354
    %v371 = vpack.c.bf16 %v357, %v356
    %v372 = vpack.c.bf16 %v359, %v358
    %v373 = vpack.c.bf16 %v361, %v360
    %v374 = vpack.c.bf16 %v363, %v362
    %v375 = vpack.c.bf16 %v365, %v364
    %v376 = vpack.c.bf16 %v367, %v366
    %v377 = vpack.c.bf16 %v369, %v368
    %v378 = vld [vmem:[#allocation7] sm:$0xff]
    %v379 = vld [vmem:[#allocation7 + $0x8] sm:$0xff]
    %v380 = vld [vmem:[#allocation7 + $0x10] sm:$0xff]
    %v381 = vld [vmem:[#allocation7 + $0x18] sm:$0xff]
    %v382 = vld [vmem:[#allocation7 + $0x20] sm:$0xff]
    %v383 = vld [vmem:[#allocation7 + $0x28] sm:$0xff]
    %v384 = vld [vmem:[#allocation7 + $0x30] sm:$0xff]
    %v385 = vld [vmem:[#allocation7 + $0x38] sm:$0xff]
    %v386 = vld [vmem:[#allocation7 + $0x40] sm:$0xff]
    %v387 = vld [vmem:[#allocation7 + $0x48] sm:$0xff]
    %v388 = vld [vmem:[#allocation7 + $0x50] sm:$0xff]
    %v389 = vld [vmem:[#allocation7 + $0x58] sm:$0xff]
    %v390 = vld [vmem:[#allocation7 + $0x60] sm:$0xff]
    %v391 = vld [vmem:[#allocation7 + $0x68] sm:$0xff]
    %v392 = vld [vmem:[#allocation7 + $0x70] sm:$0xff]
    %v393 = vld [vmem:[#allocation7 + $0x78] sm:$0xff]
    %v394 = vld [vmem:[%s4] sm:$0x3]
    %v396 = vlaneseq
    %v397 = vshrl.u32 %v396, 7
    %v398 = vsub.s32 0, %v397
    %v399 = vrot.slane %v394, %v398
    %v400 = vlaneseq
    %v401 = vshrl.u32 %v400, 7
    %v402 = vsub.s32 1, %v401
    %v403 = vrot.slane %v394, %v402
    %v422 = vunpack.c.l.b16 %v378
    %v423 = vunpack.c.h.b16 %v378
    %v424 = vunpack.c.l.b16 %v379
    %v425 = vunpack.c.h.b16 %v379
    %v426 = vunpack.c.l.b16 %v380
    %v427 = vunpack.c.h.b16 %v380
    %v428 = vunpack.c.l.b16 %v381
    %v429 = vunpack.c.h.b16 %v381
    %v430 = vunpack.c.l.b16 %v382
    %v431 = vunpack.c.h.b16 %v382
    %v432 = vunpack.c.l.b16 %v383
    %v433 = vunpack.c.h.b16 %v383
    %v434 = vunpack.c.l.b16 %v384
    %v435 = vunpack.c.h.b16 %v384
    %v436 = vunpack.c.l.b16 %v385
    %v437 = vunpack.c.h.b16 %v385
    %v438 = vunpack.c.l.b16 %v386
    %v439 = vunpack.c.h.b16 %v386
    %v440 = vunpack.c.l.b16 %v387
    %v441 = vunpack.c.h.b16 %v387
    %v442 = vunpack.c.l.b16 %v388
    %v443 = vunpack.c.h.b16 %v388
    %v444 = vunpack.c.l.b16 %v389
    %v445 = vunpack.c.h.b16 %v389
    %v446 = vunpack.c.l.b16 %v390
    %v447 = vunpack.c.h.b16 %v390
    %v448 = vunpack.c.l.b16 %v391
    %v449 = vunpack.c.h.b16 %v391
    %v450 = vunpack.c.l.b16 %v392
    %v451 = vunpack.c.h.b16 %v392
    %v452 = vunpack.c.l.b16 %v393
    %v453 = vunpack.c.h.b16 %v393
    %v454 = vpack.c.b16 %v424, %v422
    %v455 = vpack.c.b16 %v425, %v423
    %v456 = vpack.c.b16 %v428, %v426
    %v457 = vpack.c.b16 %v429, %v427
    %v458 = vpack.c.b16 %v432, %v430
    %v459 = vpack.c.b16 %v433, %v431
    %v460 = vpack.c.b16 %v436, %v434
    %v461 = vpack.c.b16 %v437, %v435
    %v462 = vpack.c.b16 %v440, %v438
    %v463 = vpack.c.b16 %v441, %v439
    %v464 = vpack.c.b16 %v444, %v442
    %v465 = vpack.c.b16 %v445, %v443
    %v466 = vpack.c.b16 %v448, %v446
    %v467 = vpack.c.b16 %v449, %v447
    %v468 = vpack.c.b16 %v452, %v450
    %v469 = vpack.c.b16 %v453, %v451
    %486 = vmatprep.subr.bf16.mxu0 %v455
    %487 = vmatpush1.bf16.msra.mxu0 %v454
    %488 = vmatprep.subr.bf16.mxu0 %v457
    %489 = vmatpush1.bf16.msra.mxu0 %v456
    %490 = vmatprep.subr.bf16.mxu0 %v459
    %491 = vmatpush1.bf16.msra.mxu0 %v458
    %492 = vmatprep.subr.bf16.mxu0 %v461
    %493 = vmatpush1.bf16.msra.mxu0 %v460
    %494 = vmatprep.subr.bf16.mxu0 %v463
    %495 = vmatpush1.bf16.msra.mxu0 %v462
    %496 = vmatprep.subr.bf16.mxu0 %v465
    %497 = vmatpush1.bf16.msra.mxu0 %v464
    %498 = vmatprep.subr.bf16.mxu0 %v467
    %499 = vmatpush1.bf16.msra.mxu0 %v466
    %500 = vmatprep.subr.bf16.mxu0 %v469
    %501 = vmatpush1.bf16.msra.mxu0 %v468
    %502 = vmatprep.subr.bf16.mxu0 0
    %503 = vmatpush1.bf16.msra.mxu0 0
    %504 = vmatprep.subr.bf16.mxu0 0
    %505 = vmatpush1.bf16.msra.mxu0 0
    %506 = vmatprep.subr.bf16.mxu0 0
    %507 = vmatpush1.bf16.msra.mxu0 0
    %508 = vmatprep.subr.bf16.mxu0 0
    %509 = vmatpush1.bf16.msra.mxu0 0
    %510 = vmatprep.subr.bf16.mxu0 0
    %511 = vmatpush1.bf16.msra.mxu0 0
    %512 = vmatprep.subr.bf16.mxu0 0
    %513 = vmatpush1.bf16.msra.mxu0 0
    %514 = vmatprep.subr.bf16.mxu0 0
    %515 = vmatpush1.bf16.msra.mxu0 0
    %516 = vmatprep.subr.bf16.mxu0 0
    %517 = vmatpush1.bf16.msra.mxu0 0
    %518 = vmatprep.mubr.bf16.mxu0 0
    %519 = vmatmul.mubr.bf16.gmra.mrb[0].mxu0 %v370
    %v520 = vpop.f32.mrb[0].mxu0
    %v521 = vadd.f32 %v399, %v520
    %v522 = vpop.f32.mrb[0].mxu0
    %v523 = vadd.f32 %v403, %v522
    %v524 = vpop.f32.mrb[0].mxu0
    %v525 = vadd.f32 %v399, %v524
    %v526 = vpop.f32.mrb[0].mxu0
    %v527 = vadd.f32 %v403, %v526
    %528 = vmatprep.mubr.bf16.mxu0 0
    %529 = vmatmul.mubr.bf16.gmra.mrb[0].mxu0 %v371
    %v530 = vpop.f32.mrb[0].mxu0
    %v531 = vadd.f32 %v399, %v530
    %v532 = vpop.f32.mrb[0].mxu0
    %v533 = vadd.f32 %v403, %v532
    %v534 = vpop.f32.mrb[0].mxu0
    %v535 = vadd.f32 %v399, %v534
    %v536 = vpop.f32.mrb[0].mxu0
    %v537 = vadd.f32 %v403, %v536
    %538 = vmatprep.mubr.bf16.mxu0 0
    %539 = vmatmul.mubr.bf16.gmra.mrb[0].mxu0 %v372
    %v540 = vpop.f32.mrb[0].mxu0
    %v541 = vadd.f32 %v399, %v540
    %v542 = vpop.f32.mrb[0].mxu0
    %v543 = vadd.f32 %v403, %v542
    %v544 = vpop.f32.mrb[0].mxu0
    %v545 = vadd.f32 %v399, %v544
    %v546 = vpop.f32.mrb[0].mxu0
    %v547 = vadd.f32 %v403, %v546
    %548 = vmatprep.mubr.bf16.mxu0 0
    %549 = vmatmul.mubr.bf16.gmra.mrb[0].mxu0 %v373
    %v550 = vpop.f32.mrb[0].mxu0
    %v551 = vadd.f32 %v399, %v550
    %v552 = vpop.f32.mrb[0].mxu0
    %v553 = vadd.f32 %v403, %v552
    %v554 = vpop.f32.mrb[0].mxu0
    %v555 = vadd.f32 %v399, %v554
    %v556 = vpop.f32.mrb[0].mxu0
    %v557 = vadd.f32 %v403, %v556
    %558 = vmatprep.mubr.bf16.mxu0 0
    %559 = vmatmul.mubr.bf16.gmra.mrb[0].mxu0 %v374
    %v560 = vpop.f32.mrb[0].mxu0
    %v561 = vadd.f32 %v399, %v560
    %v562 = vpop.f32.mrb[0].mxu0
    %v563 = vadd.f32 %v403, %v562
    %v564 = vpop.f32.mrb[0].mxu0
    %v565 = vadd.f32 %v399, %v564
    %v566 = vpop.f32.mrb[0].mxu0
    %v567 = vadd.f32 %v403, %v566
    %568 = vmatprep.mubr.bf16.mxu0 0
    %569 = vmatmul.mubr.bf16.gmra.mrb[0].mxu0 %v375
    %v570 = vpop.f32.mrb[0].mxu0
    %v571 = vadd.f32 %v399, %v570
    %v572 = vpop.f32.mrb[0].mxu0
    %v573 = vadd.f32 %v403, %v572
    %v574 = vpop.f32.mrb[0].mxu0
    %v575 = vadd.f32 %v399, %v574
    %v576 = vpop.f32.mrb[0].mxu0
    %v577 = vadd.f32 %v403, %v576
    %578 = vmatprep.mubr.bf16.mxu0 0
    %579 = vmatmul.mubr.bf16.gmra.mrb[0].mxu0 %v376
    %v580 = vpop.f32.mrb[0].mxu0
    %v581 = vadd.f32 %v399, %v580
    %v582 = vpop.f32.mrb[0].mxu0
    %v583 = vadd.f32 %v403, %v582
    %v584 = vpop.f32.mrb[0].mxu0
    %v585 = vadd.f32 %v399, %v584
    %v586 = vpop.f32.mrb[0].mxu0
    %v587 = vadd.f32 %v403, %v586
    %588 = vmatprep.mubr.bf16.mxu0 0
    %589 = vmatmul.mubr.bf16.gmra.mrb[0].mxu0 %v377
    %v590 = vpop.f32.mrb[0].mxu0
    %v591 = vadd.f32 %v399, %v590
    %v592 = vpop.f32.mrb[0].mxu0
    %v593 = vadd.f32 %v403, %v592
    %v594 = vpop.f32.mrb[0].mxu0
    %v595 = vadd.f32 %v399, %v594
    %v596 = vpop.f32.mrb[0].mxu0
    %v597 = vadd.f32 %v403, %v596
    %598 = vdwg.mxu0
    %v599 = vmax.f32 %v521, 0.0
    %v600 = vmax.f32 %v523, 0.0
    %v601 = vmax.f32 %v525, 0.0
    %v602 = vmax.f32 %v527, 0.0
    %v603 = vmax.f32 %v531, 0.0
    %v604 = vmax.f32 %v533, 0.0
    %v605 = vmax.f32 %v535, 0.0
    %v606 = vmax.f32 %v537, 0.0
    %v607 = vmax.f32 %v541, 0.0
    %v608 = vmax.f32 %v543, 0.0
    %v609 = vmax.f32 %v545, 0.0
    %v610 = vmax.f32 %v547, 0.0
    %v611 = vmax.f32 %v551, 0.0
    %v612 = vmax.f32 %v553, 0.0
    %v613 = vmax.f32 %v555, 0.0
    %v614 = vmax.f32 %v557, 0.0
    %v615 = vmax.f32 %v561, 0.0
    %v616 = vmax.f32 %v563, 0.0
    %v617 = vmax.f32 %v565, 0.0
    %v618 = vmax.f32 %v567, 0.0
    %v619 = vmax.f32 %v571, 0.0
    %v620 = vmax.f32 %v573, 0.0
    %v621 = vmax.f32 %v575, 0.0
    %v622 = vmax.f32 %v577, 0.0
    %v623 = vmax.f32 %v581, 0.0
    %v624 = vmax.f32 %v583, 0.0
    %v625 = vmax.f32 %v585, 0.0
    %v626 = vmax.f32 %v587, 0.0
    %v627 = vmax.f32 %v591, 0.0
    %v628 = vmax.f32 %v593, 0.0
    %v629 = vmax.f32 %v595, 0.0
    %v630 = vmax.f32 %v597, 0.0
    %v631 = vpack.c.bf16 %v601, %v599
    %v632 = vpack.c.bf16 %v602, %v600
    %v633 = vpack.c.bf16 %v605, %v603
    %v634 = vpack.c.bf16 %v606, %v604
    %v635 = vpack.c.bf16 %v609, %v607
    %v636 = vpack.c.bf16 %v610, %v608
    %v637 = vpack.c.bf16 %v613, %v611
    %v638 = vpack.c.bf16 %v614, %v612
    %v639 = vpack.c.bf16 %v617, %v615
    %v640 = vpack.c.bf16 %v618, %v616
    %v641 = vpack.c.bf16 %v621, %v619
    %v642 = vpack.c.bf16 %v622, %v620
    %v643 = vpack.c.bf16 %v625, %v623
    %v644 = vpack.c.bf16 %v626, %v624
    %v645 = vpack.c.bf16 %v629, %v627
    %v646 = vpack.c.bf16 %v630, %v628
    %v647 = vld [vmem:[#allocation8] sm:$0xff]
    %v648 = vld [vmem:[#allocation8 + $0x8] sm:$0xff]
    %v649 = vld [vmem:[#allocation8 + $0x10] sm:$0xff]
    %v650 = vld [vmem:[#allocation8 + $0x18] sm:$0xff]
    %v651 = vld [vmem:[#allocation8 + $0x20] sm:$0xff]
    %v652 = vld [vmem:[#allocation8 + $0x28] sm:$0xff]
    %v653 = vld [vmem:[#allocation8 + $0x30] sm:$0xff]
    %v654 = vld [vmem:[#allocation8 + $0x38] sm:$0xff]
    %v655 = vld [vmem:[#allocation8 + $0x40] sm:$0xff]
    %v656 = vld [vmem:[#allocation8 + $0x48] sm:$0xff]
    %v657 = vld [vmem:[#allocation8 + $0x50] sm:$0xff]
    %v658 = vld [vmem:[#allocation8 + $0x58] sm:$0xff]
    %v659 = vld [vmem:[#allocation8 + $0x60] sm:$0xff]
    %v660 = vld [vmem:[#allocation8 + $0x68] sm:$0xff]
    %v661 = vld [vmem:[#allocation8 + $0x70] sm:$0xff]
    %v662 = vld [vmem:[#allocation8 + $0x78] sm:$0xff]
    %v663 = vld [vmem:[#allocation8 + $0x80] sm:$0xff]
    %v664 = vld [vmem:[#allocation8 + $0x88] sm:$0xff]
    %v665 = vld [vmem:[#allocation8 + $0x90] sm:$0xff]
    %v666 = vld [vmem:[#allocation8 + $0x98] sm:$0xff]
    %v667 = vld [vmem:[#allocation8 + $0xa0] sm:$0xff]
    %v668 = vld [vmem:[#allocation8 + $0xa8] sm:$0xff]
    %v669 = vld [vmem:[#allocation8 + $0xb0] sm:$0xff]
    %v670 = vld [vmem:[#allocation8 + $0xb8] sm:$0xff]
    %v671 = vld [vmem:[#allocation8 + $0xc0] sm:$0xff]
    %v672 = vld [vmem:[#allocation8 + $0xc8] sm:$0xff]
    %v673 = vld [vmem:[#allocation8 + $0xd0] sm:$0xff]
    %v674 = vld [vmem:[#allocation8 + $0xd8] sm:$0xff]
    %v675 = vld [vmem:[#allocation8 + $0xe0] sm:$0xff]
    %v676 = vld [vmem:[#allocation8 + $0xe8] sm:$0xff]
    %v677 = vld [vmem:[#allocation8 + $0xf0] sm:$0xff]
    %v678 = vld [vmem:[#allocation8 + $0xf8] sm:$0xff]
    %v679 = vld [vmem:[#allocation8 + $0x100] sm:$0xff]
    %v680 = vld [vmem:[#allocation8 + $0x108] sm:$0xff]
    %v681 = vld [vmem:[#allocation8 + $0x110] sm:$0xff]
    %v682 = vld [vmem:[#allocation8 + $0x118] sm:$0xff]
    %v683 = vld [vmem:[#allocation8 + $0x120] sm:$0xff]
    %v684 = vld [vmem:[#allocation8 + $0x128] sm:$0xff]
    %v685 = vld [vmem:[#allocation8 + $0x130] sm:$0xff]
    %v686 = vld [vmem:[#allocation8 + $0x138] sm:$0xff]
    %v687 = vld [vmem:[#allocation8 + $0x140] sm:$0xff]
    %v688 = vld [vmem:[#allocation8 + $0x148] sm:$0xff]
    %v689 = vld [vmem:[#allocation8 + $0x150] sm:$0xff]
    %v690 = vld [vmem:[#allocation8 + $0x158] sm:$0xff]
    %v691 = vld [vmem:[#allocation8 + $0x160] sm:$0xff]
    %v692 = vld [vmem:[#allocation8 + $0x168] sm:$0xff]
    %v693 = vld [vmem:[#allocation8 + $0x170] sm:$0xff]
    %v694 = vld [vmem:[#allocation8 + $0x178] sm:$0xff]
    %v695 = vld [vmem:[#allocation8 + $0x180] sm:$0xff]
    %v696 = vld [vmem:[#allocation8 + $0x188] sm:$0xff]
    %v697 = vld [vmem:[#allocation8 + $0x190] sm:$0xff]
    %v698 = vld [vmem:[#allocation8 + $0x198] sm:$0xff]
    %v699 = vld [vmem:[#allocation8 + $0x1a0] sm:$0xff]
    %v700 = vld [vmem:[#allocation8 + $0x1a8] sm:$0xff]
    %v701 = vld [vmem:[#allocation8 + $0x1b0] sm:$0xff]
    %v702 = vld [vmem:[#allocation8 + $0x1b8] sm:$0xff]
    %v703 = vld [vmem:[#allocation8 + $0x1c0] sm:$0xff]
    %v704 = vld [vmem:[#allocation8 + $0x1c8] sm:$0xff]
    %v705 = vld [vmem:[#allocation8 + $0x1d0] sm:$0xff]
    %v706 = vld [vmem:[#allocation8 + $0x1d8] sm:$0xff]
    %v707 = vld [vmem:[#allocation8 + $0x1e0] sm:$0xff]
    %v708 = vld [vmem:[#allocation8 + $0x1e8] sm:$0xff]
    %v709 = vld [vmem:[#allocation8 + $0x1f0] sm:$0xff]
    %v710 = vld [vmem:[#allocation8 + $0x1f8] sm:$0xff]
    %v711 = vld [vmem:[%s6] sm:$0xf]
    %v713 = vlaneseq
    %v714 = vshrl.u32 %v713, 7
    %v715 = vsub.s32 0, %v714
    %v716 = vrot.slane %v711, %v715
    %v717 = vlaneseq
    %v718 = vshrl.u32 %v717, 7
    %v719 = vsub.s32 1, %v718
    %v720 = vrot.slane %v711, %v719
    %v721 = vlaneseq
    %v722 = vshrl.u32 %v721, 7
    %v723 = vsub.s32 2, %v722
    %v724 = vrot.slane %v711, %v723
    %v725 = vlaneseq
    %v726 = vshrl.u32 %v725, 7
    %v727 = vsub.s32 3, %v726
    %v728 = vrot.slane %v711, %v727
    %v797 = vunpack.c.l.b16 %v647
    %v798 = vunpack.c.h.b16 %v647
    %v799 = vunpack.c.l.b16 %v648
    %v800 = vunpack.c.h.b16 %v648
    %v801 = vunpack.c.l.b16 %v649
    %v802 = vunpack.c.h.b16 %v649
    %v803 = vunpack.c.l.b16 %v650
    %v804 = vunpack.c.h.b16 %v650
    %v805 = vunpack.c.l.b16 %v651
    %v806 = vunpack.c.h.b16 %v651
    %v807 = vunpack.c.l.b16 %v652
    %v808 = vunpack.c.h.b16 %v652
    %v809 = vunpack.c.l.b16 %v653
    %v810 = vunpack.c.h.b16 %v653
    %v811 = vunpack.c.l.b16 %v654
    %v812 = vunpack.c.h.b16 %v654
    %v813 = vunpack.c.l.b16 %v655
    %v814 = vunpack.c.h.b16 %v655
    %v815 = vunpack.c.l.b16 %v656
    %v816 = vunpack.c.h.b16 %v656
    %v817 = vunpack.c.l.b16 %v657
    %v818 = vunpack.c.h.b16 %v657
    %v819 = vunpack.c.l.b16 %v658
    %v820 = vunpack.c.h.b16 %v658
    %v821 = vunpack.c.l.b16 %v659
    %v822 = vunpack.c.h.b16 %v659
    %v823 = vunpack.c.l.b16 %v660
    %v824 = vunpack.c.h.b16 %v660
    %v825 = vunpack.c.l.b16 %v661
    %v826 = vunpack.c.h.b16 %v661
    %v827 = vunpack.c.l.b16 %v662
    %v828 = vunpack.c.h.b16 %v662
    %v829 = vunpack.c.l.b16 %v663
    %v830 = vunpack.c.h.b16 %v663
    %v831 = vunpack.c.l.b16 %v664
    %v832 = vunpack.c.h.b16 %v664
    %v833 = vunpack.c.l.b16 %v665
    %v834 = vunpack.c.h.b16 %v665
    %v835 = vunpack.c.l.b16 %v666
    %v836 = vunpack.c.h.b16 %v666
    %v837 = vunpack.c.l.b16 %v667
    %v838 = vunpack.c.h.b16 %v667
    %v839 = vunpack.c.l.b16 %v668
    %v840 = vunpack.c.h.b16 %v668
    %v841 = vunpack.c.l.b16 %v669
    %v842 = vunpack.c.h.b16 %v669
    %v843 = vunpack.c.l.b16 %v670
    %v844 = vunpack.c.h.b16 %v670
    %v845 = vunpack.c.l.b16 %v671
    %v846 = vunpack.c.h.b16 %v671
    %v847 = vunpack.c.l.b16 %v672
    %v848 = vunpack.c.h.b16 %v672
    %v849 = vunpack.c.l.b16 %v673
    %v850 = vunpack.c.h.b16 %v673
    %v851 = vunpack.c.l.b16 %v674
    %v852 = vunpack.c.h.b16 %v674
    %v853 = vunpack.c.l.b16 %v675
    %v854 = vunpack.c.h.b16 %v675
    %v855 = vunpack.c.l.b16 %v676
    %v856 = vunpack.c.h.b16 %v676
    %v857 = vunpack.c.l.b16 %v677
    %v858 = vunpack.c.h.b16 %v677
    %v859 = vunpack.c.l.b16 %v678
    %v860 = vunpack.c.h.b16 %v678
    %v861 = vunpack.c.l.b16 %v679
    %v862 = vunpack.c.h.b16 %v679
    %v863 = vunpack.c.l.b16 %v680
    %v864 = vunpack.c.h.b16 %v680
    %v865 = vunpack.c.l.b16 %v681
    %v866 = vunpack.c.h.b16 %v681
    %v867 = vunpack.c.l.b16 %v682
    %v868 = vunpack.c.h.b16 %v682
    %v869 = vunpack.c.l.b16 %v683
    %v870 = vunpack.c.h.b16 %v683
    %v871 = vunpack.c.l.b16 %v684
    %v872 = vunpack.c.h.b16 %v684
    %v873 = vunpack.c.l.b16 %v685
    %v874 = vunpack.c.h.b16 %v685
    %v875 = vunpack.c.l.b16 %v686
    %v876 = vunpack.c.h.b16 %v686
    %v877 = vunpack.c.l.b16 %v687
    %v878 = vunpack.c.h.b16 %v687
    %v879 = vunpack.c.l.b16 %v688
    %v880 = vunpack.c.h.b16 %v688
    %v881 = vunpack.c.l.b16 %v689
    %v882 = vunpack.c.h.b16 %v689
    %v883 = vunpack.c.l.b16 %v690
    %v884 = vunpack.c.h.b16 %v690
    %v885 = vunpack.c.l.b16 %v691
    %v886 = vunpack.c.h.b16 %v691
    %v887 = vunpack.c.l.b16 %v692
    %v888 = vunpack.c.h.b16 %v692
    %v889 = vunpack.c.l.b16 %v693
    %v890 = vunpack.c.h.b16 %v693
    %v891 = vunpack.c.l.b16 %v694
    %v892 = vunpack.c.h.b16 %v694
    %v893 = vunpack.c.l.b16 %v695
    %v894 = vunpack.c.h.b16 %v695
    %v895 = vunpack.c.l.b16 %v696
    %v896 = vunpack.c.h.b16 %v696
    %v897 = vunpack.c.l.b16 %v697
    %v898 = vunpack.c.h.b16 %v697
    %v899 = vunpack.c.l.b16 %v698
    %v900 = vunpack.c.h.b16 %v698
    %v901 = vunpack.c.l.b16 %v699
    %v902 = vunpack.c.h.b16 %v699
    %v903 = vunpack.c.l.b16 %v700
    %v904 = vunpack.c.h.b16 %v700
    %v905 = vunpack.c.l.b16 %v701
    %v906 = vunpack.c.h.b16 %v701
    %v907 = vunpack.c.l.b16 %v702
    %v908 = vunpack.c.h.b16 %v702
    %v909 = vunpack.c.l.b16 %v703
    %v910 = vunpack.c.h.b16 %v703
    %v911 = vunpack.c.l.b16 %v704
    %v912 = vunpack.c.h.b16 %v704
    %v913 = vunpack.c.l.b16 %v705
    %v914 = vunpack.c.h.b16 %v705
    %v915 = vunpack.c.l.b16 %v706
    %v916 = vunpack.c.h.b16 %v706
    %v917 = vunpack.c.l.b16 %v707
    %v918 = vunpack.c.h.b16 %v707
    %v919 = vunpack.c.l.b16 %v708
    %v920 = vunpack.c.h.b16 %v708
    %v921 = vunpack.c.l.b16 %v709
    %v922 = vunpack.c.h.b16 %v709
    %v923 = vunpack.c.l.b16 %v710
    %v924 = vunpack.c.h.b16 %v710
    %v925 = vpack.c.b16 %v801, %v797
    %v926 = vpack.c.b16 %v802, %v798
    %v927 = vpack.c.b16 %v803, %v799
    %v928 = vpack.c.b16 %v804, %v800
    %v929 = vpack.c.b16 %v809, %v805
    %v930 = vpack.c.b16 %v810, %v806
    %v931 = vpack.c.b16 %v811, %v807
    %v932 = vpack.c.b16 %v812, %v808
    %v933 = vpack.c.b16 %v817, %v813
    %v934 = vpack.c.b16 %v818, %v814
    %v935 = vpack.c.b16 %v819, %v815
    %v936 = vpack.c.b16 %v820, %v816
    %v937 = vpack.c.b16 %v825, %v821
    %v938 = vpack.c.b16 %v826, %v822
    %v939 = vpack.c.b16 %v827, %v823
    %v940 = vpack.c.b16 %v828, %v824
    %v941 = vpack.c.b16 %v833, %v829
    %v942 = vpack.c.b16 %v834, %v830
    %v943 = vpack.c.b16 %v835, %v831
    %v944 = vpack.c.b16 %v836, %v832
    %v945 = vpack.c.b16 %v841, %v837
    %v946 = vpack.c.b16 %v842, %v838
    %v947 = vpack.c.b16 %v843, %v839
    %v948 = vpack.c.b16 %v844, %v840
    %v949 = vpack.c.b16 %v849, %v845
    %v950 = vpack.c.b16 %v850, %v846
    %v951 = vpack.c.b16 %v851, %v847
    %v952 = vpack.c.b16 %v852, %v848
    %v953 = vpack.c.b16 %v857, %v853
    %v954 = vpack.c.b16 %v858, %v854
    %v955 = vpack.c.b16 %v859, %v855
    %v956 = vpack.c.b16 %v860, %v856
    %v957 = vpack.c.b16 %v865, %v861
    %v958 = vpack.c.b16 %v866, %v862
    %v959 = vpack.c.b16 %v867, %v863
    %v960 = vpack.c.b16 %v868, %v864
    %v961 = vpack.c.b16 %v873, %v869
    %v962 = vpack.c.b16 %v874, %v870
    %v963 = vpack.c.b16 %v875, %v871
    %v964 = vpack.c.b16 %v876, %v872
    %v965 = vpack.c.b16 %v881, %v877
    %v966 = vpack.c.b16 %v882, %v878
    %v967 = vpack.c.b16 %v883, %v879
    %v968 = vpack.c.b16 %v884, %v880
    %v969 = vpack.c.b16 %v889, %v885
    %v970 = vpack.c.b16 %v890, %v886
    %v971 = vpack.c.b16 %v891, %v887
    %v972 = vpack.c.b16 %v892, %v888
    %v973 = vpack.c.b16 %v897, %v893
    %v974 = vpack.c.b16 %v898, %v894
    %v975 = vpack.c.b16 %v899, %v895
    %v976 = vpack.c.b16 %v900, %v896
    %v977 = vpack.c.b16 %v905, %v901
    %v978 = vpack.c.b16 %v906, %v902
    %v979 = vpack.c.b16 %v907, %v903
    %v980 = vpack.c.b16 %v908, %v904
    %v981 = vpack.c.b16 %v913, %v909
    %v982 = vpack.c.b16 %v914, %v910
    %v983 = vpack.c.b16 %v915, %v911
    %v984 = vpack.c.b16 %v916, %v912
    %v985 = vpack.c.b16 %v921, %v917
    %v986 = vpack.c.b16 %v922, %v918
    %v987 = vpack.c.b16 %v923, %v919
    %v988 = vpack.c.b16 %v924, %v920
    %1053 = vmatprep.subr.bf16.mxu0 %v926
    %1054 = vmatpush1.bf16.msra.mxu0 %v925
    %1055 = vmatprep.subr.bf16.mxu0 %v930
    %1056 = vmatpush1.bf16.msra.mxu0 %v929
    %1057 = vmatprep.subr.bf16.mxu0 %v934
    %1058 = vmatpush1.bf16.msra.mxu0 %v933
    %1059 = vmatprep.subr.bf16.mxu0 %v938
    %1060 = vmatpush1.bf16.msra.mxu0 %v937
    %1061 = vmatprep.subr.bf16.mxu0 %v942
    %1062 = vmatpush1.bf16.msra.mxu0 %v941
    %1063 = vmatprep.subr.bf16.mxu0 %v946
    %1064 = vmatpush1.bf16.msra.mxu0 %v945
    %1065 = vmatprep.subr.bf16.mxu0 %v950
    %1066 = vmatpush1.bf16.msra.mxu0 %v949
    %1067 = vmatprep.subr.bf16.mxu0 %v954
    %1068 = vmatpush1.bf16.msra.mxu0 %v953
    %1069 = vmatprep.subr.bf16.mxu0 %v958
    %1070 = vmatpush1.bf16.msra.mxu0 %v957
    %1071 = vmatprep.subr.bf16.mxu0 %v962
    %1072 = vmatpush1.bf16.msra.mxu0 %v961
    %1073 = vmatprep.subr.bf16.mxu0 %v966
    %1074 = vmatpush1.bf16.msra.mxu0 %v965
    %1075 = vmatprep.subr.bf16.mxu0 %v970
    %1076 = vmatpush1.bf16.msra.mxu0 %v969
    %1077 = vmatprep.subr.bf16.mxu0 %v974
    %1078 = vmatpush1.bf16.msra.mxu0 %v973
    %1079 = vmatprep.subr.bf16.mxu0 %v978
    %1080 = vmatpush1.bf16.msra.mxu0 %v977
    %1081 = vmatprep.subr.bf16.mxu0 %v982
    %1082 = vmatpush1.bf16.msra.mxu0 %v981
    %1083 = vmatprep.subr.bf16.mxu0 %v986
    %1084 = vmatpush1.bf16.msra.mxu0 %v985
    %1085 = vmatprep.mubr.bf16.mxu0 %v632
    %1086 = vmatmul.mubr.bf16.gmra.mrb[0].mxu0 %v631
    %v1087 = vpop.f32.mrb[0].mxu0
    %v1088 = vadd.f32 %v716, %v1087
    %v1089 = vpop.f32.mrb[0].mxu0
    %v1090 = vadd.f32 %v720, %v1089
    %v1091 = vpop.f32.mrb[0].mxu0
    %v1092 = vadd.f32 %v716, %v1091
    %v1093 = vpop.f32.mrb[0].mxu0
    %v1094 = vadd.f32 %v720, %v1093
    %1095 = vmatprep.mubr.bf16.mxu0 %v634
    %1096 = vmatmul.mubr.bf16.gmra.mrb[0].mxu0 %v633
    %v1097 = vpop.f32.mrb[0].mxu0
    %v1098 = vadd.f32 %v716, %v1097
    %v1099 = vpop.f32.mrb[0].mxu0
    %v1100 = vadd.f32 %v720, %v1099
    %v1101 = vpop.f32.mrb[0].mxu0
    %v1102 = vadd.f32 %v716, %v1101
    %v1103 = vpop.f32.mrb[0].mxu0
    %v1104 = vadd.f32 %v720, %v1103
    %1105 = vmatprep.mubr.bf16.mxu0 %v636
    %1106 = vmatmul.mubr.bf16.gmra.mrb[0].mxu0 %v635
    %v1107 = vpop.f32.mrb[0].mxu0
    %v1108 = vadd.f32 %v716, %v1107
    %v1109 = vpop.f32.mrb[0].mxu0
    %v1110 = vadd.f32 %v720, %v1109
    %v1111 = vpop.f32.mrb[0].mxu0
    %v1112 = vadd.f32 %v716, %v1111
    %v1113 = vpop.f32.mrb[0].mxu0
    %v1114 = vadd.f32 %v720, %v1113
    %1115 = vmatprep.mubr.bf16.mxu0 %v638
    %1116 = vmatmul.mubr.bf16.gmra.mrb[0].mxu0 %v637
    %v1117 = vpop.f32.mrb[0].mxu0
    %v1118 = vadd.f32 %v716, %v1117
    %v1119 = vpop.f32.mrb[0].mxu0
    %v1120 = vadd.f32 %v720, %v1119
    %v1121 = vpop.f32.mrb[0].mxu0
    %v1122 = vadd.f32 %v716, %v1121
    %v1123 = vpop.f32.mrb[0].mxu0
    %v1124 = vadd.f32 %v720, %v1123
    %1125 = vmatprep.mubr.bf16.mxu0 %v640
    %1126 = vmatmul.mubr.bf16.gmra.mrb[0].mxu0 %v639
    %v1127 = vpop.f32.mrb[0].mxu0
    %v1128 = vadd.f32 %v716, %v1127
    %v1129 = vpop.f32.mrb[0].mxu0
    %v1130 = vadd.f32 %v720, %v1129
    %v1131 = vpop.f32.mrb[0].mxu0
    %v1132 = vadd.f32 %v716, %v1131
    %v1133 = vpop.f32.mrb[0].mxu0
    %v1134 = vadd.f32 %v720, %v1133
    %1135 = vmatprep.mubr.bf16.mxu0 %v642
    %1136 = vmatmul.mubr.bf16.gmra.mrb[0].mxu0 %v641
    %v1137 = vpop.f32.mrb[0].mxu0
    %v1138 = vadd.f32 %v716, %v1137
    %v1139 = vpop.f32.mrb[0].mxu0
    %v1140 = vadd.f32 %v720, %v1139
    %v1141 = vpop.f32.mrb[0].mxu0
    %v1142 = vadd.f32 %v716, %v1141
    %v1143 = vpop.f32.mrb[0].mxu0
    %v1144 = vadd.f32 %v720, %v1143
    %1145 = vmatprep.mubr.bf16.mxu0 %v644
    %1146 = vmatmul.mubr.bf16.gmra.mrb[0].mxu0 %v643
    %v1147 = vpop.f32.mrb[0].mxu0
    %v1148 = vadd.f32 %v716, %v1147
    %v1149 = vpop.f32.mrb[0].mxu0
    %v1150 = vadd.f32 %v720, %v1149
    %v1151 = vpop.f32.mrb[0].mxu0
    %v1152 = vadd.f32 %v716, %v1151
    %v1153 = vpop.f32.mrb[0].mxu0
    %v1154 = vadd.f32 %v720, %v1153
    %1155 = vmatprep.mubr.bf16.mxu0 %v646
    %1156 = vmatmul.mubr.bf16.gmra.mrb[0].mxu0 %v645
    %v1157 = vpop.f32.mrb[0].mxu0
    %v1158 = vadd.f32 %v716, %v1157
    %v1159 = vpop.f32.mrb[0].mxu0
    %v1160 = vadd.f32 %v720, %v1159
    %v1161 = vpop.f32.mrb[0].mxu0
    %v1162 = vadd.f32 %v716, %v1161
    %v1163 = vpop.f32.mrb[0].mxu0
    %v1164 = vadd.f32 %v720, %v1163
    %1165 = vdwg.mxu0
    %1166 = vmatprep.subr.bf16.mxu0 %v928
    %1167 = vmatpush1.bf16.msra.mxu0 %v927
    %1168 = vmatprep.subr.bf16.mxu0 %v932
    %1169 = vmatpush1.bf16.msra.mxu0 %v931
    %1170 = vmatprep.subr.bf16.mxu0 %v936
    %1171 = vmatpush1.bf16.msra.mxu0 %v935
    %1172 = vmatprep.subr.bf16.mxu0 %v940
    %1173 = vmatpush1.bf16.msra.mxu0 %v939
    %1174 = vmatprep.subr.bf16.mxu0 %v944
    %1175 = vmatpush1.bf16.msra.mxu0 %v943
    %1176 = vmatprep.subr.bf16.mxu0 %v948
    %1177 = vmatpush1.bf16.msra.mxu0 %v947
    %1178 = vmatprep.subr.bf16.mxu0 %v952
    %1179 = vmatpush1.bf16.msra.mxu0 %v951
    %1180 = vmatprep.subr.bf16.mxu0 %v956
    %1181 = vmatpush1.bf16.msra.mxu0 %v955
    %1182 = vmatprep.subr.bf16.mxu0 %v960
    %1183 = vmatpush1.bf16.msra.mxu0 %v959
    %1184 = vmatprep.subr.bf16.mxu0 %v964
    %1185 = vmatpush1.bf16.msra.mxu0 %v963
    %1186 = vmatprep.subr.bf16.mxu0 %v968
    %1187 = vmatpush1.bf16.msra.mxu0 %v967
    %1188 = vmatprep.subr.bf16.mxu0 %v972
    %1189 = vmatpush1.bf16.msra.mxu0 %v971
    %1190 = vmatprep.subr.bf16.mxu0 %v976
    %1191 = vmatpush1.bf16.msra.mxu0 %v975
    %1192 = vmatprep.subr.bf16.mxu0 %v980
    %1193 = vmatpush1.bf16.msra.mxu0 %v979
    %1194 = vmatprep.subr.bf16.mxu0 %v984
    %1195 = vmatpush1.bf16.msra.mxu0 %v983
    %1196 = vmatprep.subr.bf16.mxu0 %v988
    %1197 = vmatpush1.bf16.msra.mxu0 %v987
    %1198 = vmatprep.mubr.bf16.mxu0 %v632
    %1199 = vmatmul.mubr.bf16.gmra.mrb[0].mxu0 %v631
    %v1200 = vpop.f32.mrb[0].mxu0
    %v1201 = vadd.f32 %v724, %v1200
    %v1202 = vpop.f32.mrb[0].mxu0
    %v1203 = vadd.f32 %v728, %v1202
    %v1204 = vpop.f32.mrb[0].mxu0
    %v1205 = vadd.f32 %v724, %v1204
    %v1206 = vpop.f32.mrb[0].mxu0
    %v1207 = vadd.f32 %v728, %v1206
    %1208 = vmatprep.mubr.bf16.mxu0 %v634
    %1209 = vmatmul.mubr.bf16.gmra.mrb[0].mxu0 %v633
    %v1210 = vpop.f32.mrb[0].mxu0
    %v1211 = vadd.f32 %v724, %v1210
    %v1212 = vpop.f32.mrb[0].mxu0
    %v1213 = vadd.f32 %v728, %v1212
    %v1214 = vpop.f32.mrb[0].mxu0
    %v1215 = vadd.f32 %v724, %v1214
    %v1216 = vpop.f32.mrb[0].mxu0
    %v1217 = vadd.f32 %v728, %v1216
    %1218 = vmatprep.mubr.bf16.mxu0 %v636
    %1219 = vmatmul.mubr.bf16.gmra.mrb[0].mxu0 %v635
    %v1220 = vpop.f32.mrb[0].mxu0
    %v1221 = vadd.f32 %v724, %v1220
    %v1222 = vpop.f32.mrb[0].mxu0
    %v1223 = vadd.f32 %v728, %v1222
    %v1224 = vpop.f32.mrb[0].mxu0
    %v1225 = vadd.f32 %v724, %v1224
    %v1226 = vpop.f32.mrb[0].mxu0
    %v1227 = vadd.f32 %v728, %v1226
    %1228 = vmatprep.mubr.bf16.mxu0 %v638
    %1229 = vmatmul.mubr.bf16.gmra.mrb[0].mxu0 %v637
    %v1230 = vpop.f32.mrb[0].mxu0
    %v1231 = vadd.f32 %v724, %v1230
    %v1232 = vpop.f32.mrb[0].mxu0
    %v1233 = vadd.f32 %v728, %v1232
    %v1234 = vpop.f32.mrb[0].mxu0
    %v1235 = vadd.f32 %v724, %v1234
    %v1236 = vpop.f32.mrb[0].mxu0
    %v1237 = vadd.f32 %v728, %v1236
    %1238 = vmatprep.mubr.bf16.mxu0 %v640
    %1239 = vmatmul.mubr.bf16.gmra.mrb[0].mxu0 %v639
    %v1240 = vpop.f32.mrb[0].mxu0
    %v1241 = vadd.f32 %v724, %v1240
    %v1242 = vpop.f32.mrb[0].mxu0
    %v1243 = vadd.f32 %v728, %v1242
    %v1244 = vpop.f32.mrb[0].mxu0
    %v1245 = vadd.f32 %v724, %v1244
    %v1246 = vpop.f32.mrb[0].mxu0
    %v1247 = vadd.f32 %v728, %v1246
    %1248 = vmatprep.mubr.bf16.mxu0 %v642
    %1249 = vmatmul.mubr.bf16.gmra.mrb[0].mxu0 %v641
    %v1250 = vpop.f32.mrb[0].mxu0
    %v1251 = vadd.f32 %v724, %v1250
    %v1252 = vpop.f32.mrb[0].mxu0
    %v1253 = vadd.f32 %v728, %v1252
    %v1254 = vpop.f32.mrb[0].mxu0
    %v1255 = vadd.f32 %v724, %v1254
    %v1256 = vpop.f32.mrb[0].mxu0
    %v1257 = vadd.f32 %v728, %v1256
    %1258 = vmatprep.mubr.bf16.mxu0 %v644
    %1259 = vmatmul.mubr.bf16.gmra.mrb[0].mxu0 %v643
    %v1260 = vpop.f32.mrb[0].mxu0
    %v1261 = vadd.f32 %v724, %v1260
    %v1262 = vpop.f32.mrb[0].mxu0
    %v1263 = vadd.f32 %v728, %v1262
    %v1264 = vpop.f32.mrb[0].mxu0
    %v1265 = vadd.f32 %v724, %v1264
    %v1266 = vpop.f32.mrb[0].mxu0
    %v1267 = vadd.f32 %v728, %v1266
    %1268 = vmatprep.mubr.bf16.mxu0 %v646
    %1269 = vmatmul.mubr.bf16.gmra.mrb[0].mxu0 %v645
    %v1270 = vpop.f32.mrb[0].mxu0
    %v1271 = vadd.f32 %v724, %v1270
    %v1272 = vpop.f32.mrb[0].mxu0
    %v1273 = vadd.f32 %v728, %v1272
    %v1274 = vpop.f32.mrb[0].mxu0
    %v1275 = vadd.f32 %v724, %v1274
    %v1276 = vpop.f32.mrb[0].mxu0
    %v1277 = vadd.f32 %v728, %v1276
    %1278 = vdwg.mxu0
    %v1279 = vmax.f32 %v1088, 0.0
    %v1280 = vmax.f32 %v1090, 0.0
    %v1281 = vmax.f32 %v1201, 0.0
    %v1282 = vmax.f32 %v1203, 0.0
    %v1283 = vmax.f32 %v1092, 0.0
    %v1284 = vmax.f32 %v1094, 0.0
    %v1285 = vmax.f32 %v1205, 0.0
    %v1286 = vmax.f32 %v1207, 0.0
    %v1287 = vmax.f32 %v1098, 0.0
    %v1288 = vmax.f32 %v1100, 0.0
    %v1289 = vmax.f32 %v1211, 0.0
    %v1290 = vmax.f32 %v1213, 0.0
    %v1291 = vmax.f32 %v1102, 0.0
    %v1292 = vmax.f32 %v1104, 0.0
    %v1293 = vmax.f32 %v1215, 0.0
    %v1294 = vmax.f32 %v1217, 0.0
    %v1295 = vmax.f32 %v1108, 0.0
    %v1296 = vmax.f32 %v1110, 0.0
    %v1297 = vmax.f32 %v1221, 0.0
    %v1298 = vmax.f32 %v1223, 0.0
    %v1299 = vmax.f32 %v1112, 0.0
    %v1300 = vmax.f32 %v1114, 0.0
    %v1301 = vmax.f32 %v1225, 0.0
    %v1302 = vmax.f32 %v1227, 0.0
    %v1303 = vmax.f32 %v1118, 0.0
    %v1304 = vmax.f32 %v1120, 0.0
    %v1305 = vmax.f32 %v1231, 0.0
    %v1306 = vmax.f32 %v1233, 0.0
    %v1307 = vmax.f32 %v1122, 0.0
    %v1308 = vmax.f32 %v1124, 0.0
    %v1309 = vmax.f32 %v1235, 0.0
    %v1310 = vmax.f32 %v1237, 0.0
    %v1311 = vmax.f32 %v1128, 0.0
    %v1312 = vmax.f32 %v1130, 0.0
    %v1313 = vmax.f32 %v1241, 0.0
    %v1314 = vmax.f32 %v1243, 0.0
    %v1315 = vmax.f32 %v1132, 0.0
    %v1316 = vmax.f32 %v1134, 0.0
    %v1317 = vmax.f32 %v1245, 0.0
    %v1318 = vmax.f32 %v1247, 0.0
    %v1319 = vmax.f32 %v1138, 0.0
    %v1320 = vmax.f32 %v1140, 0.0
    %v1321 = vmax.f32 %v1251, 0.0
    %v1322 = vmax.f32 %v1253, 0.0
    %v1323 = vmax.f32 %v1142, 0.0
    %v1324 = vmax.f32 %v1144, 0.0
    %v1325 = vmax.f32 %v1255, 0.0
    %v1326 = vmax.f32 %v1257, 0.0
    %v1327 = vmax.f32 %v1148, 0.0
    %v1328 = vmax.f32 %v1150, 0.0
    %v1329 = vmax.f32 %v1261, 0.0
    %v1330 = vmax.f32 %v1263, 0.0
    %v1331 = vmax.f32 %v1152, 0.0
    %v1332 = vmax.f32 %v1154, 0.0
    %v1333 = vmax.f32 %v1265, 0.0
    %v1334 = vmax.f32 %v1267, 0.0
    %v1335 = vmax.f32 %v1158, 0.0
    %v1336 = vmax.f32 %v1160, 0.0
    %v1337 = vmax.f32 %v1271, 0.0
    %v1338 = vmax.f32 %v1273, 0.0
    %v1339 = vmax.f32 %v1162, 0.0
    %v1340 = vmax.f32 %v1164, 0.0
    %v1341 = vmax.f32 %v1275, 0.0
    %v1342 = vmax.f32 %v1277, 0.0
    %v1343 = vpack.c.bf16 %v1283, %v1279
    %v1344 = vpack.c.bf16 %v1284, %v1280
    %v1345 = vpack.c.bf16 %v1285, %v1281
    %v1346 = vpack.c.bf16 %v1286, %v1282
    %v1347 = vpack.c.bf16 %v1291, %v1287
    %v1348 = vpack.c.bf16 %v1292, %v1288
    %v1349 = vpack.c.bf16 %v1293, %v1289
    %v1350 = vpack.c.bf16 %v1294, %v1290
    %v1351 = vpack.c.bf16 %v1299, %v1295
    %v1352 = vpack.c.bf16 %v1300, %v1296
    %v1353 = vpack.c.bf16 %v1301, %v1297
    %v1354 = vpack.c.bf16 %v1302, %v1298
    %v1355 = vpack.c.bf16 %v1307, %v1303
    %v1356 = vpack.c.bf16 %v1308, %v1304
    %v1357 = vpack.c.bf16 %v1309, %v1305
    %v1358 = vpack.c.bf16 %v1310, %v1306
    %v1359 = vpack.c.bf16 %v1315, %v1311
    %v1360 = vpack.c.bf16 %v1316, %v1312
    %v1361 = vpack.c.bf16 %v1317, %v1313
    %v1362 = vpack.c.bf16 %v1318, %v1314
    %v1363 = vpack.c.bf16 %v1323, %v1319
    %v1364 = vpack.c.bf16 %v1324, %v1320
    %v1365 = vpack.c.bf16 %v1325, %v1321
    %v1366 = vpack.c.bf16 %v1326, %v1322
    %v1367 = vpack.c.bf16 %v1331, %v1327
    %v1368 = vpack.c.bf16 %v1332, %v1328
    %v1369 = vpack.c.bf16 %v1333, %v1329
    %v1370 = vpack.c.bf16 %v1334, %v1330
    %v1371 = vpack.c.bf16 %v1339, %v1335
    %v1372 = vpack.c.bf16 %v1340, %v1336
    %v1373 = vpack.c.bf16 %v1341, %v1337
    %v1374 = vpack.c.bf16 %v1342, %v1338
    %v1375 = vld [vmem:[#allocation10] sm:$0xff]
    %v1376 = vld [vmem:[#allocation10 + $0x8] sm:$0xff]
    %v1377 = vld [vmem:[#allocation10 + $0x10] sm:$0xff]
    %v1378 = vld [vmem:[#allocation10 + $0x18] sm:$0xff]
    %v1379 = vld [vmem:[#allocation10 + $0x20] sm:$0xff]
    %v1380 = vld [vmem:[#allocation10 + $0x28] sm:$0xff]
    %v1381 = vld [vmem:[#allocation10 + $0x30] sm:$0xff]
    %v1382 = vld [vmem:[#allocation10 + $0x38] sm:$0xff]
    %v1383 = vld [vmem:[#allocation10 + $0x40] sm:$0xff]
    %v1384 = vld [vmem:[#allocation10 + $0x48] sm:$0xff]
    %v1385 = vld [vmem:[#allocation10 + $0x50] sm:$0xff]
    %v1386 = vld [vmem:[#allocation10 + $0x58] sm:$0xff]
    %v1387 = vld [vmem:[#allocation10 + $0x60] sm:$0xff]
    %v1388 = vld [vmem:[#allocation10 + $0x68] sm:$0xff]
    %v1389 = vld [vmem:[#allocation10 + $0x70] sm:$0xff]
    %v1390 = vld [vmem:[#allocation10 + $0x78] sm:$0xff]
    %v1391 = vld [vmem:[#allocation10 + $0x80] sm:$0xff]
    %v1392 = vld [vmem:[#allocation10 + $0x88] sm:$0xff]
    %v1393 = vld [vmem:[#allocation10 + $0x90] sm:$0xff]
    %v1394 = vld [vmem:[#allocation10 + $0x98] sm:$0xff]
    %v1395 = vld [vmem:[#allocation10 + $0xa0] sm:$0xff]
    %v1396 = vld [vmem:[#allocation10 + $0xa8] sm:$0xff]
    %v1397 = vld [vmem:[#allocation10 + $0xb0] sm:$0xff]
    %v1398 = vld [vmem:[#allocation10 + $0xb8] sm:$0xff]
    %v1399 = vld [vmem:[#allocation10 + $0xc0] sm:$0xff]
    %v1400 = vld [vmem:[#allocation10 + $0xc8] sm:$0xff]
    %v1401 = vld [vmem:[#allocation10 + $0xd0] sm:$0xff]
    %v1402 = vld [vmem:[#allocation10 + $0xd8] sm:$0xff]
    %v1403 = vld [vmem:[#allocation10 + $0xe0] sm:$0xff]
    %v1404 = vld [vmem:[#allocation10 + $0xe8] sm:$0xff]
    %v1405 = vld [vmem:[#allocation10 + $0xf0] sm:$0xff]
    %v1406 = vld [vmem:[#allocation10 + $0xf8] sm:$0xff]
    %v1407 = vld [vmem:[#allocation10 + $0x100] sm:$0xff]
    %v1408 = vld [vmem:[#allocation10 + $0x108] sm:$0xff]
    %v1409 = vld [vmem:[#allocation10 + $0x110] sm:$0xff]
    %v1410 = vld [vmem:[#allocation10 + $0x118] sm:$0xff]
    %v1411 = vld [vmem:[#allocation10 + $0x120] sm:$0xff]
    %v1412 = vld [vmem:[#allocation10 + $0x128] sm:$0xff]
    %v1413 = vld [vmem:[#allocation10 + $0x130] sm:$0xff]
    %v1414 = vld [vmem:[#allocation10 + $0x138] sm:$0xff]
    %v1415 = vld [vmem:[#allocation10 + $0x140] sm:$0xff]
    %v1416 = vld [vmem:[#allocation10 + $0x148] sm:$0xff]
    %v1417 = vld [vmem:[#allocation10 + $0x150] sm:$0xff]
    %v1418 = vld [vmem:[#allocation10 + $0x158] sm:$0xff]
    %v1419 = vld [vmem:[#allocation10 + $0x160] sm:$0xff]
    %v1420 = vld [vmem:[#allocation10 + $0x168] sm:$0xff]
    %v1421 = vld [vmem:[#allocation10 + $0x170] sm:$0xff]
    %v1422 = vld [vmem:[#allocation10 + $0x178] sm:$0xff]
    %v1423 = vld [vmem:[#allocation10 + $0x180] sm:$0xff]
    %v1424 = vld [vmem:[#allocation10 + $0x188] sm:$0xff]
    %v1425 = vld [vmem:[#allocation10 + $0x190] sm:$0xff]
    %v1426 = vld [vmem:[#allocation10 + $0x198] sm:$0xff]
    %v1427 = vld [vmem:[#allocation10 + $0x1a0] sm:$0xff]
    %v1428 = vld [vmem:[#allocation10 + $0x1a8] sm:$0xff]
    %v1429 = vld [vmem:[#allocation10 + $0x1b0] sm:$0xff]
    %v1430 = vld [vmem:[#allocation10 + $0x1b8] sm:$0xff]
    %v1431 = vld [vmem:[#allocation10 + $0x1c0] sm:$0xff]
    %v1432 = vld [vmem:[#allocation10 + $0x1c8] sm:$0xff]
    %v1433 = vld [vmem:[#allocation10 + $0x1d0] sm:$0xff]
    %v1434 = vld [vmem:[#allocation10 + $0x1d8] sm:$0xff]
    %v1435 = vld [vmem:[#allocation10 + $0x1e0] sm:$0xff]
    %v1436 = vld [vmem:[#allocation10 + $0x1e8] sm:$0xff]
    %v1437 = vld [vmem:[#allocation10 + $0x1f0] sm:$0xff]
    %v1438 = vld [vmem:[#allocation10 + $0x1f8] sm:$0xff]
    %v1439 = vld [vmem:[#allocation10 + $0x200] sm:$0xff]
    %v1440 = vld [vmem:[#allocation10 + $0x208] sm:$0xff]
    %v1441 = vld [vmem:[#allocation10 + $0x210] sm:$0xff]
    %v1442 = vld [vmem:[#allocation10 + $0x218] sm:$0xff]
    %v1443 = vld [vmem:[#allocation10 + $0x220] sm:$0xff]
    %v1444 = vld [vmem:[#allocation10 + $0x228] sm:$0xff]
    %v1445 = vld [vmem:[#allocation10 + $0x230] sm:$0xff]
    %v1446 = vld [vmem:[#allocation10 + $0x238] sm:$0xff]
    %v1447 = vld [vmem:[#allocation10 + $0x240] sm:$0xff]
    %v1448 = vld [vmem:[#allocation10 + $0x248] sm:$0xff]
    %v1449 = vld [vmem:[#allocation10 + $0x250] sm:$0xff]
    %v1450 = vld [vmem:[#allocation10 + $0x258] sm:$0xff]
    %v1451 = vld [vmem:[#allocation10 + $0x260] sm:$0xff]
    %v1452 = vld [vmem:[#allocation10 + $0x268] sm:$0xff]
    %v1453 = vld [vmem:[#allocation10 + $0x270] sm:$0xff]
    %v1454 = vld [vmem:[#allocation10 + $0x278] sm:$0xff]
    %v1455 = vld [vmem:[#allocation10 + $0x280] sm:$0xff]
    %v1456 = vld [vmem:[#allocation10 + $0x288] sm:$0xff]
    %v1457 = vld [vmem:[#allocation10 + $0x290] sm:$0xff]
    %v1458 = vld [vmem:[#allocation10 + $0x298] sm:$0xff]
    %v1459 = vld [vmem:[#allocation10 + $0x2a0] sm:$0xff]
    %v1460 = vld [vmem:[#allocation10 + $0x2a8] sm:$0xff]
    %v1461 = vld [vmem:[#allocation10 + $0x2b0] sm:$0xff]
    %v1462 = vld [vmem:[#allocation10 + $0x2b8] sm:$0xff]
    %v1463 = vld [vmem:[#allocation10 + $0x2c0] sm:$0xff]
    %v1464 = vld [vmem:[#allocation10 + $0x2c8] sm:$0xff]
    %v1465 = vld [vmem:[#allocation10 + $0x2d0] sm:$0xff]
    %v1466 = vld [vmem:[#allocation10 + $0x2d8] sm:$0xff]
    %v1467 = vld [vmem:[#allocation10 + $0x2e0] sm:$0xff]
    %v1468 = vld [vmem:[#allocation10 + $0x2e8] sm:$0xff]
    %v1469 = vld [vmem:[#allocation10 + $0x2f0] sm:$0xff]
    %v1470 = vld [vmem:[#allocation10 + $0x2f8] sm:$0xff]
    %v1471 = vld [vmem:[#allocation10 + $0x300] sm:$0xff]
    %v1472 = vld [vmem:[#allocation10 + $0x308] sm:$0xff]
    %v1473 = vld [vmem:[#allocation10 + $0x310] sm:$0xff]
    %v1474 = vld [vmem:[#allocation10 + $0x318] sm:$0xff]
    %v1475 = vld [vmem:[#allocation10 + $0x320] sm:$0xff]
    %v1476 = vld [vmem:[#allocation10 + $0x328] sm:$0xff]
    %v1477 = vld [vmem:[#allocation10 + $0x330] sm:$0xff]
    %v1478 = vld [vmem:[#allocation10 + $0x338] sm:$0xff]
    %v1479 = vld [vmem:[#allocation10 + $0x340] sm:$0xff]
    %v1480 = vld [vmem:[#allocation10 + $0x348] sm:$0xff]
    %v1481 = vld [vmem:[#allocation10 + $0x350] sm:$0xff]
    %v1482 = vld [vmem:[#allocation10 + $0x358] sm:$0xff]
    %v1483 = vld [vmem:[#allocation10 + $0x360] sm:$0xff]
    %v1484 = vld [vmem:[#allocation10 + $0x368] sm:$0xff]
    %v1485 = vld [vmem:[#allocation10 + $0x370] sm:$0xff]
    %v1486 = vld [vmem:[#allocation10 + $0x378] sm:$0xff]
    %v1487 = vld [vmem:[#allocation10 + $0x380] sm:$0xff]
    %v1488 = vld [vmem:[#allocation10 + $0x388] sm:$0xff]
    %v1489 = vld [vmem:[#allocation10 + $0x390] sm:$0xff]
    %v1490 = vld [vmem:[#allocation10 + $0x398] sm:$0xff]
    %v1491 = vld [vmem:[#allocation10 + $0x3a0] sm:$0xff]
    %v1492 = vld [vmem:[#allocation10 + $0x3a8] sm:$0xff]
    %v1493 = vld [vmem:[#allocation10 + $0x3b0] sm:$0xff]
    %v1494 = vld [vmem:[#allocation10 + $0x3b8] sm:$0xff]
    %v1495 = vld [vmem:[#allocation10 + $0x3c0] sm:$0xff]
    %v1496 = vld [vmem:[#allocation10 + $0x3c8] sm:$0xff]
    %v1497 = vld [vmem:[#allocation10 + $0x3d0] sm:$0xff]
    %v1498 = vld [vmem:[#allocation10 + $0x3d8] sm:$0xff]
    %v1499 = vld [vmem:[#allocation10 + $0x3e0] sm:$0xff]
    %v1500 = vld [vmem:[#allocation10 + $0x3e8] sm:$0xff]
    %v1501 = vld [vmem:[#allocation10 + $0x3f0] sm:$0xff]
    %v1502 = vld [vmem:[#allocation10 + $0x3f8] sm:$0xff]
    %v1503 = vld [vmem:[#allocation10 + $0x400] sm:$0xff]
    %v1504 = vld [vmem:[#allocation10 + $0x408] sm:$0xff]
    %v1505 = vld [vmem:[#allocation10 + $0x410] sm:$0xff]
    %v1506 = vld [vmem:[#allocation10 + $0x418] sm:$0xff]
    %v1507 = vld [vmem:[#allocation10 + $0x420] sm:$0xff]
    %v1508 = vld [vmem:[#allocation10 + $0x428] sm:$0xff]
    %v1509 = vld [vmem:[#allocation10 + $0x430] sm:$0xff]
    %v1510 = vld [vmem:[#allocation10 + $0x438] sm:$0xff]
    %v1511 = vld [vmem:[#allocation10 + $0x440] sm:$0xff]
    %v1512 = vld [vmem:[#allocation10 + $0x448] sm:$0xff]
    %v1513 = vld [vmem:[#allocation10 + $0x450] sm:$0xff]
    %v1514 = vld [vmem:[#allocation10 + $0x458] sm:$0xff]
    %v1515 = vld [vmem:[#allocation10 + $0x460] sm:$0xff]
    %v1516 = vld [vmem:[#allocation10 + $0x468] sm:$0xff]
    %v1517 = vld [vmem:[#allocation10 + $0x470] sm:$0xff]
    %v1518 = vld [vmem:[#allocation10 + $0x478] sm:$0xff]
    %v1519 = vld [vmem:[#allocation10 + $0x480] sm:$0xff]
    %v1520 = vld [vmem:[#allocation10 + $0x488] sm:$0xff]
    %v1521 = vld [vmem:[#allocation10 + $0x490] sm:$0xff]
    %v1522 = vld [vmem:[#allocation10 + $0x498] sm:$0xff]
    %v1523 = vld [vmem:[#allocation10 + $0x4a0] sm:$0xff]
    %v1524 = vld [vmem:[#allocation10 + $0x4a8] sm:$0xff]
    %v1525 = vld [vmem:[#allocation10 + $0x4b0] sm:$0xff]
    %v1526 = vld [vmem:[#allocation10 + $0x4b8] sm:$0xff]
    %v1527 = vld [vmem:[#allocation10 + $0x4c0] sm:$0xff]
    %v1528 = vld [vmem:[#allocation10 + $0x4c8] sm:$0xff]
    %v1529 = vld [vmem:[#allocation10 + $0x4d0] sm:$0xff]
    %v1530 = vld [vmem:[#allocation10 + $0x4d8] sm:$0xff]
    %v1531 = vld [vmem:[#allocation10 + $0x4e0] sm:$0xff]
    %v1532 = vld [vmem:[#allocation10 + $0x4e8] sm:$0xff]
    %v1533 = vld [vmem:[#allocation10 + $0x4f0] sm:$0xff]
    %v1534 = vld [vmem:[#allocation10 + $0x4f8] sm:$0xff]
    %v1535 = vld [vmem:[#allocation10 + $0x500] sm:$0xff]
    %v1536 = vld [vmem:[#allocation10 + $0x508] sm:$0xff]
    %v1537 = vld [vmem:[#allocation10 + $0x510] sm:$0xff]
    %v1538 = vld [vmem:[#allocation10 + $0x518] sm:$0xff]
    %v1539 = vld [vmem:[#allocation10 + $0x520] sm:$0xff]
    %v1540 = vld [vmem:[#allocation10 + $0x528] sm:$0xff]
    %v1541 = vld [vmem:[#allocation10 + $0x530] sm:$0xff]
    %v1542 = vld [vmem:[#allocation10 + $0x538] sm:$0xff]
    %v1543 = vld [vmem:[#allocation10 + $0x540] sm:$0xff]
    %v1544 = vld [vmem:[#allocation10 + $0x548] sm:$0xff]
    %v1545 = vld [vmem:[#allocation10 + $0x550] sm:$0xff]
    %v1546 = vld [vmem:[#allocation10 + $0x558] sm:$0xff]
    %v1547 = vld [vmem:[#allocation10 + $0x560] sm:$0xff]
    %v1548 = vld [vmem:[#allocation10 + $0x568] sm:$0xff]
    %v1549 = vld [vmem:[#allocation10 + $0x570] sm:$0xff]
    %v1550 = vld [vmem:[#allocation10 + $0x578] sm:$0xff]
    %v1551 = vld [vmem:[#allocation10 + $0x580] sm:$0xff]
    %v1552 = vld [vmem:[#allocation10 + $0x588] sm:$0xff]
    %v1553 = vld [vmem:[#allocation10 + $0x590] sm:$0xff]
    %v1554 = vld [vmem:[#allocation10 + $0x598] sm:$0xff]
    %v1555 = vld [vmem:[#allocation10 + $0x5a0] sm:$0xff]
    %v1556 = vld [vmem:[#allocation10 + $0x5a8] sm:$0xff]
    %v1557 = vld [vmem:[#allocation10 + $0x5b0] sm:$0xff]
    %v1558 = vld [vmem:[#allocation10 + $0x5b8] sm:$0xff]
    %v1559 = vld [vmem:[#allocation10 + $0x5c0] sm:$0xff]
    %v1560 = vld [vmem:[#allocation10 + $0x5c8] sm:$0xff]
    %v1561 = vld [vmem:[#allocation10 + $0x5d0] sm:$0xff]
    %v1562 = vld [vmem:[#allocation10 + $0x5d8] sm:$0xff]
    %v1563 = vld [vmem:[#allocation10 + $0x5e0] sm:$0xff]
    %v1564 = vld [vmem:[#allocation10 + $0x5e8] sm:$0xff]
    %v1565 = vld [vmem:[#allocation10 + $0x5f0] sm:$0xff]
    %v1566 = vld [vmem:[#allocation10 + $0x5f8] sm:$0xff]
    %v1567 = vld [vmem:[#allocation10 + $0x600] sm:$0xff]
    %v1568 = vld [vmem:[#allocation10 + $0x608] sm:$0xff]
    %v1569 = vld [vmem:[#allocation10 + $0x610] sm:$0xff]
    %v1570 = vld [vmem:[#allocation10 + $0x618] sm:$0xff]
    %v1571 = vld [vmem:[#allocation10 + $0x620] sm:$0xff]
    %v1572 = vld [vmem:[#allocation10 + $0x628] sm:$0xff]
    %v1573 = vld [vmem:[#allocation10 + $0x630] sm:$0xff]
    %v1574 = vld [vmem:[#allocation10 + $0x638] sm:$0xff]
    %v1575 = vld [vmem:[#allocation10 + $0x640] sm:$0xff]
    %v1576 = vld [vmem:[#allocation10 + $0x648] sm:$0xff]
    %v1577 = vld [vmem:[#allocation10 + $0x650] sm:$0xff]
    %v1578 = vld [vmem:[#allocation10 + $0x658] sm:$0xff]
    %v1579 = vld [vmem:[#allocation10 + $0x660] sm:$0xff]
    %v1580 = vld [vmem:[#allocation10 + $0x668] sm:$0xff]
    %v1581 = vld [vmem:[#allocation10 + $0x670] sm:$0xff]
    %v1582 = vld [vmem:[#allocation10 + $0x678] sm:$0xff]
    %v1583 = vld [vmem:[#allocation10 + $0x680] sm:$0xff]
    %v1584 = vld [vmem:[#allocation10 + $0x688] sm:$0xff]
    %v1585 = vld [vmem:[#allocation10 + $0x690] sm:$0xff]
    %v1586 = vld [vmem:[#allocation10 + $0x698] sm:$0xff]
    %v1587 = vld [vmem:[#allocation10 + $0x6a0] sm:$0xff]
    %v1588 = vld [vmem:[#allocation10 + $0x6a8] sm:$0xff]
    %v1589 = vld [vmem:[#allocation10 + $0x6b0] sm:$0xff]
    %v1590 = vld [vmem:[#allocation10 + $0x6b8] sm:$0xff]
    %v1591 = vld [vmem:[#allocation10 + $0x6c0] sm:$0xff]
    %v1592 = vld [vmem:[#allocation10 + $0x6c8] sm:$0xff]
    %v1593 = vld [vmem:[#allocation10 + $0x6d0] sm:$0xff]
    %v1594 = vld [vmem:[#allocation10 + $0x6d8] sm:$0xff]
    %v1595 = vld [vmem:[#allocation10 + $0x6e0] sm:$0xff]
    %v1596 = vld [vmem:[#allocation10 + $0x6e8] sm:$0xff]
    %v1597 = vld [vmem:[#allocation10 + $0x6f0] sm:$0xff]
    %v1598 = vld [vmem:[#allocation10 + $0x6f8] sm:$0xff]
    %v1599 = vld [vmem:[#allocation10 + $0x700] sm:$0xff]
    %v1600 = vld [vmem:[#allocation10 + $0x708] sm:$0xff]
    %v1601 = vld [vmem:[#allocation10 + $0x710] sm:$0xff]
    %v1602 = vld [vmem:[#allocation10 + $0x718] sm:$0xff]
    %v1603 = vld [vmem:[#allocation10 + $0x720] sm:$0xff]
    %v1604 = vld [vmem:[#allocation10 + $0x728] sm:$0xff]
    %v1605 = vld [vmem:[#allocation10 + $0x730] sm:$0xff]
    %v1606 = vld [vmem:[#allocation10 + $0x738] sm:$0xff]
    %v1607 = vld [vmem:[#allocation10 + $0x740] sm:$0xff]
    %v1608 = vld [vmem:[#allocation10 + $0x748] sm:$0xff]
    %v1609 = vld [vmem:[#allocation10 + $0x750] sm:$0xff]
    %v1610 = vld [vmem:[#allocation10 + $0x758] sm:$0xff]
    %v1611 = vld [vmem:[#allocation10 + $0x760] sm:$0xff]
    %v1612 = vld [vmem:[#allocation10 + $0x768] sm:$0xff]
    %v1613 = vld [vmem:[#allocation10 + $0x770] sm:$0xff]
    %v1614 = vld [vmem:[#allocation10 + $0x778] sm:$0xff]
    %v1615 = vld [vmem:[#allocation10 + $0x780] sm:$0xff]
    %v1616 = vld [vmem:[#allocation10 + $0x788] sm:$0xff]
    %v1617 = vld [vmem:[#allocation10 + $0x790] sm:$0xff]
    %v1618 = vld [vmem:[#allocation10 + $0x798] sm:$0xff]
    %v1619 = vld [vmem:[#allocation10 + $0x7a0] sm:$0xff]
    %v1620 = vld [vmem:[#allocation10 + $0x7a8] sm:$0xff]
    %v1621 = vld [vmem:[#allocation10 + $0x7b0] sm:$0xff]
    %v1622 = vld [vmem:[#allocation10 + $0x7b8] sm:$0xff]
    %v1623 = vld [vmem:[#allocation10 + $0x7c0] sm:$0xff]
    %v1624 = vld [vmem:[#allocation10 + $0x7c8] sm:$0xff]
    %v1625 = vld [vmem:[#allocation10 + $0x7d0] sm:$0xff]
    %v1626 = vld [vmem:[#allocation10 + $0x7d8] sm:$0xff]
    %v1627 = vld [vmem:[#allocation10 + $0x7e0] sm:$0xff]
    %v1628 = vld [vmem:[#allocation10 + $0x7e8] sm:$0xff]
    %v1629 = vld [vmem:[#allocation10 + $0x7f0] sm:$0xff]
    %v1630 = vld [vmem:[#allocation10 + $0x7f8] sm:$0xff]
    %v1631 = vld [vmem:[%s8] sm:$0xff]
    %v1633 = vlaneseq
    %v1634 = vshrl.u32 %v1633, 7
    %v1635 = vsub.s32 0, %v1634
    %v1636 = vrot.slane %v1631, %v1635
    %v1637 = vlaneseq
    %v1638 = vshrl.u32 %v1637, 7
    %v1639 = vsub.s32 1, %v1638
    %v1640 = vrot.slane %v1631, %v1639
    %v1641 = vlaneseq
    %v1642 = vshrl.u32 %v1641, 7
    %v1643 = vsub.s32 2, %v1642
    %v1644 = vrot.slane %v1631, %v1643
    %v1645 = vlaneseq
    %v1646 = vshrl.u32 %v1645, 7
    %v1647 = vsub.s32 3, %v1646
    %v1648 = vrot.slane %v1631, %v1647
    %v1649 = vlaneseq
    %v1650 = vshrl.u32 %v1649, 7
    %v1651 = vsub.s32 4, %v1650
    %v1652 = vrot.slane %v1631, %v1651
    %v1653 = vlaneseq
    %v1654 = vshrl.u32 %v1653, 7
    %v1655 = vsub.s32 5, %v1654
    %v1656 = vrot.slane %v1631, %v1655
    %v1657 = vlaneseq
    %v1658 = vshrl.u32 %v1657, 7
    %v1659 = vsub.s32 6, %v1658
    %v1660 = vrot.slane %v1631, %v1659
    %v1661 = vlaneseq
    %v1662 = vshrl.u32 %v1661, 7
    %v1663 = vsub.s32 7, %v1662
    %v1664 = vrot.slane %v1631, %v1663
    %v1929 = vunpack.c.l.b16 %v1375
    %v1930 = vunpack.c.h.b16 %v1375
    %v1931 = vunpack.c.l.b16 %v1376
    %v1932 = vunpack.c.h.b16 %v1376
    %v1933 = vunpack.c.l.b16 %v1377
    %v1934 = vunpack.c.h.b16 %v1377
    %v1935 = vunpack.c.l.b16 %v1378
    %v1936 = vunpack.c.h.b16 %v1378
    %v1937 = vunpack.c.l.b16 %v1379
    %v1938 = vunpack.c.h.b16 %v1379
    %v1939 = vunpack.c.l.b16 %v1380
    %v1940 = vunpack.c.h.b16 %v1380
    %v1941 = vunpack.c.l.b16 %v1381
    %v1942 = vunpack.c.h.b16 %v1381
    %v1943 = vunpack.c.l.b16 %v1382
    %v1944 = vunpack.c.h.b16 %v1382
    %v1945 = vunpack.c.l.b16 %v1383
    %v1946 = vunpack.c.h.b16 %v1383
    %v1947 = vunpack.c.l.b16 %v1384
    %v1948 = vunpack.c.h.b16 %v1384
    %v1949 = vunpack.c.l.b16 %v1385
    %v1950 = vunpack.c.h.b16 %v1385
    %v1951 = vunpack.c.l.b16 %v1386
    %v1952 = vunpack.c.h.b16 %v1386
    %v1953 = vunpack.c.l.b16 %v1387
    %v1954 = vunpack.c.h.b16 %v1387
    %v1955 = vunpack.c.l.b16 %v1388
    %v1956 = vunpack.c.h.b16 %v1388
    %v1957 = vunpack.c.l.b16 %v1389
    %v1958 = vunpack.c.h.b16 %v1389
    %v1959 = vunpack.c.l.b16 %v1390
    %v1960 = vunpack.c.h.b16 %v1390
    %v1961 = vunpack.c.l.b16 %v1391
    %v1962 = vunpack.c.h.b16 %v1391
    %v1963 = vunpack.c.l.b16 %v1392
    %v1964 = vunpack.c.h.b16 %v1392
    %v1965 = vunpack.c.l.b16 %v1393
    %v1966 = vunpack.c.h.b16 %v1393
    %v1967 = vunpack.c.l.b16 %v1394
    %v1968 = vunpack.c.h.b16 %v1394
    %v1969 = vunpack.c.l.b16 %v1395
    %v1970 = vunpack.c.h.b16 %v1395
    %v1971 = vunpack.c.l.b16 %v1396
    %v1972 = vunpack.c.h.b16 %v1396
    %v1973 = vunpack.c.l.b16 %v1397
    %v1974 = vunpack.c.h.b16 %v1397
    %v1975 = vunpack.c.l.b16 %v1398
    %v1976 = vunpack.c.h.b16 %v1398
    %v1977 = vunpack.c.l.b16 %v1399
    %v1978 = vunpack.c.h.b16 %v1399
    %v1979 = vunpack.c.l.b16 %v1400
    %v1980 = vunpack.c.h.b16 %v1400
    %v1981 = vunpack.c.l.b16 %v1401
    %v1982 = vunpack.c.h.b16 %v1401
    %v1983 = vunpack.c.l.b16 %v1402
    %v1984 = vunpack.c.h.b16 %v1402
    %v1985 = vunpack.c.l.b16 %v1403
    %v1986 = vunpack.c.h.b16 %v1403
    %v1987 = vunpack.c.l.b16 %v1404
    %v1988 = vunpack.c.h.b16 %v1404
    %v1989 = vunpack.c.l.b16 %v1405
    %v1990 = vunpack.c.h.b16 %v1405
    %v1991 = vunpack.c.l.b16 %v1406
    %v1992 = vunpack.c.h.b16 %v1406
    %v1993 = vunpack.c.l.b16 %v1407
    %v1994 = vunpack.c.h.b16 %v1407
    %v1995 = vunpack.c.l.b16 %v1408
    %v1996 = vunpack.c.h.b16 %v1408
    %v1997 = vunpack.c.l.b16 %v1409
    %v1998 = vunpack.c.h.b16 %v1409
    %v1999 = vunpack.c.l.b16 %v1410
    %v2000 = vunpack.c.h.b16 %v1410
    %v2001 = vunpack.c.l.b16 %v1411
    %v2002 = vunpack.c.h.b16 %v1411
    %v2003 = vunpack.c.l.b16 %v1412
    %v2004 = vunpack.c.h.b16 %v1412
    %v2005 = vunpack.c.l.b16 %v1413
    %v2006 = vunpack.c.h.b16 %v1413
    %v2007 = vunpack.c.l.b16 %v1414
    %v2008 = vunpack.c.h.b16 %v1414
    %v2009 = vunpack.c.l.b16 %v1415
    %v2010 = vunpack.c.h.b16 %v1415
    %v2011 = vunpack.c.l.b16 %v1416
    %v2012 = vunpack.c.h.b16 %v1416
    %v2013 = vunpack.c.l.b16 %v1417
    %v2014 = vunpack.c.h.b16 %v1417
    %v2015 = vunpack.c.l.b16 %v1418
    %v2016 = vunpack.c.h.b16 %v1418
    %v2017 = vunpack.c.l.b16 %v1419
    %v2018 = vunpack.c.h.b16 %v1419
    %v2019 = vunpack.c.l.b16 %v1420
    %v2020 = vunpack.c.h.b16 %v1420
    %v2021 = vunpack.c.l.b16 %v1421
    %v2022 = vunpack.c.h.b16 %v1421
    %v2023 = vunpack.c.l.b16 %v1422
    %v2024 = vunpack.c.h.b16 %v1422
    %v2025 = vunpack.c.l.b16 %v1423
    %v2026 = vunpack.c.h.b16 %v1423
    %v2027 = vunpack.c.l.b16 %v1424
    %v2028 = vunpack.c.h.b16 %v1424
    %v2029 = vunpack.c.l.b16 %v1425
    %v2030 = vunpack.c.h.b16 %v1425
    %v2031 = vunpack.c.l.b16 %v1426
    %v2032 = vunpack.c.h.b16 %v1426
    %v2033 = vunpack.c.l.b16 %v1427
    %v2034 = vunpack.c.h.b16 %v1427
    %v2035 = vunpack.c.l.b16 %v1428
    %v2036 = vunpack.c.h.b16 %v1428
    %v2037 = vunpack.c.l.b16 %v1429
    %v2038 = vunpack.c.h.b16 %v1429
    %v2039 = vunpack.c.l.b16 %v1430
    %v2040 = vunpack.c.h.b16 %v1430
    %v2041 = vunpack.c.l.b16 %v1431
    %v2042 = vunpack.c.h.b16 %v1431
    %v2043 = vunpack.c.l.b16 %v1432
    %v2044 = vunpack.c.h.b16 %v1432
    %v2045 = vunpack.c.l.b16 %v1433
    %v2046 = vunpack.c.h.b16 %v1433
    %v2047 = vunpack.c.l.b16 %v1434
    %v2048 = vunpack.c.h.b16 %v1434
    %v2049 = vunpack.c.l.b16 %v1435
    %v2050 = vunpack.c.h.b16 %v1435
    %v2051 = vunpack.c.l.b16 %v1436
    %v2052 = vunpack.c.h.b16 %v1436
    %v2053 = vunpack.c.l.b16 %v1437
    %v2054 = vunpack.c.h.b16 %v1437
    %v2055 = vunpack.c.l.b16 %v1438
    %v2056 = vunpack.c.h.b16 %v1438
    %v2057 = vunpack.c.l.b16 %v1439
    %v2058 = vunpack.c.h.b16 %v1439
    %v2059 = vunpack.c.l.b16 %v1440
    %v2060 = vunpack.c.h.b16 %v1440
    %v2061 = vunpack.c.l.b16 %v1441
    %v2062 = vunpack.c.h.b16 %v1441
    %v2063 = vunpack.c.l.b16 %v1442
    %v2064 = vunpack.c.h.b16 %v1442
    %v2065 = vunpack.c.l.b16 %v1443
    %v2066 = vunpack.c.h.b16 %v1443
    %v2067 = vunpack.c.l.b16 %v1444
    %v2068 = vunpack.c.h.b16 %v1444
    %v2069 = vunpack.c.l.b16 %v1445
    %v2070 = vunpack.c.h.b16 %v1445
    %v2071 = vunpack.c.l.b16 %v1446
    %v2072 = vunpack.c.h.b16 %v1446
    %v2073 = vunpack.c.l.b16 %v1447
    %v2074 = vunpack.c.h.b16 %v1447
    %v2075 = vunpack.c.l.b16 %v1448
    %v2076 = vunpack.c.h.b16 %v1448
    %v2077 = vunpack.c.l.b16 %v1449
    %v2078 = vunpack.c.h.b16 %v1449
    %v2079 = vunpack.c.l.b16 %v1450
    %v2080 = vunpack.c.h.b16 %v1450
    %v2081 = vunpack.c.l.b16 %v1451
    %v2082 = vunpack.c.h.b16 %v1451
    %v2083 = vunpack.c.l.b16 %v1452
    %v2084 = vunpack.c.h.b16 %v1452
    %v2085 = vunpack.c.l.b16 %v1453
    %v2086 = vunpack.c.h.b16 %v1453
    %v2087 = vunpack.c.l.b16 %v1454
    %v2088 = vunpack.c.h.b16 %v1454
    %v2089 = vunpack.c.l.b16 %v1455
    %v2090 = vunpack.c.h.b16 %v1455
    %v2091 = vunpack.c.l.b16 %v1456
    %v2092 = vunpack.c.h.b16 %v1456
    %v2093 = vunpack.c.l.b16 %v1457
    %v2094 = vunpack.c.h.b16 %v1457
    %v2095 = vunpack.c.l.b16 %v1458
    %v2096 = vunpack.c.h.b16 %v1458
    %v2097 = vunpack.c.l.b16 %v1459
    %v2098 = vunpack.c.h.b16 %v1459
    %v2099 = vunpack.c.l.b16 %v1460
    %v2100 = vunpack.c.h.b16 %v1460
    %v2101 = vunpack.c.l.b16 %v1461
    %v2102 = vunpack.c.h.b16 %v1461
    %v2103 = vunpack.c.l.b16 %v1462
    %v2104 = vunpack.c.h.b16 %v1462
    %v2105 = vunpack.c.l.b16 %v1463
    %v2106 = vunpack.c.h.b16 %v1463
    %v2107 = vunpack.c.l.b16 %v1464
    %v2108 = vunpack.c.h.b16 %v1464
    %v2109 = vunpack.c.l.b16 %v1465
    %v2110 = vunpack.c.h.b16 %v1465
    %v2111 = vunpack.c.l.b16 %v1466
    %v2112 = vunpack.c.h.b16 %v1466
    %v2113 = vunpack.c.l.b16 %v1467
    %v2114 = vunpack.c.h.b16 %v1467
    %v2115 = vunpack.c.l.b16 %v1468
    %v2116 = vunpack.c.h.b16 %v1468
    %v2117 = vunpack.c.l.b16 %v1469
    %v2118 = vunpack.c.h.b16 %v1469
    %v2119 = vunpack.c.l.b16 %v1470
    %v2120 = vunpack.c.h.b16 %v1470
    %v2121 = vunpack.c.l.b16 %v1471
    %v2122 = vunpack.c.h.b16 %v1471
    %v2123 = vunpack.c.l.b16 %v1472
    %v2124 = vunpack.c.h.b16 %v1472
    %v2125 = vunpack.c.l.b16 %v1473
    %v2126 = vunpack.c.h.b16 %v1473
    %v2127 = vunpack.c.l.b16 %v1474
    %v2128 = vunpack.c.h.b16 %v1474
    %v2129 = vunpack.c.l.b16 %v1475
    %v2130 = vunpack.c.h.b16 %v1475
    %v2131 = vunpack.c.l.b16 %v1476
    %v2132 = vunpack.c.h.b16 %v1476
    %v2133 = vunpack.c.l.b16 %v1477
    %v2134 = vunpack.c.h.b16 %v1477
    %v2135 = vunpack.c.l.b16 %v1478
    %v2136 = vunpack.c.h.b16 %v1478
    %v2137 = vunpack.c.l.b16 %v1479
    %v2138 = vunpack.c.h.b16 %v1479
    %v2139 = vunpack.c.l.b16 %v1480
    %v2140 = vunpack.c.h.b16 %v1480
    %v2141 = vunpack.c.l.b16 %v1481
    %v2142 = vunpack.c.h.b16 %v1481
    %v2143 = vunpack.c.l.b16 %v1482
    %v2144 = vunpack.c.h.b16 %v1482
    %v2145 = vunpack.c.l.b16 %v1483
    %v2146 = vunpack.c.h.b16 %v1483
    %v2147 = vunpack.c.l.b16 %v1484
    %v2148 = vunpack.c.h.b16 %v1484
    %v2149 = vunpack.c.l.b16 %v1485
    %v2150 = vunpack.c.h.b16 %v1485
    %v2151 = vunpack.c.l.b16 %v1486
    %v2152 = vunpack.c.h.b16 %v1486
    %v2153 = vunpack.c.l.b16 %v1487
    %v2154 = vunpack.c.h.b16 %v1487
    %v2155 = vunpack.c.l.b16 %v1488
    %v2156 = vunpack.c.h.b16 %v1488
    %v2157 = vunpack.c.l.b16 %v1489
    %v2158 = vunpack.c.h.b16 %v1489
    %v2159 = vunpack.c.l.b16 %v1490
    %v2160 = vunpack.c.h.b16 %v1490
    %v2161 = vunpack.c.l.b16 %v1491
    %v2162 = vunpack.c.h.b16 %v1491
    %v2163 = vunpack.c.l.b16 %v1492
    %v2164 = vunpack.c.h.b16 %v1492
    %v2165 = vunpack.c.l.b16 %v1493
    %v2166 = vunpack.c.h.b16 %v1493
    %v2167 = vunpack.c.l.b16 %v1494
    %v2168 = vunpack.c.h.b16 %v1494
    %v2169 = vunpack.c.l.b16 %v1495
    %v2170 = vunpack.c.h.b16 %v1495
    %v2171 = vunpack.c.l.b16 %v1496
    %v2172 = vunpack.c.h.b16 %v1496
    %v2173 = vunpack.c.l.b16 %v1497
    %v2174 = vunpack.c.h.b16 %v1497
    %v2175 = vunpack.c.l.b16 %v1498
    %v2176 = vunpack.c.h.b16 %v1498
    %v2177 = vunpack.c.l.b16 %v1499
    %v2178 = vunpack.c.h.b16 %v1499
    %v2179 = vunpack.c.l.b16 %v1500
    %v2180 = vunpack.c.h.b16 %v1500
    %v2181 = vunpack.c.l.b16 %v1501
    %v2182 = vunpack.c.h.b16 %v1501
    %v2183 = vunpack.c.l.b16 %v1502
    %v2184 = vunpack.c.h.b16 %v1502
    %v2185 = vunpack.c.l.b16 %v1503
    %v2186 = vunpack.c.h.b16 %v1503
    %v2187 = vunpack.c.l.b16 %v1504
    %v2188 = vunpack.c.h.b16 %v1504
    %v2189 = vunpack.c.l.b16 %v1505
    %v2190 = vunpack.c.h.b16 %v1505
    %v2191 = vunpack.c.l.b16 %v1506
    %v2192 = vunpack.c.h.b16 %v1506
    %v2193 = vunpack.c.l.b16 %v1507
    %v2194 = vunpack.c.h.b16 %v1507
    %v2195 = vunpack.c.l.b16 %v1508
    %v2196 = vunpack.c.h.b16 %v1508
    %v2197 = vunpack.c.l.b16 %v1509
    %v2198 = vunpack.c.h.b16 %v1509
    %v2199 = vunpack.c.l.b16 %v1510
    %v2200 = vunpack.c.h.b16 %v1510
    %v2201 = vunpack.c.l.b16 %v1511
    %v2202 = vunpack.c.h.b16 %v1511
    %v2203 = vunpack.c.l.b16 %v1512
    %v2204 = vunpack.c.h.b16 %v1512
    %v2205 = vunpack.c.l.b16 %v1513
    %v2206 = vunpack.c.h.b16 %v1513
    %v2207 = vunpack.c.l.b16 %v1514
    %v2208 = vunpack.c.h.b16 %v1514
    %v2209 = vunpack.c.l.b16 %v1515
    %v2210 = vunpack.c.h.b16 %v1515
    %v2211 = vunpack.c.l.b16 %v1516
    %v2212 = vunpack.c.h.b16 %v1516
    %v2213 = vunpack.c.l.b16 %v1517
    %v2214 = vunpack.c.h.b16 %v1517
    %v2215 = vunpack.c.l.b16 %v1518
    %v2216 = vunpack.c.h.b16 %v1518
    %v2217 = vunpack.c.l.b16 %v1519
    %v2218 = vunpack.c.h.b16 %v1519
    %v2219 = vunpack.c.l.b16 %v1520
    %v2220 = vunpack.c.h.b16 %v1520
    %v2221 = vunpack.c.l.b16 %v1521
    %v2222 = vunpack.c.h.b16 %v1521
    %v2223 = vunpack.c.l.b16 %v1522
    %v2224 = vunpack.c.h.b16 %v1522
    %v2225 = vunpack.c.l.b16 %v1523
    %v2226 = vunpack.c.h.b16 %v1523
    %v2227 = vunpack.c.l.b16 %v1524
    %v2228 = vunpack.c.h.b16 %v1524
    %v2229 = vunpack.c.l.b16 %v1525
    %v2230 = vunpack.c.h.b16 %v1525
    %v2231 = vunpack.c.l.b16 %v1526
    %v2232 = vunpack.c.h.b16 %v1526
    %v2233 = vunpack.c.l.b16 %v1527
    %v2234 = vunpack.c.h.b16 %v1527
    %v2235 = vunpack.c.l.b16 %v1528
    %v2236 = vunpack.c.h.b16 %v1528
    %v2237 = vunpack.c.l.b16 %v1529
    %v2238 = vunpack.c.h.b16 %v1529
    %v2239 = vunpack.c.l.b16 %v1530
    %v2240 = vunpack.c.h.b16 %v1530
    %v2241 = vunpack.c.l.b16 %v1531
    %v2242 = vunpack.c.h.b16 %v1531
    %v2243 = vunpack.c.l.b16 %v1532
    %v2244 = vunpack.c.h.b16 %v1532
    %v2245 = vunpack.c.l.b16 %v1533
    %v2246 = vunpack.c.h.b16 %v1533
    %v2247 = vunpack.c.l.b16 %v1534
    %v2248 = vunpack.c.h.b16 %v1534
    %v2249 = vunpack.c.l.b16 %v1535
    %v2250 = vunpack.c.h.b16 %v1535
    %v2251 = vunpack.c.l.b16 %v1536
    %v2252 = vunpack.c.h.b16 %v1536
    %v2253 = vunpack.c.l.b16 %v1537
    %v2254 = vunpack.c.h.b16 %v1537
    %v2255 = vunpack.c.l.b16 %v1538
    %v2256 = vunpack.c.h.b16 %v1538
    %v2257 = vunpack.c.l.b16 %v1539
    %v2258 = vunpack.c.h.b16 %v1539
    %v2259 = vunpack.c.l.b16 %v1540
    %v2260 = vunpack.c.h.b16 %v1540
    %v2261 = vunpack.c.l.b16 %v1541
    %v2262 = vunpack.c.h.b16 %v1541
    %v2263 = vunpack.c.l.b16 %v1542
    %v2264 = vunpack.c.h.b16 %v1542
    %v2265 = vunpack.c.l.b16 %v1543
    %v2266 = vunpack.c.h.b16 %v1543
    %v2267 = vunpack.c.l.b16 %v1544
    %v2268 = vunpack.c.h.b16 %v1544
    %v2269 = vunpack.c.l.b16 %v1545
    %v2270 = vunpack.c.h.b16 %v1545
    %v2271 = vunpack.c.l.b16 %v1546
    %v2272 = vunpack.c.h.b16 %v1546
    %v2273 = vunpack.c.l.b16 %v1547
    %v2274 = vunpack.c.h.b16 %v1547
    %v2275 = vunpack.c.l.b16 %v1548
    %v2276 = vunpack.c.h.b16 %v1548
    %v2277 = vunpack.c.l.b16 %v1549
    %v2278 = vunpack.c.h.b16 %v1549
    %v2279 = vunpack.c.l.b16 %v1550
    %v2280 = vunpack.c.h.b16 %v1550
    %v2281 = vunpack.c.l.b16 %v1551
    %v2282 = vunpack.c.h.b16 %v1551
    %v2283 = vunpack.c.l.b16 %v1552
    %v2284 = vunpack.c.h.b16 %v1552
    %v2285 = vunpack.c.l.b16 %v1553
    %v2286 = vunpack.c.h.b16 %v1553
    %v2287 = vunpack.c.l.b16 %v1554
    %v2288 = vunpack.c.h.b16 %v1554
    %v2289 = vunpack.c.l.b16 %v1555
    %v2290 = vunpack.c.h.b16 %v1555
    %v2291 = vunpack.c.l.b16 %v1556
    %v2292 = vunpack.c.h.b16 %v1556
    %v2293 = vunpack.c.l.b16 %v1557
    %v2294 = vunpack.c.h.b16 %v1557
    %v2295 = vunpack.c.l.b16 %v1558
    %v2296 = vunpack.c.h.b16 %v1558
    %v2297 = vunpack.c.l.b16 %v1559
    %v2298 = vunpack.c.h.b16 %v1559
    %v2299 = vunpack.c.l.b16 %v1560
    %v2300 = vunpack.c.h.b16 %v1560
    %v2301 = vunpack.c.l.b16 %v1561
    %v2302 = vunpack.c.h.b16 %v1561
    %v2303 = vunpack.c.l.b16 %v1562
    %v2304 = vunpack.c.h.b16 %v1562
    %v2305 = vunpack.c.l.b16 %v1563
    %v2306 = vunpack.c.h.b16 %v1563
    %v2307 = vunpack.c.l.b16 %v1564
    %v2308 = vunpack.c.h.b16 %v1564
    %v2309 = vunpack.c.l.b16 %v1565
    %v2310 = vunpack.c.h.b16 %v1565
    %v2311 = vunpack.c.l.b16 %v1566
    %v2312 = vunpack.c.h.b16 %v1566
    %v2313 = vunpack.c.l.b16 %v1567
    %v2314 = vunpack.c.h.b16 %v1567
    %v2315 = vunpack.c.l.b16 %v1568
    %v2316 = vunpack.c.h.b16 %v1568
    %v2317 = vunpack.c.l.b16 %v1569
    %v2318 = vunpack.c.h.b16 %v1569
    %v2319 = vunpack.c.l.b16 %v1570
    %v2320 = vunpack.c.h.b16 %v1570
    %v2321 = vunpack.c.l.b16 %v1571
    %v2322 = vunpack.c.h.b16 %v1571
    %v2323 = vunpack.c.l.b16 %v1572
    %v2324 = vunpack.c.h.b16 %v1572
    %v2325 = vunpack.c.l.b16 %v1573
    %v2326 = vunpack.c.h.b16 %v1573
    %v2327 = vunpack.c.l.b16 %v1574
    %v2328 = vunpack.c.h.b16 %v1574
    %v2329 = vunpack.c.l.b16 %v1575
    %v2330 = vunpack.c.h.b16 %v1575
    %v2331 = vunpack.c.l.b16 %v1576
    %v2332 = vunpack.c.h.b16 %v1576
    %v2333 = vunpack.c.l.b16 %v1577
    %v2334 = vunpack.c.h.b16 %v1577
    %v2335 = vunpack.c.l.b16 %v1578
    %v2336 = vunpack.c.h.b16 %v1578
    %v2337 = vunpack.c.l.b16 %v1579
    %v2338 = vunpack.c.h.b16 %v1579
    %v2339 = vunpack.c.l.b16 %v1580
    %v2340 = vunpack.c.h.b16 %v1580
    %v2341 = vunpack.c.l.b16 %v1581
    %v2342 = vunpack.c.h.b16 %v1581
    %v2343 = vunpack.c.l.b16 %v1582
    %v2344 = vunpack.c.h.b16 %v1582
    %v2345 = vunpack.c.l.b16 %v1583
    %v2346 = vunpack.c.h.b16 %v1583
    %v2347 = vunpack.c.l.b16 %v1584
    %v2348 = vunpack.c.h.b16 %v1584
    %v2349 = vunpack.c.l.b16 %v1585
    %v2350 = vunpack.c.h.b16 %v1585
    %v2351 = vunpack.c.l.b16 %v1586
    %v2352 = vunpack.c.h.b16 %v1586
    %v2353 = vunpack.c.l.b16 %v1587
    %v2354 = vunpack.c.h.b16 %v1587
    %v2355 = vunpack.c.l.b16 %v1588
    %v2356 = vunpack.c.h.b16 %v1588
    %v2357 = vunpack.c.l.b16 %v1589
    %v2358 = vunpack.c.h.b16 %v1589
    %v2359 = vunpack.c.l.b16 %v1590
    %v2360 = vunpack.c.h.b16 %v1590
    %v2361 = vunpack.c.l.b16 %v1591
    %v2362 = vunpack.c.h.b16 %v1591
    %v2363 = vunpack.c.l.b16 %v1592
    %v2364 = vunpack.c.h.b16 %v1592
    %v2365 = vunpack.c.l.b16 %v1593
    %v2366 = vunpack.c.h.b16 %v1593
    %v2367 = vunpack.c.l.b16 %v1594
    %v2368 = vunpack.c.h.b16 %v1594
    %v2369 = vunpack.c.l.b16 %v1595
    %v2370 = vunpack.c.h.b16 %v1595
    %v2371 = vunpack.c.l.b16 %v1596
    %v2372 = vunpack.c.h.b16 %v1596
    %v2373 = vunpack.c.l.b16 %v1597
    %v2374 = vunpack.c.h.b16 %v1597
    %v2375 = vunpack.c.l.b16 %v1598
    %v2376 = vunpack.c.h.b16 %v1598
    %v2377 = vunpack.c.l.b16 %v1599
    %v2378 = vunpack.c.h.b16 %v1599
    %v2379 = vunpack.c.l.b16 %v1600
    %v2380 = vunpack.c.h.b16 %v1600
    %v2381 = vunpack.c.l.b16 %v1601
    %v2382 = vunpack.c.h.b16 %v1601
    %v2383 = vunpack.c.l.b16 %v1602
    %v2384 = vunpack.c.h.b16 %v1602
    %v2385 = vunpack.c.l.b16 %v1603
    %v2386 = vunpack.c.h.b16 %v1603
    %v2387 = vunpack.c.l.b16 %v1604
    %v2388 = vunpack.c.h.b16 %v1604
    %v2389 = vunpack.c.l.b16 %v1605
    %v2390 = vunpack.c.h.b16 %v1605
    %v2391 = vunpack.c.l.b16 %v1606
    %v2392 = vunpack.c.h.b16 %v1606
    %v2393 = vunpack.c.l.b16 %v1607
    %v2394 = vunpack.c.h.b16 %v1607
    %v2395 = vunpack.c.l.b16 %v1608
    %v2396 = vunpack.c.h.b16 %v1608
    %v2397 = vunpack.c.l.b16 %v1609
    %v2398 = vunpack.c.h.b16 %v1609
    %v2399 = vunpack.c.l.b16 %v1610
    %v2400 = vunpack.c.h.b16 %v1610
    %v2401 = vunpack.c.l.b16 %v1611
    %v2402 = vunpack.c.h.b16 %v1611
    %v2403 = vunpack.c.l.b16 %v1612
    %v2404 = vunpack.c.h.b16 %v1612
    %v2405 = vunpack.c.l.b16 %v1613
    %v2406 = vunpack.c.h.b16 %v1613
    %v2407 = vunpack.c.l.b16 %v1614
    %v2408 = vunpack.c.h.b16 %v1614
    %v2409 = vunpack.c.l.b16 %v1615
    %v2410 = vunpack.c.h.b16 %v1615
    %v2411 = vunpack.c.l.b16 %v1616
    %v2412 = vunpack.c.h.b16 %v1616
    %v2413 = vunpack.c.l.b16 %v1617
    %v2414 = vunpack.c.h.b16 %v1617
    %v2415 = vunpack.c.l.b16 %v1618
    %v2416 = vunpack.c.h.b16 %v1618
    %v2417 = vunpack.c.l.b16 %v1619
    %v2418 = vunpack.c.h.b16 %v1619
    %v2419 = vunpack.c.l.b16 %v1620
    %v2420 = vunpack.c.h.b16 %v1620
    %v2421 = vunpack.c.l.b16 %v1621
    %v2422 = vunpack.c.h.b16 %v1621
    %v2423 = vunpack.c.l.b16 %v1622
    %v2424 = vunpack.c.h.b16 %v1622
    %v2425 = vunpack.c.l.b16 %v1623
    %v2426 = vunpack.c.h.b16 %v1623
    %v2427 = vunpack.c.l.b16 %v1624
    %v2428 = vunpack.c.h.b16 %v1624
    %v2429 = vunpack.c.l.b16 %v1625
    %v2430 = vunpack.c.h.b16 %v1625
    %v2431 = vunpack.c.l.b16 %v1626
    %v2432 = vunpack.c.h.b16 %v1626
    %v2433 = vunpack.c.l.b16 %v1627
    %v2434 = vunpack.c.h.b16 %v1627
    %v2435 = vunpack.c.l.b16 %v1628
    %v2436 = vunpack.c.h.b16 %v1628
    %v2437 = vunpack.c.l.b16 %v1629
    %v2438 = vunpack.c.h.b16 %v1629
    %v2439 = vunpack.c.l.b16 %v1630
    %v2440 = vunpack.c.h.b16 %v1630
    %v2441 = vpack.c.b16 %v1937, %v1929
    %v2442 = vpack.c.b16 %v1938, %v1930
    %v2443 = vpack.c.b16 %v1939, %v1931
    %v2444 = vpack.c.b16 %v1940, %v1932
    %v2445 = vpack.c.b16 %v1941, %v1933
    %v2446 = vpack.c.b16 %v1942, %v1934
    %v2447 = vpack.c.b16 %v1943, %v1935
    %v2448 = vpack.c.b16 %v1944, %v1936
    %v2449 = vpack.c.b16 %v1953, %v1945
    %v2450 = vpack.c.b16 %v1954, %v1946
    %v2451 = vpack.c.b16 %v1955, %v1947
    %v2452 = vpack.c.b16 %v1956, %v1948
    %v2453 = vpack.c.b16 %v1957, %v1949
    %v2454 = vpack.c.b16 %v1958, %v1950
    %v2455 = vpack.c.b16 %v1959, %v1951
    %v2456 = vpack.c.b16 %v1960, %v1952
    %v2457 = vpack.c.b16 %v1969, %v1961
    %v2458 = vpack.c.b16 %v1970, %v1962
    %v2459 = vpack.c.b16 %v1971, %v1963
    %v2460 = vpack.c.b16 %v1972, %v1964
    %v2461 = vpack.c.b16 %v1973, %v1965
    %v2462 = vpack.c.b16 %v1974, %v1966
    %v2463 = vpack.c.b16 %v1975, %v1967
    %v2464 = vpack.c.b16 %v1976, %v1968
    %v2465 = vpack.c.b16 %v1985, %v1977
    %v2466 = vpack.c.b16 %v1986, %v1978
    %v2467 = vpack.c.b16 %v1987, %v1979
    %v2468 = vpack.c.b16 %v1988, %v1980
    %v2469 = vpack.c.b16 %v1989, %v1981
    %v2470 = vpack.c.b16 %v1990, %v1982
    %v2471 = vpack.c.b16 %v1991, %v1983
    %v2472 = vpack.c.b16 %v1992, %v1984
    %v2473 = vpack.c.b16 %v2001, %v1993
    %v2474 = vpack.c.b16 %v2002, %v1994
    %v2475 = vpack.c.b16 %v2003, %v1995
    %v2476 = vpack.c.b16 %v2004, %v1996
    %v2477 = vpack.c.b16 %v2005, %v1997
    %v2478 = vpack.c.b16 %v2006, %v1998
    %v2479 = vpack.c.b16 %v2007, %v1999
    %v2480 = vpack.c.b16 %v2008, %v2000
    %v2481 = vpack.c.b16 %v2017, %v2009
    %v2482 = vpack.c.b16 %v2018, %v2010
    %v2483 = vpack.c.b16 %v2019, %v2011
    %v2484 = vpack.c.b16 %v2020, %v2012
    %v2485 = vpack.c.b16 %v2021, %v2013
    %v2486 = vpack.c.b16 %v2022, %v2014
    %v2487 = vpack.c.b16 %v2023, %v2015
    %v2488 = vpack.c.b16 %v2024, %v2016
    %v2489 = vpack.c.b16 %v2033, %v2025
    %v2490 = vpack.c.b16 %v2034, %v2026
    %v2491 = vpack.c.b16 %v2035, %v2027
    %v2492 = vpack.c.b16 %v2036, %v2028
    %v2493 = vpack.c.b16 %v2037, %v2029
    %v2494 = vpack.c.b16 %v2038, %v2030
    %v2495 = vpack.c.b16 %v2039, %v2031
    %v2496 = vpack.c.b16 %v2040, %v2032
    %v2497 = vpack.c.b16 %v2049, %v2041
    %v2498 = vpack.c.b16 %v2050, %v2042
    %v2499 = vpack.c.b16 %v2051, %v2043
    %v2500 = vpack.c.b16 %v2052, %v2044
    %v2501 = vpack.c.b16 %v2053, %v2045
    %v2502 = vpack.c.b16 %v2054, %v2046
    %v2503 = vpack.c.b16 %v2055, %v2047
    %v2504 = vpack.c.b16 %v2056, %v2048
    %v2505 = vpack.c.b16 %v2065, %v2057
    %v2506 = vpack.c.b16 %v2066, %v2058
    %v2507 = vpack.c.b16 %v2067, %v2059
    %v2508 = vpack.c.b16 %v2068, %v2060
    %v2509 = vpack.c.b16 %v2069, %v2061
    %v2510 = vpack.c.b16 %v2070, %v2062
    %v2511 = vpack.c.b16 %v2071, %v2063
    %v2512 = vpack.c.b16 %v2072, %v2064
    %v2513 = vpack.c.b16 %v2081, %v2073
    %v2514 = vpack.c.b16 %v2082, %v2074
    %v2515 = vpack.c.b16 %v2083, %v2075
    %v2516 = vpack.c.b16 %v2084, %v2076
    %v2517 = vpack.c.b16 %v2085, %v2077
    %v2518 = vpack.c.b16 %v2086, %v2078
    %v2519 = vpack.c.b16 %v2087, %v2079
    %v2520 = vpack.c.b16 %v2088, %v2080
    %v2521 = vpack.c.b16 %v2097, %v2089
    %v2522 = vpack.c.b16 %v2098, %v2090
    %v2523 = vpack.c.b16 %v2099, %v2091
    %v2524 = vpack.c.b16 %v2100, %v2092
    %v2525 = vpack.c.b16 %v2101, %v2093
    %v2526 = vpack.c.b16 %v2102, %v2094
    %v2527 = vpack.c.b16 %v2103, %v2095
    %v2528 = vpack.c.b16 %v2104, %v2096
    %v2529 = vpack.c.b16 %v2113, %v2105
    %v2530 = vpack.c.b16 %v2114, %v2106
    %v2531 = vpack.c.b16 %v2115, %v2107
    %v2532 = vpack.c.b16 %v2116, %v2108
    %v2533 = vpack.c.b16 %v2117, %v2109
    %v2534 = vpack.c.b16 %v2118, %v2110
    %v2535 = vpack.c.b16 %v2119, %v2111
    %v2536 = vpack.c.b16 %v2120, %v2112
    %v2537 = vpack.c.b16 %v2129, %v2121
    %v2538 = vpack.c.b16 %v2130, %v2122
    %v2539 = vpack.c.b16 %v2131, %v2123
    %v2540 = vpack.c.b16 %v2132, %v2124
    %v2541 = vpack.c.b16 %v2133, %v2125
    %v2542 = vpack.c.b16 %v2134, %v2126
    %v2543 = vpack.c.b16 %v2135, %v2127
    %v2544 = vpack.c.b16 %v2136, %v2128
    %v2545 = vpack.c.b16 %v2145, %v2137
    %v2546 = vpack.c.b16 %v2146, %v2138
    %v2547 = vpack.c.b16 %v2147, %v2139
    %v2548 = vpack.c.b16 %v2148, %v2140
    %v2549 = vpack.c.b16 %v2149, %v2141
    %v2550 = vpack.c.b16 %v2150, %v2142
    %v2551 = vpack.c.b16 %v2151, %v2143
    %v2552 = vpack.c.b16 %v2152, %v2144
    %v2553 = vpack.c.b16 %v2161, %v2153
    %v2554 = vpack.c.b16 %v2162, %v2154
    %v2555 = vpack.c.b16 %v2163, %v2155
    %v2556 = vpack.c.b16 %v2164, %v2156
    %v2557 = vpack.c.b16 %v2165, %v2157
    %v2558 = vpack.c.b16 %v2166, %v2158
    %v2559 = vpack.c.b16 %v2167, %v2159
    %v2560 = vpack.c.b16 %v2168, %v2160
    %v2561 = vpack.c.b16 %v2177, %v2169
    %v2562 = vpack.c.b16 %v2178, %v2170
    %v2563 = vpack.c.b16 %v2179, %v2171
    %v2564 = vpack.c.b16 %v2180, %v2172
    %v2565 = vpack.c.b16 %v2181, %v2173
    %v2566 = vpack.c.b16 %v2182, %v2174
    %v2567 = vpack.c.b16 %v2183, %v2175
    %v2568 = vpack.c.b16 %v2184, %v2176
    %v2569 = vpack.c.b16 %v2193, %v2185
    %v2570 = vpack.c.b16 %v2194, %v2186
    %v2571 = vpack.c.b16 %v2195, %v2187
    %v2572 = vpack.c.b16 %v2196, %v2188
    %v2573 = vpack.c.b16 %v2197, %v2189
    %v2574 = vpack.c.b16 %v2198, %v2190
    %v2575 = vpack.c.b16 %v2199, %v2191
    %v2576 = vpack.c.b16 %v2200, %v2192
    %v2577 = vpack.c.b16 %v2209, %v2201
    %v2578 = vpack.c.b16 %v2210, %v2202
    %v2579 = vpack.c.b16 %v2211, %v2203
    %v2580 = vpack.c.b16 %v2212, %v2204
    %v2581 = vpack.c.b16 %v2213, %v2205
    %v2582 = vpack.c.b16 %v2214, %v2206
    %v2583 = vpack.c.b16 %v2215, %v2207
    %v2584 = vpack.c.b16 %v2216, %v2208
    %v2585 = vpack.c.b16 %v2225, %v2217
    %v2586 = vpack.c.b16 %v2226, %v2218
    %v2587 = vpack.c.b16 %v2227, %v2219
    %v2588 = vpack.c.b16 %v2228, %v2220
    %v2589 = vpack.c.b16 %v2229, %v2221
    %v2590 = vpack.c.b16 %v2230, %v2222
    %v2591 = vpack.c.b16 %v2231, %v2223
    %v2592 = vpack.c.b16 %v2232, %v2224
    %v2593 = vpack.c.b16 %v2241, %v2233
    %v2594 = vpack.c.b16 %v2242, %v2234
    %v2595 = vpack.c.b16 %v2243, %v2235
    %v2596 = vpack.c.b16 %v2244, %v2236
    %v2597 = vpack.c.b16 %v2245, %v2237
    %v2598 = vpack.c.b16 %v2246, %v2238
    %v2599 = vpack.c.b16 %v2247, %v2239
    %v2600 = vpack.c.b16 %v2248, %v2240
    %v2601 = vpack.c.b16 %v2257, %v2249
    %v2602 = vpack.c.b16 %v2258, %v2250
    %v2603 = vpack.c.b16 %v2259, %v2251
    %v2604 = vpack.c.b16 %v2260, %v2252
    %v2605 = vpack.c.b16 %v2261, %v2253
    %v2606 = vpack.c.b16 %v2262, %v2254
    %v2607 = vpack.c.b16 %v2263, %v2255
    %v2608 = vpack.c.b16 %v2264, %v2256
    %v2609 = vpack.c.b16 %v2273, %v2265
    %v2610 = vpack.c.b16 %v2274, %v2266
    %v2611 = vpack.c.b16 %v2275, %v2267
    %v2612 = vpack.c.b16 %v2276, %v2268
    %v2613 = vpack.c.b16 %v2277, %v2269
    %v2614 = vpack.c.b16 %v2278, %v2270
    %v2615 = vpack.c.b16 %v2279, %v2271
    %v2616 = vpack.c.b16 %v2280, %v2272
    %v2617 = vpack.c.b16 %v2289, %v2281
    %v2618 = vpack.c.b16 %v2290, %v2282
    %v2619 = vpack.c.b16 %v2291, %v2283
    %v2620 = vpack.c.b16 %v2292, %v2284
    %v2621 = vpack.c.b16 %v2293, %v2285
    %v2622 = vpack.c.b16 %v2294, %v2286
    %v2623 = vpack.c.b16 %v2295, %v2287
    %v2624 = vpack.c.b16 %v2296, %v2288
    %v2625 = vpack.c.b16 %v2305, %v2297
    %v2626 = vpack.c.b16 %v2306, %v2298
    %v2627 = vpack.c.b16 %v2307, %v2299
    %v2628 = vpack.c.b16 %v2308, %v2300
    %v2629 = vpack.c.b16 %v2309, %v2301
    %v2630 = vpack.c.b16 %v2310, %v2302
    %v2631 = vpack.c.b16 %v2311, %v2303
    %v2632 = vpack.c.b16 %v2312, %v2304
    %v2633 = vpack.c.b16 %v2321, %v2313
    %v2634 = vpack.c.b16 %v2322, %v2314
    %v2635 = vpack.c.b16 %v2323, %v2315
    %v2636 = vpack.c.b16 %v2324, %v2316
    %v2637 = vpack.c.b16 %v2325, %v2317
    %v2638 = vpack.c.b16 %v2326, %v2318
    %v2639 = vpack.c.b16 %v2327, %v2319
    %v2640 = vpack.c.b16 %v2328, %v2320
    %v2641 = vpack.c.b16 %v2337, %v2329
    %v2642 = vpack.c.b16 %v2338, %v2330
    %v2643 = vpack.c.b16 %v2339, %v2331
    %v2644 = vpack.c.b16 %v2340, %v2332
    %v2645 = vpack.c.b16 %v2341, %v2333
    %v2646 = vpack.c.b16 %v2342, %v2334
    %v2647 = vpack.c.b16 %v2343, %v2335
    %v2648 = vpack.c.b16 %v2344, %v2336
    %v2649 = vpack.c.b16 %v2353, %v2345
    %v2650 = vpack.c.b16 %v2354, %v2346
    %v2651 = vpack.c.b16 %v2355, %v2347
    %v2652 = vpack.c.b16 %v2356, %v2348
    %v2653 = vpack.c.b16 %v2357, %v2349
    %v2654 = vpack.c.b16 %v2358, %v2350
    %v2655 = vpack.c.b16 %v2359, %v2351
    %v2656 = vpack.c.b16 %v2360, %v2352
    %v2657 = vpack.c.b16 %v2369, %v2361
    %v2658 = vpack.c.b16 %v2370, %v2362
    %v2659 = vpack.c.b16 %v2371, %v2363
    %v2660 = vpack.c.b16 %v2372, %v2364
    %v2661 = vpack.c.b16 %v2373, %v2365
    %v2662 = vpack.c.b16 %v2374, %v2366
    %v2663 = vpack.c.b16 %v2375, %v2367
    %v2664 = vpack.c.b16 %v2376, %v2368
    %v2665 = vpack.c.b16 %v2385, %v2377
    %v2666 = vpack.c.b16 %v2386, %v2378
    %v2667 = vpack.c.b16 %v2387, %v2379
    %v2668 = vpack.c.b16 %v2388, %v2380
    %v2669 = vpack.c.b16 %v2389, %v2381
    %v2670 = vpack.c.b16 %v2390, %v2382
    %v2671 = vpack.c.b16 %v2391, %v2383
    %v2672 = vpack.c.b16 %v2392, %v2384
    %v2673 = vpack.c.b16 %v2401, %v2393
    %v2674 = vpack.c.b16 %v2402, %v2394
    %v2675 = vpack.c.b16 %v2403, %v2395
    %v2676 = vpack.c.b16 %v2404, %v2396
    %v2677 = vpack.c.b16 %v2405, %v2397
    %v2678 = vpack.c.b16 %v2406, %v2398
    %v2679 = vpack.c.b16 %v2407, %v2399
    %v2680 = vpack.c.b16 %v2408, %v2400
    %v2681 = vpack.c.b16 %v2417, %v2409
    %v2682 = vpack.c.b16 %v2418, %v2410
    %v2683 = vpack.c.b16 %v2419, %v2411
    %v2684 = vpack.c.b16 %v2420, %v2412
    %v2685 = vpack.c.b16 %v2421, %v2413
    %v2686 = vpack.c.b16 %v2422, %v2414
    %v2687 = vpack.c.b16 %v2423, %v2415
    %v2688 = vpack.c.b16 %v2424, %v2416
    %v2689 = vpack.c.b16 %v2433, %v2425
    %v2690 = vpack.c.b16 %v2434, %v2426
    %v2691 = vpack.c.b16 %v2435, %v2427
    %v2692 = vpack.c.b16 %v2436, %v2428
    %v2693 = vpack.c.b16 %v2437, %v2429
    %v2694 = vpack.c.b16 %v2438, %v2430
    %v2695 = vpack.c.b16 %v2439, %v2431
    %v2696 = vpack.c.b16 %v2440, %v2432
    %2953 = vmatprep.subr.bf16.mxu0 %v2442
    %2954 = vmatpush1.bf16.msra.mxu0 %v2441
    %2955 = vmatprep.subr.bf16.mxu0 %v2450
    %2956 = vmatpush1.bf16.msra.mxu0 %v2449
    %2957 = vmatprep.subr.bf16.mxu0 %v2458
    %2958 = vmatpush1.bf16.msra.mxu0 %v2457
    %2959 = vmatprep.subr.bf16.mxu0 %v2466
    %2960 = vmatpush1.bf16.msra.mxu0 %v2465
    %2961 = vmatprep.subr.bf16.mxu0 %v2474
    %2962 = vmatpush1.bf16.msra.mxu0 %v2473
    %2963 = vmatprep.subr.bf16.mxu0 %v2482
    %2964 = vmatpush1.bf16.msra.mxu0 %v2481
    %2965 = vmatprep.subr.bf16.mxu0 %v2490
    %2966 = vmatpush1.bf16.msra.mxu0 %v2489
    %2967 = vmatprep.subr.bf16.mxu0 %v2498
    %2968 = vmatpush1.bf16.msra.mxu0 %v2497
    %2969 = vmatprep.subr.bf16.mxu0 %v2506
    %2970 = vmatpush1.bf16.msra.mxu0 %v2505
    %2971 = vmatprep.subr.bf16.mxu0 %v2514
    %2972 = vmatpush1.bf16.msra.mxu0 %v2513
    %2973 = vmatprep.subr.bf16.mxu0 %v2522
    %2974 = vmatpush1.bf16.msra.mxu0 %v2521
    %2975 = vmatprep.subr.bf16.mxu0 %v2530
    %2976 = vmatpush1.bf16.msra.mxu0 %v2529
    %2977 = vmatprep.subr.bf16.mxu0 %v2538
    %2978 = vmatpush1.bf16.msra.mxu0 %v2537
    %2979 = vmatprep.subr.bf16.mxu0 %v2546
    %2980 = vmatpush1.bf16.msra.mxu0 %v2545
    %2981 = vmatprep.subr.bf16.mxu0 %v2554
    %2982 = vmatpush1.bf16.msra.mxu0 %v2553
    %2983 = vmatprep.subr.bf16.mxu0 %v2562
    %2984 = vmatpush1.bf16.msra.mxu0 %v2561
    %2985 = vmatprep.mubr.bf16.mxu0 %v1344
    %2986 = vmatmul.mubr.bf16.gmra.mrb[0].mxu0 %v1343
    %v2987 = vpop.f32.mrb[0].mxu0
    %v2988 = vadd.f32 %v1636, %v2987
    %v2989 = vpop.f32.mrb[0].mxu0
    %v2990 = vadd.f32 %v1640, %v2989
    %v2991 = vpop.f32.mrb[0].mxu0
    %v2992 = vadd.f32 %v1636, %v2991
    %v2993 = vpop.f32.mrb[0].mxu0
    %v2994 = vadd.f32 %v1640, %v2993
    %2995 = vmatprep.mubr.bf16.mxu0 %v1348
    %2996 = vmatmul.mubr.bf16.gmra.mrb[0].mxu0 %v1347
    %v2997 = vpop.f32.mrb[0].mxu0
    %v2998 = vadd.f32 %v1636, %v2997
    %v2999 = vpop.f32.mrb[0].mxu0
    %v3000 = vadd.f32 %v1640, %v2999
    %v3001 = vpop.f32.mrb[0].mxu0
    %v3002 = vadd.f32 %v1636, %v3001
    %v3003 = vpop.f32.mrb[0].mxu0
    %v3004 = vadd.f32 %v1640, %v3003
    %3005 = vmatprep.mubr.bf16.mxu0 %v1352
    %3006 = vmatmul.mubr.bf16.gmra.mrb[0].mxu0 %v1351
    %v3007 = vpop.f32.mrb[0].mxu0
    %v3008 = vadd.f32 %v1636, %v3007
    %v3009 = vpop.f32.mrb[0].mxu0
    %v3010 = vadd.f32 %v1640, %v3009
    %v3011 = vpop.f32.mrb[0].mxu0
    %v3012 = vadd.f32 %v1636, %v3011
    %v3013 = vpop.f32.mrb[0].mxu0
    %v3014 = vadd.f32 %v1640, %v3013
    %3015 = vmatprep.mubr.bf16.mxu0 %v1356
    %3016 = vmatmul.mubr.bf16.gmra.mrb[0].mxu0 %v1355
    %v3017 = vpop.f32.mrb[0].mxu0
    %v3018 = vadd.f32 %v1636, %v3017
    %v3019 = vpop.f32.mrb[0].mxu0
    %v3020 = vadd.f32 %v1640, %v3019
    %v3021 = vpop.f32.mrb[0].mxu0
    %v3022 = vadd.f32 %v1636, %v3021
    %v3023 = vpop.f32.mrb[0].mxu0
    %v3024 = vadd.f32 %v1640, %v3023
    %3025 = vmatprep.mubr.bf16.mxu0 %v1360
    %3026 = vmatmul.mubr.bf16.gmra.mrb[0].mxu0 %v1359
    %v3027 = vpop.f32.mrb[0].mxu0
    %v3028 = vadd.f32 %v1636, %v3027
    %v3029 = vpop.f32.mrb[0].mxu0
    %v3030 = vadd.f32 %v1640, %v3029
    %v3031 = vpop.f32.mrb[0].mxu0
    %v3032 = vadd.f32 %v1636, %v3031
    %v3033 = vpop.f32.mrb[0].mxu0
    %v3034 = vadd.f32 %v1640, %v3033
    %3035 = vmatprep.mubr.bf16.mxu0 %v1364
    %3036 = vmatmul.mubr.bf16.gmra.mrb[0].mxu0 %v1363
    %v3037 = vpop.f32.mrb[0].mxu0
    %v3038 = vadd.f32 %v1636, %v3037
    %v3039 = vpop.f32.mrb[0].mxu0
    %v3040 = vadd.f32 %v1640, %v3039
    %v3041 = vpop.f32.mrb[0].mxu0
    %v3042 = vadd.f32 %v1636, %v3041
    %v3043 = vpop.f32.mrb[0].mxu0
    %v3044 = vadd.f32 %v1640, %v3043
    %3045 = vmatprep.mubr.bf16.mxu0 %v1368
    %3046 = vmatmul.mubr.bf16.gmra.mrb[0].mxu0 %v1367
    %v3047 = vpop.f32.mrb[0].mxu0
    %v3048 = vadd.f32 %v1636, %v3047
    %v3049 = vpop.f32.mrb[0].mxu0
    %v3050 = vadd.f32 %v1640, %v3049
    %v3051 = vpop.f32.mrb[0].mxu0
    %v3052 = vadd.f32 %v1636, %v3051
    %v3053 = vpop.f32.mrb[0].mxu0
    %v3054 = vadd.f32 %v1640, %v3053
    %3055 = vmatprep.mubr.bf16.mxu0 %v1372
    %3056 = vmatmul.mubr.bf16.gmra.mrb[0].mxu0 %v1371
    %v3057 = vpop.f32.mrb[0].mxu0
    %v3058 = vadd.f32 %v1636, %v3057
    %v3059 = vpop.f32.mrb[0].mxu0
    %v3060 = vadd.f32 %v1640, %v3059
    %v3061 = vpop.f32.mrb[0].mxu0
    %v3062 = vadd.f32 %v1636, %v3061
    %v3063 = vpop.f32.mrb[0].mxu0
    %v3064 = vadd.f32 %v1640, %v3063
    %3065 = vdwg.mxu0
    %3066 = vmatprep.subr.bf16.mxu0 %v2570
    %3067 = vmatpush1.bf16.msra.mxu0 %v2569
    %3068 = vmatprep.subr.bf16.mxu0 %v2578
    %3069 = vmatpush1.bf16.msra.mxu0 %v2577
    %3070 = vmatprep.subr.bf16.mxu0 %v2586
    %3071 = vmatpush1.bf16.msra.mxu0 %v2585
    %3072 = vmatprep.subr.bf16.mxu0 %v2594
    %3073 = vmatpush1.bf16.msra.mxu0 %v2593
    %3074 = vmatprep.subr.bf16.mxu0 %v2602
    %3075 = vmatpush1.bf16.msra.mxu0 %v2601
    %3076 = vmatprep.subr.bf16.mxu0 %v2610
    %3077 = vmatpush1.bf16.msra.mxu0 %v2609
    %3078 = vmatprep.subr.bf16.mxu0 %v2618
    %3079 = vmatpush1.bf16.msra.mxu0 %v2617
    %3080 = vmatprep.subr.bf16.mxu0 %v2626
    %3081 = vmatpush1.bf16.msra.mxu0 %v2625
    %3082 = vmatprep.subr.bf16.mxu0 %v2634
    %3083 = vmatpush1.bf16.msra.mxu0 %v2633
    %3084 = vmatprep.subr.bf16.mxu0 %v2642
    %3085 = vmatpush1.bf16.msra.mxu0 %v2641
    %3086 = vmatprep.subr.bf16.mxu0 %v2650
    %3087 = vmatpush1.bf16.msra.mxu0 %v2649
    %3088 = vmatprep.subr.bf16.mxu0 %v2658
    %3089 = vmatpush1.bf16.msra.mxu0 %v2657
    %3090 = vmatprep.subr.bf16.mxu0 %v2666
    %3091 = vmatpush1.bf16.msra.mxu0 %v2665
    %3092 = vmatprep.subr.bf16.mxu0 %v2674
    %3093 = vmatpush1.bf16.msra.mxu0 %v2673
    %3094 = vmatprep.subr.bf16.mxu0 %v2682
    %3095 = vmatpush1.bf16.msra.mxu0 %v2681
    %3096 = vmatprep.subr.bf16.mxu0 %v2690
    %3097 = vmatpush1.bf16.msra.mxu0 %v2689
    %3098 = vmatprep.mubr.bf16.mxu0 %v1346
    %3099 = vmatmul.mubr.bf16.gmra.mrb[0].mxu0 %v1345
    %v3100 = vpop.f32.mrb[0].mxu0
    %v3101 = vadd.f32 %v2988, %v3100
    %v3102 = vpop.f32.mrb[0].mxu0
    %v3103 = vadd.f32 %v2990, %v3102
    %v3104 = vpop.f32.mrb[0].mxu0
    %v3105 = vadd.f32 %v2992, %v3104
    %v3106 = vpop.f32.mrb[0].mxu0
    %v3107 = vadd.f32 %v2994, %v3106
    %3108 = vmatprep.mubr.bf16.mxu0 %v1350
    %3109 = vmatmul.mubr.bf16.gmra.mrb[0].mxu0 %v1349
    %v3110 = vpop.f32.mrb[0].mxu0
    %v3111 = vadd.f32 %v2998, %v3110
    %v3112 = vpop.f32.mrb[0].mxu0
    %v3113 = vadd.f32 %v3000, %v3112
    %v3114 = vpop.f32.mrb[0].mxu0
    %v3115 = vadd.f32 %v3002, %v3114
    %v3116 = vpop.f32.mrb[0].mxu0
    %v3117 = vadd.f32 %v3004, %v3116
    %3118 = vmatprep.mubr.bf16.mxu0 %v1354
    %3119 = vmatmul.mubr.bf16.gmra.mrb[0].mxu0 %v1353
    %v3120 = vpop.f32.mrb[0].mxu0
    %v3121 = vadd.f32 %v3008, %v3120
    %v3122 = vpop.f32.mrb[0].mxu0
    %v3123 = vadd.f32 %v3010, %v3122
    %v3124 = vpop.f32.mrb[0].mxu0
    %v3125 = vadd.f32 %v3012, %v3124
    %v3126 = vpop.f32.mrb[0].mxu0
    %v3127 = vadd.f32 %v3014, %v3126
    %3128 = vmatprep.mubr.bf16.mxu0 %v1358
    %3129 = vmatmul.mubr.bf16.gmra.mrb[0].mxu0 %v1357
    %v3130 = vpop.f32.mrb[0].mxu0
    %v3131 = vadd.f32 %v3018, %v3130
    %v3132 = vpop.f32.mrb[0].mxu0
    %v3133 = vadd.f32 %v3020, %v3132
    %v3134 = vpop.f32.mrb[0].mxu0
    %v3135 = vadd.f32 %v3022, %v3134
    %v3136 = vpop.f32.mrb[0].mxu0
    %v3137 = vadd.f32 %v3024, %v3136
    %3138 = vmatprep.mubr.bf16.mxu0 %v1362
    %3139 = vmatmul.mubr.bf16.gmra.mrb[0].mxu0 %v1361
    %v3140 = vpop.f32.mrb[0].mxu0
    %v3141 = vadd.f32 %v3028, %v3140
    %v3142 = vpop.f32.mrb[0].mxu0
    %v3143 = vadd.f32 %v3030, %v3142
    %v3144 = vpop.f32.mrb[0].mxu0
    %v3145 = vadd.f32 %v3032, %v3144
    %v3146 = vpop.f32.mrb[0].mxu0
    %v3147 = vadd.f32 %v3034, %v3146
    %3148 = vmatprep.mubr.bf16.mxu0 %v1366
    %3149 = vmatmul.mubr.bf16.gmra.mrb[0].mxu0 %v1365
    %v3150 = vpop.f32.mrb[0].mxu0
    %v3151 = vadd.f32 %v3038, %v3150
    %v3152 = vpop.f32.mrb[0].mxu0
    %v3153 = vadd.f32 %v3040, %v3152
    %v3154 = vpop.f32.mrb[0].mxu0
    %v3155 = vadd.f32 %v3042, %v3154
    %v3156 = vpop.f32.mrb[0].mxu0
    %v3157 = vadd.f32 %v3044, %v3156
    %3158 = vmatprep.mubr.bf16.mxu0 %v1370
    %3159 = vmatmul.mubr.bf16.gmra.mrb[0].mxu0 %v1369
    %v3160 = vpop.f32.mrb[0].mxu0
    %v3161 = vadd.f32 %v3048, %v3160
    %v3162 = vpop.f32.mrb[0].mxu0
    %v3163 = vadd.f32 %v3050, %v3162
    %v3164 = vpop.f32.mrb[0].mxu0
    %v3165 = vadd.f32 %v3052, %v3164
    %v3166 = vpop.f32.mrb[0].mxu0
    %v3167 = vadd.f32 %v3054, %v3166
    %3168 = vmatprep.mubr.bf16.mxu0 %v1374
    %3169 = vmatmul.mubr.bf16.gmra.mrb[0].mxu0 %v1373
    %v3170 = vpop.f32.mrb[0].mxu0
    %v3171 = vadd.f32 %v3058, %v3170
    %v3172 = vpop.f32.mrb[0].mxu0
    %v3173 = vadd.f32 %v3060, %v3172
    %v3174 = vpop.f32.mrb[0].mxu0
    %v3175 = vadd.f32 %v3062, %v3174
    %v3176 = vpop.f32.mrb[0].mxu0
    %v3177 = vadd.f32 %v3064, %v3176
    %3178 = vdwg.mxu0
    %3179 = vmatprep.subr.bf16.mxu0 %v2444
    %3180 = vmatpush1.bf16.msra.mxu0 %v2443
    %3181 = vmatprep.subr.bf16.mxu0 %v2452
    %3182 = vmatpush1.bf16.msra.mxu0 %v2451
    %3183 = vmatprep.subr.bf16.mxu0 %v2460
    %3184 = vmatpush1.bf16.msra.mxu0 %v2459
    %3185 = vmatprep.subr.bf16.mxu0 %v2468
    %3186 = vmatpush1.bf16.msra.mxu0 %v2467
    %3187 = vmatprep.subr.bf16.mxu0 %v2476
    %3188 = vmatpush1.bf16.msra.mxu0 %v2475
    %3189 = vmatprep.subr.bf16.mxu0 %v2484
    %3190 = vmatpush1.bf16.msra.mxu0 %v2483
    %3191 = vmatprep.subr.bf16.mxu0 %v2492
    %3192 = vmatpush1.bf16.msra.mxu0 %v2491
    %3193 = vmatprep.subr.bf16.mxu0 %v2500
    %3194 = vmatpush1.bf16.msra.mxu0 %v2499
    %3195 = vmatprep.subr.bf16.mxu0 %v2508
    %3196 = vmatpush1.bf16.msra.mxu0 %v2507
    %3197 = vmatprep.subr.bf16.mxu0 %v2516
    %3198 = vmatpush1.bf16.msra.mxu0 %v2515
    %3199 = vmatprep.subr.bf16.mxu0 %v2524
    %3200 = vmatpush1.bf16.msra.mxu0 %v2523
    %3201 = vmatprep.subr.bf16.mxu0 %v2532
    %3202 = vmatpush1.bf16.msra.mxu0 %v2531
    %3203 = vmatprep.subr.bf16.mxu0 %v2540
    %3204 = vmatpush1.bf16.msra.mxu0 %v2539
    %3205 = vmatprep.subr.bf16.mxu0 %v2548
    %3206 = vmatpush1.bf16.msra.mxu0 %v2547
    %3207 = vmatprep.subr.bf16.mxu0 %v2556
    %3208 = vmatpush1.bf16.msra.mxu0 %v2555
    %3209 = vmatprep.subr.bf16.mxu0 %v2564
    %3210 = vmatpush1.bf16.msra.mxu0 %v2563
    %3211 = vmatprep.mubr.bf16.mxu0 %v1344
    %3212 = vmatmul.mubr.bf16.gmra.mrb[0].mxu0 %v1343
    %v3213 = vpop.f32.mrb[0].mxu0
    %v3214 = vadd.f32 %v1644, %v3213
    %v3215 = vpop.f32.mrb[0].mxu0
    %v3216 = vadd.f32 %v1648, %v3215
    %v3217 = vpop.f32.mrb[0].mxu0
    %v3218 = vadd.f32 %v1644, %v3217
    %v3219 = vpop.f32.mrb[0].mxu0
    %v3220 = vadd.f32 %v1648, %v3219
    %3221 = vmatprep.mubr.bf16.mxu0 %v1348
    %3222 = vmatmul.mubr.bf16.gmra.mrb[0].mxu0 %v1347
    %v3223 = vpop.f32.mrb[0].mxu0
    %v3224 = vadd.f32 %v1644, %v3223
    %v3225 = vpop.f32.mrb[0].mxu0
    %v3226 = vadd.f32 %v1648, %v3225
    %v3227 = vpop.f32.mrb[0].mxu0
    %v3228 = vadd.f32 %v1644, %v3227
    %v3229 = vpop.f32.mrb[0].mxu0
    %v3230 = vadd.f32 %v1648, %v3229
    %3231 = vmatprep.mubr.bf16.mxu0 %v1352
    %3232 = vmatmul.mubr.bf16.gmra.mrb[0].mxu0 %v1351
    %v3233 = vpop.f32.mrb[0].mxu0
    %v3234 = vadd.f32 %v1644, %v3233
    %v3235 = vpop.f32.mrb[0].mxu0
    %v3236 = vadd.f32 %v1648, %v3235
    %v3237 = vpop.f32.mrb[0].mxu0
    %v3238 = vadd.f32 %v1644, %v3237
    %v3239 = vpop.f32.mrb[0].mxu0
    %v3240 = vadd.f32 %v1648, %v3239
    %3241 = vmatprep.mubr.bf16.mxu0 %v1356
    %3242 = vmatmul.mubr.bf16.gmra.mrb[0].mxu0 %v1355
    %v3243 = vpop.f32.mrb[0].mxu0
    %v3244 = vadd.f32 %v1644, %v3243
    %v3245 = vpop.f32.mrb[0].mxu0
    %v3246 = vadd.f32 %v1648, %v3245
    %v3247 = vpop.f32.mrb[0].mxu0
    %v3248 = vadd.f32 %v1644, %v3247
    %v3249 = vpop.f32.mrb[0].mxu0
    %v3250 = vadd.f32 %v1648, %v3249
    %3251 = vmatprep.mubr.bf16.mxu0 %v1360
    %3252 = vmatmul.mubr.bf16.gmra.mrb[0].mxu0 %v1359
    %v3253 = vpop.f32.mrb[0].mxu0
    %v3254 = vadd.f32 %v1644, %v3253
    %v3255 = vpop.f32.mrb[0].mxu0
    %v3256 = vadd.f32 %v1648, %v3255
    %v3257 = vpop.f32.mrb[0].mxu0
    %v3258 = vadd.f32 %v1644, %v3257
    %v3259 = vpop.f32.mrb[0].mxu0
    %v3260 = vadd.f32 %v1648, %v3259
    %3261 = vmatprep.mubr.bf16.mxu0 %v1364
    %3262 = vmatmul.mubr.bf16.gmra.mrb[0].mxu0 %v1363
    %v3263 = vpop.f32.mrb[0].mxu0
    %v3264 = vadd.f32 %v1644, %v3263
    %v3265 = vpop.f32.mrb[0].mxu0
    %v3266 = vadd.f32 %v1648, %v3265
    %v3267 = vpop.f32.mrb[0].mxu0
    %v3268 = vadd.f32 %v1644, %v3267
    %v3269 = vpop.f32.mrb[0].mxu0
    %v3270 = vadd.f32 %v1648, %v3269
    %3271 = vmatprep.mubr.bf16.mxu0 %v1368
    %3272 = vmatmul.mubr.bf16.gmra.mrb[0].mxu0 %v1367
    %v3273 = vpop.f32.mrb[0].mxu0
    %v3274 = vadd.f32 %v1644, %v3273
    %v3275 = vpop.f32.mrb[0].mxu0
    %v3276 = vadd.f32 %v1648, %v3275
    %v3277 = vpop.f32.mrb[0].mxu0
    %v3278 = vadd.f32 %v1644, %v3277
    %v3279 = vpop.f32.mrb[0].mxu0
    %v3280 = vadd.f32 %v1648, %v3279
    %3281 = vmatprep.mubr.bf16.mxu0 %v1372
    %3282 = vmatmul.mubr.bf16.gmra.mrb[0].mxu0 %v1371
    %v3283 = vpop.f32.mrb[0].mxu0
    %v3284 = vadd.f32 %v1644, %v3283
    %v3285 = vpop.f32.mrb[0].mxu0
    %v3286 = vadd.f32 %v1648, %v3285
    %v3287 = vpop.f32.mrb[0].mxu0
    %v3288 = vadd.f32 %v1644, %v3287
    %v3289 = vpop.f32.mrb[0].mxu0
    %v3290 = vadd.f32 %v1648, %v3289
    %3291 = vdwg.mxu0
    %3292 = vmatprep.subr.bf16.mxu0 %v2572
    %3293 = vmatpush1.bf16.msra.mxu0 %v2571
    %3294 = vmatprep.subr.bf16.mxu0 %v2580
    %3295 = vmatpush1.bf16.msra.mxu0 %v2579
    %3296 = vmatprep.subr.bf16.mxu0 %v2588
    %3297 = vmatpush1.bf16.msra.mxu0 %v2587
    %3298 = vmatprep.subr.bf16.mxu0 %v2596
    %3299 = vmatpush1.bf16.msra.mxu0 %v2595
    %3300 = vmatprep.subr.bf16.mxu0 %v2604
    %3301 = vmatpush1.bf16.msra.mxu0 %v2603
    %3302 = vmatprep.subr.bf16.mxu0 %v2612
    %3303 = vmatpush1.bf16.msra.mxu0 %v2611
    %3304 = vmatprep.subr.bf16.mxu0 %v2620
    %3305 = vmatpush1.bf16.msra.mxu0 %v2619
    %3306 = vmatprep.subr.bf16.mxu0 %v2628
    %3307 = vmatpush1.bf16.msra.mxu0 %v2627
    %3308 = vmatprep.subr.bf16.mxu0 %v2636
    %3309 = vmatpush1.bf16.msra.mxu0 %v2635
    %3310 = vmatprep.subr.bf16.mxu0 %v2644
    %3311 = vmatpush1.bf16.msra.mxu0 %v2643
    %3312 = vmatprep.subr.bf16.mxu0 %v2652
    %3313 = vmatpush1.bf16.msra.mxu0 %v2651
    %3314 = vmatprep.subr.bf16.mxu0 %v2660
    %3315 = vmatpush1.bf16.msra.mxu0 %v2659
    %3316 = vmatprep.subr.bf16.mxu0 %v2668
    %3317 = vmatpush1.bf16.msra.mxu0 %v2667
    %3318 = vmatprep.subr.bf16.mxu0 %v2676
    %3319 = vmatpush1.bf16.msra.mxu0 %v2675
    %3320 = vmatprep.subr.bf16.mxu0 %v2684
    %3321 = vmatpush1.bf16.msra.mxu0 %v2683
    %3322 = vmatprep.subr.bf16.mxu0 %v2692
    %3323 = vmatpush1.bf16.msra.mxu0 %v2691
    %3324 = vmatprep.mubr.bf16.mxu0 %v1346
    %3325 = vmatmul.mubr.bf16.gmra.mrb[0].mxu0 %v1345
    %v3326 = vpop.f32.mrb[0].mxu0
    %v3327 = vadd.f32 %v3214, %v3326
    %v3328 = vpop.f32.mrb[0].mxu0
    %v3329 = vadd.f32 %v3216, %v3328
    %v3330 = vpop.f32.mrb[0].mxu0
    %v3331 = vadd.f32 %v3218, %v3330
    %v3332 = vpop.f32.mrb[0].mxu0
    %v3333 = vadd.f32 %v3220, %v3332
    %3334 = vmatprep.mubr.bf16.mxu0 %v1350
    %3335 = vmatmul.mubr.bf16.gmra.mrb[0].mxu0 %v1349
    %v3336 = vpop.f32.mrb[0].mxu0
    %v3337 = vadd.f32 %v3224, %v3336
    %v3338 = vpop.f32.mrb[0].mxu0
    %v3339 = vadd.f32 %v3226, %v3338
    %v3340 = vpop.f32.mrb[0].mxu0
    %v3341 = vadd.f32 %v3228, %v3340
    %v3342 = vpop.f32.mrb[0].mxu0
    %v3343 = vadd.f32 %v3230, %v3342
    %3344 = vmatprep.mubr.bf16.mxu0 %v1354
    %3345 = vmatmul.mubr.bf16.gmra.mrb[0].mxu0 %v1353
    %v3346 = vpop.f32.mrb[0].mxu0
    %v3347 = vadd.f32 %v3234, %v3346
    %v3348 = vpop.f32.mrb[0].mxu0
    %v3349 = vadd.f32 %v3236, %v3348
    %v3350 = vpop.f32.mrb[0].mxu0
    %v3351 = vadd.f32 %v3238, %v3350
    %v3352 = vpop.f32.mrb[0].mxu0
    %v3353 = vadd.f32 %v3240, %v3352
    %3354 = vmatprep.mubr.bf16.mxu0 %v1358
    %3355 = vmatmul.mubr.bf16.gmra.mrb[0].mxu0 %v1357
    %v3356 = vpop.f32.mrb[0].mxu0
    %v3357 = vadd.f32 %v3244, %v3356
    %v3358 = vpop.f32.mrb[0].mxu0
    %v3359 = vadd.f32 %v3246, %v3358
    %v3360 = vpop.f32.mrb[0].mxu0
    %v3361 = vadd.f32 %v3248, %v3360
    %v3362 = vpop.f32.mrb[0].mxu0
    %v3363 = vadd.f32 %v3250, %v3362
    %3364 = vmatprep.mubr.bf16.mxu0 %v1362
    %3365 = vmatmul.mubr.bf16.gmra.mrb[0].mxu0 %v1361
    %v3366 = vpop.f32.mrb[0].mxu0
    %v3367 = vadd.f32 %v3254, %v3366
    %v3368 = vpop.f32.mrb[0].mxu0
    %v3369 = vadd.f32 %v3256, %v3368
    %v3370 = vpop.f32.mrb[0].mxu0
    %v3371 = vadd.f32 %v3258, %v3370
    %v3372 = vpop.f32.mrb[0].mxu0
    %v3373 = vadd.f32 %v3260, %v3372
    %3374 = vmatprep.mubr.bf16.mxu0 %v1366
    %3375 = vmatmul.mubr.bf16.gmra.mrb[0].mxu0 %v1365
    %v3376 = vpop.f32.mrb[0].mxu0
    %v3377 = vadd.f32 %v3264, %v3376
    %v3378 = vpop.f32.mrb[0].mxu0
    %v3379 = vadd.f32 %v3266, %v3378
    %v3380 = vpop.f32.mrb[0].mxu0
    %v3381 = vadd.f32 %v3268, %v3380
    %v3382 = vpop.f32.mrb[0].mxu0
    %v3383 = vadd.f32 %v3270, %v3382
    %3384 = vmatprep.mubr.bf16.mxu0 %v1370
    %3385 = vmatmul.mubr.bf16.gmra.mrb[0].mxu0 %v1369
    %v3386 = vpop.f32.mrb[0].mxu0
    %v3387 = vadd.f32 %v3274, %v3386
    %v3388 = vpop.f32.mrb[0].mxu0
    %v3389 = vadd.f32 %v3276, %v3388
    %v3390 = vpop.f32.mrb[0].mxu0
    %v3391 = vadd.f32 %v3278, %v3390
    %v3392 = vpop.f32.mrb[0].mxu0
    %v3393 = vadd.f32 %v3280, %v3392
    %3394 = vmatprep.mubr.bf16.mxu0 %v1374
    %3395 = vmatmul.mubr.bf16.gmra.mrb[0].mxu0 %v1373
    %v3396 = vpop.f32.mrb[0].mxu0
    %v3397 = vadd.f32 %v3284, %v3396
    %v3398 = vpop.f32.mrb[0].mxu0
    %v3399 = vadd.f32 %v3286, %v3398
    %v3400 = vpop.f32.mrb[0].mxu0
    %v3401 = vadd.f32 %v3288, %v3400
    %v3402 = vpop.f32.mrb[0].mxu0
    %v3403 = vadd.f32 %v3290, %v3402
    %3404 = vdwg.mxu0
    %3405 = vmatprep.subr.bf16.mxu0 %v2446
    %3406 = vmatpush1.bf16.msra.mxu0 %v2445
    %3407 = vmatprep.subr.bf16.mxu0 %v2454
    %3408 = vmatpush1.bf16.msra.mxu0 %v2453
    %3409 = vmatprep.subr.bf16.mxu0 %v2462
    %3410 = vmatpush1.bf16.msra.mxu0 %v2461
    %3411 = vmatprep.subr.bf16.mxu0 %v2470
    %3412 = vmatpush1.bf16.msra.mxu0 %v2469
    %3413 = vmatprep.subr.bf16.mxu0 %v2478
    %3414 = vmatpush1.bf16.msra.mxu0 %v2477
    %3415 = vmatprep.subr.bf16.mxu0 %v2486
    %3416 = vmatpush1.bf16.msra.mxu0 %v2485
    %3417 = vmatprep.subr.bf16.mxu0 %v2494
    %3418 = vmatpush1.bf16.msra.mxu0 %v2493
    %3419 = vmatprep.subr.bf16.mxu0 %v2502
    %3420 = vmatpush1.bf16.msra.mxu0 %v2501
    %3421 = vmatprep.subr.bf16.mxu0 %v2510
    %3422 = vmatpush1.bf16.msra.mxu0 %v2509
    %3423 = vmatprep.subr.bf16.mxu0 %v2518
    %3424 = vmatpush1.bf16.msra.mxu0 %v2517
    %3425 = vmatprep.subr.bf16.mxu0 %v2526
    %3426 = vmatpush1.bf16.msra.mxu0 %v2525
    %3427 = vmatprep.subr.bf16.mxu0 %v2534
    %3428 = vmatpush1.bf16.msra.mxu0 %v2533
    %3429 = vmatprep.subr.bf16.mxu0 %v2542
    %3430 = vmatpush1.bf16.msra.mxu0 %v2541
    %3431 = vmatprep.subr.bf16.mxu0 %v2550
    %3432 = vmatpush1.bf16.msra.mxu0 %v2549
    %3433 = vmatprep.subr.bf16.mxu0 %v2558
    %3434 = vmatpush1.bf16.msra.mxu0 %v2557
    %3435 = vmatprep.subr.bf16.mxu0 %v2566
    %3436 = vmatpush1.bf16.msra.mxu0 %v2565
    %3437 = vmatprep.mubr.bf16.mxu0 %v1344
    %3438 = vmatmul.mubr.bf16.gmra.mrb[0].mxu0 %v1343
    %v3439 = vpop.f32.mrb[0].mxu0
    %v3440 = vadd.f32 %v1652, %v3439
    %v3441 = vpop.f32.mrb[0].mxu0
    %v3442 = vadd.f32 %v1656, %v3441
    %v3443 = vpop.f32.mrb[0].mxu0
    %v3444 = vadd.f32 %v1652, %v3443
    %v3445 = vpop.f32.mrb[0].mxu0
    %v3446 = vadd.f32 %v1656, %v3445
    %3447 = vmatprep.mubr.bf16.mxu0 %v1348
    %3448 = vmatmul.mubr.bf16.gmra.mrb[0].mxu0 %v1347
    %v3449 = vpop.f32.mrb[0].mxu0
    %v3450 = vadd.f32 %v1652, %v3449
    %v3451 = vpop.f32.mrb[0].mxu0
    %v3452 = vadd.f32 %v1656, %v3451
    %v3453 = vpop.f32.mrb[0].mxu0
    %v3454 = vadd.f32 %v1652, %v3453
    %v3455 = vpop.f32.mrb[0].mxu0
    %v3456 = vadd.f32 %v1656, %v3455
    %3457 = vmatprep.mubr.bf16.mxu0 %v1352
    %3458 = vmatmul.mubr.bf16.gmra.mrb[0].mxu0 %v1351
    %v3459 = vpop.f32.mrb[0].mxu0
    %v3460 = vadd.f32 %v1652, %v3459
    %v3461 = vpop.f32.mrb[0].mxu0
    %v3462 = vadd.f32 %v1656, %v3461
    %v3463 = vpop.f32.mrb[0].mxu0
    %v3464 = vadd.f32 %v1652, %v3463
    %v3465 = vpop.f32.mrb[0].mxu0
    %v3466 = vadd.f32 %v1656, %v3465
    %3467 = vmatprep.mubr.bf16.mxu0 %v1356
    %3468 = vmatmul.mubr.bf16.gmra.mrb[0].mxu0 %v1355
    %v3469 = vpop.f32.mrb[0].mxu0
    %v3470 = vadd.f32 %v1652, %v3469
    %v3471 = vpop.f32.mrb[0].mxu0
    %v3472 = vadd.f32 %v1656, %v3471
    %v3473 = vpop.f32.mrb[0].mxu0
    %v3474 = vadd.f32 %v1652, %v3473
    %v3475 = vpop.f32.mrb[0].mxu0
    %v3476 = vadd.f32 %v1656, %v3475
    %3477 = vmatprep.mubr.bf16.mxu0 %v1360
    %3478 = vmatmul.mubr.bf16.gmra.mrb[0].mxu0 %v1359
    %v3479 = vpop.f32.mrb[0].mxu0
    %v3480 = vadd.f32 %v1652, %v3479
    %v3481 = vpop.f32.mrb[0].mxu0
    %v3482 = vadd.f32 %v1656, %v3481
    %v3483 = vpop.f32.mrb[0].mxu0
    %v3484 = vadd.f32 %v1652, %v3483
    %v3485 = vpop.f32.mrb[0].mxu0
    %v3486 = vadd.f32 %v1656, %v3485
    %3487 = vmatprep.mubr.bf16.mxu0 %v1364
    %3488 = vmatmul.mubr.bf16.gmra.mrb[0].mxu0 %v1363
    %v3489 = vpop.f32.mrb[0].mxu0
    %v3490 = vadd.f32 %v1652, %v3489
    %v3491 = vpop.f32.mrb[0].mxu0
    %v3492 = vadd.f32 %v1656, %v3491
    %v3493 = vpop.f32.mrb[0].mxu0
    %v3494 = vadd.f32 %v1652, %v3493
    %v3495 = vpop.f32.mrb[0].mxu0
    %v3496 = vadd.f32 %v1656, %v3495
    %3497 = vmatprep.mubr.bf16.mxu0 %v1368
    %3498 = vmatmul.mubr.bf16.gmra.mrb[0].mxu0 %v1367
    %v3499 = vpop.f32.mrb[0].mxu0
    %v3500 = vadd.f32 %v1652, %v3499
    %v3501 = vpop.f32.mrb[0].mxu0
    %v3502 = vadd.f32 %v1656, %v3501
    %v3503 = vpop.f32.mrb[0].mxu0
    %v3504 = vadd.f32 %v1652, %v3503
    %v3505 = vpop.f32.mrb[0].mxu0
    %v3506 = vadd.f32 %v1656, %v3505
    %3507 = vmatprep.mubr.bf16.mxu0 %v1372
    %3508 = vmatmul.mubr.bf16.gmra.mrb[0].mxu0 %v1371
    %v3509 = vpop.f32.mrb[0].mxu0
    %v3510 = vadd.f32 %v1652, %v3509
    %v3511 = vpop.f32.mrb[0].mxu0
    %v3512 = vadd.f32 %v1656, %v3511
    %v3513 = vpop.f32.mrb[0].mxu0
    %v3514 = vadd.f32 %v1652, %v3513
    %v3515 = vpop.f32.mrb[0].mxu0
    %v3516 = vadd.f32 %v1656, %v3515
    %3517 = vdwg.mxu0
    %3518 = vmatprep.subr.bf16.mxu0 %v2574
    %3519 = vmatpush1.bf16.msra.mxu0 %v2573
    %3520 = vmatprep.subr.bf16.mxu0 %v2582
    %3521 = vmatpush1.bf16.msra.mxu0 %v2581
    %3522 = vmatprep.subr.bf16.mxu0 %v2590
    %3523 = vmatpush1.bf16.msra.mxu0 %v2589
    %3524 = vmatprep.subr.bf16.mxu0 %v2598
    %3525 = vmatpush1.bf16.msra.mxu0 %v2597
    %3526 = vmatprep.subr.bf16.mxu0 %v2606
    %3527 = vmatpush1.bf16.msra.mxu0 %v2605
    %3528 = vmatprep.subr.bf16.mxu0 %v2614
    %3529 = vmatpush1.bf16.msra.mxu0 %v2613
    %3530 = vmatprep.subr.bf16.mxu0 %v2622
    %3531 = vmatpush1.bf16.msra.mxu0 %v2621
    %3532 = vmatprep.subr.bf16.mxu0 %v2630
    %3533 = vmatpush1.bf16.msra.mxu0 %v2629
    %3534 = vmatprep.subr.bf16.mxu0 %v2638
    %3535 = vmatpush1.bf16.msra.mxu0 %v2637
    %3536 = vmatprep.subr.bf16.mxu0 %v2646
    %3537 = vmatpush1.bf16.msra.mxu0 %v2645
    %3538 = vmatprep.subr.bf16.mxu0 %v2654
    %3539 = vmatpush1.bf16.msra.mxu0 %v2653
    %3540 = vmatprep.subr.bf16.mxu0 %v2662
    %3541 = vmatpush1.bf16.msra.mxu0 %v2661
    %3542 = vmatprep.subr.bf16.mxu0 %v2670
    %3543 = vmatpush1.bf16.msra.mxu0 %v2669
    %3544 = vmatprep.subr.bf16.mxu0 %v2678
    %3545 = vmatpush1.bf16.msra.mxu0 %v2677
    %3546 = vmatprep.subr.bf16.mxu0 %v2686
    %3547 = vmatpush1.bf16.msra.mxu0 %v2685
    %3548 = vmatprep.subr.bf16.mxu0 %v2694
    %3549 = vmatpush1.bf16.msra.mxu0 %v2693
    %3550 = vmatprep.mubr.bf16.mxu0 %v1346
    %3551 = vmatmul.mubr.bf16.gmra.mrb[0].mxu0 %v1345
    %v3552 = vpop.f32.mrb[0].mxu0
    %v3553 = vadd.f32 %v3440, %v3552
    %v3554 = vpop.f32.mrb[0].mxu0
    %v3555 = vadd.f32 %v3442, %v3554
    %v3556 = vpop.f32.mrb[0].mxu0
    %v3557 = vadd.f32 %v3444, %v3556
    %v3558 = vpop.f32.mrb[0].mxu0
    %v3559 = vadd.f32 %v3446, %v3558
    %3560 = vmatprep.mubr.bf16.mxu0 %v1350
    %3561 = vmatmul.mubr.bf16.gmra.mrb[0].mxu0 %v1349
    %v3562 = vpop.f32.mrb[0].mxu0
    %v3563 = vadd.f32 %v3450, %v3562
    %v3564 = vpop.f32.mrb[0].mxu0
    %v3565 = vadd.f32 %v3452, %v3564
    %v3566 = vpop.f32.mrb[0].mxu0
    %v3567 = vadd.f32 %v3454, %v3566
    %v3568 = vpop.f32.mrb[0].mxu0
    %v3569 = vadd.f32 %v3456, %v3568
    %3570 = vmatprep.mubr.bf16.mxu0 %v1354
    %3571 = vmatmul.mubr.bf16.gmra.mrb[0].mxu0 %v1353
    %v3572 = vpop.f32.mrb[0].mxu0
    %v3573 = vadd.f32 %v3460, %v3572
    %v3574 = vpop.f32.mrb[0].mxu0
    %v3575 = vadd.f32 %v3462, %v3574
    %v3576 = vpop.f32.mrb[0].mxu0
    %v3577 = vadd.f32 %v3464, %v3576
    %v3578 = vpop.f32.mrb[0].mxu0
    %v3579 = vadd.f32 %v3466, %v3578
    %3580 = vmatprep.mubr.bf16.mxu0 %v1358
    %3581 = vmatmul.mubr.bf16.gmra.mrb[0].mxu0 %v1357
    %v3582 = vpop.f32.mrb[0].mxu0
    %v3583 = vadd.f32 %v3470, %v3582
    %v3584 = vpop.f32.mrb[0].mxu0
    %v3585 = vadd.f32 %v3472, %v3584
    %v3586 = vpop.f32.mrb[0].mxu0
    %v3587 = vadd.f32 %v3474, %v3586
    %v3588 = vpop.f32.mrb[0].mxu0
    %v3589 = vadd.f32 %v3476, %v3588
    %3590 = vmatprep.mubr.bf16.mxu0 %v1362
    %3591 = vmatmul.mubr.bf16.gmra.mrb[0].mxu0 %v1361
    %v3592 = vpop.f32.mrb[0].mxu0
    %v3593 = vadd.f32 %v3480, %v3592
    %v3594 = vpop.f32.mrb[0].mxu0
    %v3595 = vadd.f32 %v3482, %v3594
    %v3596 = vpop.f32.mrb[0].mxu0
    %v3597 = vadd.f32 %v3484, %v3596
    %v3598 = vpop.f32.mrb[0].mxu0
    %v3599 = vadd.f32 %v3486, %v3598
    %3600 = vmatprep.mubr.bf16.mxu0 %v1366
    %3601 = vmatmul.mubr.bf16.gmra.mrb[0].mxu0 %v1365
    %v3602 = vpop.f32.mrb[0].mxu0
    %v3603 = vadd.f32 %v3490, %v3602
    %v3604 = vpop.f32.mrb[0].mxu0
    %v3605 = vadd.f32 %v3492, %v3604
    %v3606 = vpop.f32.mrb[0].mxu0
    %v3607 = vadd.f32 %v3494, %v3606
    %v3608 = vpop.f32.mrb[0].mxu0
    %v3609 = vadd.f32 %v3496, %v3608
    %3610 = vmatprep.mubr.bf16.mxu0 %v1370
    %3611 = vmatmul.mubr.bf16.gmra.mrb[0].mxu0 %v1369
    %v3612 = vpop.f32.mrb[0].mxu0
    %v3613 = vadd.f32 %v3500, %v3612
    %v3614 = vpop.f32.mrb[0].mxu0
    %v3615 = vadd.f32 %v3502, %v3614
    %v3616 = vpop.f32.mrb[0].mxu0
    %v3617 = vadd.f32 %v3504, %v3616
    %v3618 = vpop.f32.mrb[0].mxu0
    %v3619 = vadd.f32 %v3506, %v3618
    %3620 = vmatprep.mubr.bf16.mxu0 %v1374
    %3621 = vmatmul.mubr.bf16.gmra.mrb[0].mxu0 %v1373
    %v3622 = vpop.f32.mrb[0].mxu0
    %v3623 = vadd.f32 %v3510, %v3622
    %v3624 = vpop.f32.mrb[0].mxu0
    %v3625 = vadd.f32 %v3512, %v3624
    %v3626 = vpop.f32.mrb[0].mxu0
    %v3627 = vadd.f32 %v3514, %v3626
    %v3628 = vpop.f32.mrb[0].mxu0
    %v3629 = vadd.f32 %v3516, %v3628
    %3630 = vdwg.mxu0
    %3631 = vmatprep.subr.bf16.mxu0 %v2448
    %3632 = vmatpush1.bf16.msra.mxu0 %v2447
    %3633 = vmatprep.subr.bf16.mxu0 %v2456
    %3634 = vmatpush1.bf16.msra.mxu0 %v2455
    %3635 = vmatprep.subr.bf16.mxu0 %v2464
    %3636 = vmatpush1.bf16.msra.mxu0 %v2463
    %3637 = vmatprep.subr.bf16.mxu0 %v2472
    %3638 = vmatpush1.bf16.msra.mxu0 %v2471
    %3639 = vmatprep.subr.bf16.mxu0 %v2480
    %3640 = vmatpush1.bf16.msra.mxu0 %v2479
    %3641 = vmatprep.subr.bf16.mxu0 %v2488
    %3642 = vmatpush1.bf16.msra.mxu0 %v2487
    %3643 = vmatprep.subr.bf16.mxu0 %v2496
    %3644 = vmatpush1.bf16.msra.mxu0 %v2495
    %3645 = vmatprep.subr.bf16.mxu0 %v2504
    %3646 = vmatpush1.bf16.msra.mxu0 %v2503
    %3647 = vmatprep.subr.bf16.mxu0 %v2512
    %3648 = vmatpush1.bf16.msra.mxu0 %v2511
    %3649 = vmatprep.subr.bf16.mxu0 %v2520
    %3650 = vmatpush1.bf16.msra.mxu0 %v2519
    %3651 = vmatprep.subr.bf16.mxu0 %v2528
    %3652 = vmatpush1.bf16.msra.mxu0 %v2527
    %3653 = vmatprep.subr.bf16.mxu0 %v2536
    %3654 = vmatpush1.bf16.msra.mxu0 %v2535
    %3655 = vmatprep.subr.bf16.mxu0 %v2544
    %3656 = vmatpush1.bf16.msra.mxu0 %v2543
    %3657 = vmatprep.subr.bf16.mxu0 %v2552
    %3658 = vmatpush1.bf16.msra.mxu0 %v2551
    %3659 = vmatprep.subr.bf16.mxu0 %v2560
    %3660 = vmatpush1.bf16.msra.mxu0 %v2559
    %3661 = vmatprep.subr.bf16.mxu0 %v2568
    %3662 = vmatpush1.bf16.msra.mxu0 %v2567
    %3663 = vmatprep.mubr.bf16.mxu0 %v1344
    %3664 = vmatmul.mubr.bf16.gmra.mrb[0].mxu0 %v1343
    %v3665 = vpop.f32.mrb[0].mxu0
    %v3666 = vadd.f32 %v1660, %v3665
    %v3667 = vpop.f32.mrb[0].mxu0
    %v3668 = vadd.f32 %v1664, %v3667
    %v3669 = vpop.f32.mrb[0].mxu0
    %v3670 = vadd.f32 %v1660, %v3669
    %v3671 = vpop.f32.mrb[0].mxu0
    %v3672 = vadd.f32 %v1664, %v3671
    %3673 = vmatprep.mubr.bf16.mxu0 %v1348
    %3674 = vmatmul.mubr.bf16.gmra.mrb[0].mxu0 %v1347
    %v3675 = vpop.f32.mrb[0].mxu0
    %v3676 = vadd.f32 %v1660, %v3675
    %v3677 = vpop.f32.mrb[0].mxu0
    %v3678 = vadd.f32 %v1664, %v3677
    %v3679 = vpop.f32.mrb[0].mxu0
    %v3680 = vadd.f32 %v1660, %v3679
    %v3681 = vpop.f32.mrb[0].mxu0
    %v3682 = vadd.f32 %v1664, %v3681
    %3683 = vmatprep.mubr.bf16.mxu0 %v1352
    %3684 = vmatmul.mubr.bf16.gmra.mrb[0].mxu0 %v1351
    %v3685 = vpop.f32.mrb[0].mxu0
    %v3686 = vadd.f32 %v1660, %v3685
    %v3687 = vpop.f32.mrb[0].mxu0
    %v3688 = vadd.f32 %v1664, %v3687
    %v3689 = vpop.f32.mrb[0].mxu0
    %v3690 = vadd.f32 %v1660, %v3689
    %v3691 = vpop.f32.mrb[0].mxu0
    %v3692 = vadd.f32 %v1664, %v3691
    %3693 = vmatprep.mubr.bf16.mxu0 %v1356
    %3694 = vmatmul.mubr.bf16.gmra.mrb[0].mxu0 %v1355
    %v3695 = vpop.f32.mrb[0].mxu0
    %v3696 = vadd.f32 %v1660, %v3695
    %v3697 = vpop.f32.mrb[0].mxu0
    %v3698 = vadd.f32 %v1664, %v3697
    %v3699 = vpop.f32.mrb[0].mxu0
    %v3700 = vadd.f32 %v1660, %v3699
    %v3701 = vpop.f32.mrb[0].mxu0
    %v3702 = vadd.f32 %v1664, %v3701
    %3703 = vmatprep.mubr.bf16.mxu0 %v1360
    %3704 = vmatmul.mubr.bf16.gmra.mrb[0].mxu0 %v1359
    %v3705 = vpop.f32.mrb[0].mxu0
    %v3706 = vadd.f32 %v1660, %v3705
    %v3707 = vpop.f32.mrb[0].mxu0
    %v3708 = vadd.f32 %v1664, %v3707
    %v3709 = vpop.f32.mrb[0].mxu0
    %v3710 = vadd.f32 %v1660, %v3709
    %v3711 = vpop.f32.mrb[0].mxu0
    %v3712 = vadd.f32 %v1664, %v3711
    %3713 = vmatprep.mubr.bf16.mxu0 %v1364
    %3714 = vmatmul.mubr.bf16.gmra.mrb[0].mxu0 %v1363
    %v3715 = vpop.f32.mrb[0].mxu0
    %v3716 = vadd.f32 %v1660, %v3715
    %v3717 = vpop.f32.mrb[0].mxu0
    %v3718 = vadd.f32 %v1664, %v3717
    %v3719 = vpop.f32.mrb[0].mxu0
    %v3720 = vadd.f32 %v1660, %v3719
    %v3721 = vpop.f32.mrb[0].mxu0
    %v3722 = vadd.f32 %v1664, %v3721
    %3723 = vmatprep.mubr.bf16.mxu0 %v1368
    %3724 = vmatmul.mubr.bf16.gmra.mrb[0].mxu0 %v1367
    %v3725 = vpop.f32.mrb[0].mxu0
    %v3726 = vadd.f32 %v1660, %v3725
    %v3727 = vpop.f32.mrb[0].mxu0
    %v3728 = vadd.f32 %v1664, %v3727
    %v3729 = vpop.f32.mrb[0].mxu0
    %v3730 = vadd.f32 %v1660, %v3729
    %v3731 = vpop.f32.mrb[0].mxu0
    %v3732 = vadd.f32 %v1664, %v3731
    %3733 = vmatprep.mubr.bf16.mxu0 %v1372
    %3734 = vmatmul.mubr.bf16.gmra.mrb[0].mxu0 %v1371
    %v3735 = vpop.f32.mrb[0].mxu0
    %v3736 = vadd.f32 %v1660, %v3735
    %v3737 = vpop.f32.mrb[0].mxu0
    %v3738 = vadd.f32 %v1664, %v3737
    %v3739 = vpop.f32.mrb[0].mxu0
    %v3740 = vadd.f32 %v1660, %v3739
    %v3741 = vpop.f32.mrb[0].mxu0
    %v3742 = vadd.f32 %v1664, %v3741
    %3743 = vdwg.mxu0
    %3744 = vmatprep.subr.bf16.mxu0 %v2576
    %3745 = vmatpush1.bf16.msra.mxu0 %v2575
    %3746 = vmatprep.subr.bf16.mxu0 %v2584
    %3747 = vmatpush1.bf16.msra.mxu0 %v2583
    %3748 = vmatprep.subr.bf16.mxu0 %v2592
    %3749 = vmatpush1.bf16.msra.mxu0 %v2591
    %3750 = vmatprep.subr.bf16.mxu0 %v2600
    %3751 = vmatpush1.bf16.msra.mxu0 %v2599
    %3752 = vmatprep.subr.bf16.mxu0 %v2608
    %3753 = vmatpush1.bf16.msra.mxu0 %v2607
    %3754 = vmatprep.subr.bf16.mxu0 %v2616
    %3755 = vmatpush1.bf16.msra.mxu0 %v2615
    %3756 = vmatprep.subr.bf16.mxu0 %v2624
    %3757 = vmatpush1.bf16.msra.mxu0 %v2623
    %3758 = vmatprep.subr.bf16.mxu0 %v2632
    %3759 = vmatpush1.bf16.msra.mxu0 %v2631
    %3760 = vmatprep.subr.bf16.mxu0 %v2640
    %3761 = vmatpush1.bf16.msra.mxu0 %v2639
    %3762 = vmatprep.subr.bf16.mxu0 %v2648
    %3763 = vmatpush1.bf16.msra.mxu0 %v2647
    %3764 = vmatprep.subr.bf16.mxu0 %v2656
    %3765 = vmatpush1.bf16.msra.mxu0 %v2655
    %3766 = vmatprep.subr.bf16.mxu0 %v2664
    %3767 = vmatpush1.bf16.msra.mxu0 %v2663
    %3768 = vmatprep.subr.bf16.mxu0 %v2672
    %3769 = vmatpush1.bf16.msra.mxu0 %v2671
    %3770 = vmatprep.subr.bf16.mxu0 %v2680
    %3771 = vmatpush1.bf16.msra.mxu0 %v2679
    %3772 = vmatprep.subr.bf16.mxu0 %v2688
    %3773 = vmatpush1.bf16.msra.mxu0 %v2687
    %3774 = vmatprep.subr.bf16.mxu0 %v2696
    %3775 = vmatpush1.bf16.msra.mxu0 %v2695
    %3776 = vmatprep.mubr.bf16.mxu0 %v1346
    %3777 = vmatmul.mubr.bf16.gmra.mrb[0].mxu0 %v1345
    %v3778 = vpop.f32.mrb[0].mxu0
    %v3779 = vadd.f32 %v3666, %v3778
    %v3780 = vpop.f32.mrb[0].mxu0
    %v3781 = vadd.f32 %v3668, %v3780
    %v3782 = vpop.f32.mrb[0].mxu0
    %v3783 = vadd.f32 %v3670, %v3782
    %v3784 = vpop.f32.mrb[0].mxu0
    %v3785 = vadd.f32 %v3672, %v3784
    %3786 = vmatprep.mubr.bf16.mxu0 %v1350
    %3787 = vmatmul.mubr.bf16.gmra.mrb[0].mxu0 %v1349
    %v3788 = vpop.f32.mrb[0].mxu0
    %v3789 = vadd.f32 %v3676, %v3788
    %v3790 = vpop.f32.mrb[0].mxu0
    %v3791 = vadd.f32 %v3678, %v3790
    %v3792 = vpop.f32.mrb[0].mxu0
    %v3793 = vadd.f32 %v3680, %v3792
    %v3794 = vpop.f32.mrb[0].mxu0
    %v3795 = vadd.f32 %v3682, %v3794
    %3796 = vmatprep.mubr.bf16.mxu0 %v1354
    %3797 = vmatmul.mubr.bf16.gmra.mrb[0].mxu0 %v1353
    %v3798 = vpop.f32.mrb[0].mxu0
    %v3799 = vadd.f32 %v3686, %v3798
    %v3800 = vpop.f32.mrb[0].mxu0
    %v3801 = vadd.f32 %v3688, %v3800
    %v3802 = vpop.f32.mrb[0].mxu0
    %v3803 = vadd.f32 %v3690, %v3802
    %v3804 = vpop.f32.mrb[0].mxu0
    %v3805 = vadd.f32 %v3692, %v3804
    %3806 = vmatprep.mubr.bf16.mxu0 %v1358
    %3807 = vmatmul.mubr.bf16.gmra.mrb[0].mxu0 %v1357
    %v3808 = vpop.f32.mrb[0].mxu0
    %v3809 = vadd.f32 %v3696, %v3808
    %v3810 = vpop.f32.mrb[0].mxu0
    %v3811 = vadd.f32 %v3698, %v3810
    %v3812 = vpop.f32.mrb[0].mxu0
    %v3813 = vadd.f32 %v3700, %v3812
    %v3814 = vpop.f32.mrb[0].mxu0
    %v3815 = vadd.f32 %v3702, %v3814
    %3816 = vmatprep.mubr.bf16.mxu0 %v1362
    %3817 = vmatmul.mubr.bf16.gmra.mrb[0].mxu0 %v1361
    %v3818 = vpop.f32.mrb[0].mxu0
    %v3819 = vadd.f32 %v3706, %v3818
    %v3820 = vpop.f32.mrb[0].mxu0
    %v3821 = vadd.f32 %v3708, %v3820
    %v3822 = vpop.f32.mrb[0].mxu0
    %v3823 = vadd.f32 %v3710, %v3822
    %v3824 = vpop.f32.mrb[0].mxu0
    %v3825 = vadd.f32 %v3712, %v3824
    %3826 = vmatprep.mubr.bf16.mxu0 %v1366
    %3827 = vmatmul.mubr.bf16.gmra.mrb[0].mxu0 %v1365
    %v3828 = vpop.f32.mrb[0].mxu0
    %v3829 = vadd.f32 %v3716, %v3828
    %v3830 = vpop.f32.mrb[0].mxu0
    %v3831 = vadd.f32 %v3718, %v3830
    %v3832 = vpop.f32.mrb[0].mxu0
    %v3833 = vadd.f32 %v3720, %v3832
    %v3834 = vpop.f32.mrb[0].mxu0
    %v3835 = vadd.f32 %v3722, %v3834
    %3836 = vmatprep.mubr.bf16.mxu0 %v1370
    %3837 = vmatmul.mubr.bf16.gmra.mrb[0].mxu0 %v1369
    %v3838 = vpop.f32.mrb[0].mxu0
    %v3839 = vadd.f32 %v3726, %v3838
    %v3840 = vpop.f32.mrb[0].mxu0
    %v3841 = vadd.f32 %v3728, %v3840
    %v3842 = vpop.f32.mrb[0].mxu0
    %v3843 = vadd.f32 %v3730, %v3842
    %v3844 = vpop.f32.mrb[0].mxu0
    %v3845 = vadd.f32 %v3732, %v3844
    %3846 = vmatprep.mubr.bf16.mxu0 %v1374
    %3847 = vmatmul.mubr.bf16.gmra.mrb[0].mxu0 %v1373
    %v3848 = vpop.f32.mrb[0].mxu0
    %v3849 = vadd.f32 %v3736, %v3848
    %v3850 = vpop.f32.mrb[0].mxu0
    %v3851 = vadd.f32 %v3738, %v3850
    %v3852 = vpop.f32.mrb[0].mxu0
    %v3853 = vadd.f32 %v3740, %v3852
    %v3854 = vpop.f32.mrb[0].mxu0
    %v3855 = vadd.f32 %v3742, %v3854
    %3856 = vdwg.mxu0
    %v3857 = vmax.f32 %v3101, 0.0
    %v3858 = vmax.f32 %v3103, 0.0
    %v3859 = vmax.f32 %v3327, 0.0
    %v3860 = vmax.f32 %v3329, 0.0
    %v3861 = vmax.f32 %v3553, 0.0
    %v3862 = vmax.f32 %v3555, 0.0
    %v3863 = vmax.f32 %v3779, 0.0
    %v3864 = vmax.f32 %v3781, 0.0
    %v3865 = vmax.f32 %v3105, 0.0
    %v3866 = vmax.f32 %v3107, 0.0
    %v3867 = vmax.f32 %v3331, 0.0
    %v3868 = vmax.f32 %v3333, 0.0
    %v3869 = vmax.f32 %v3557, 0.0
    %v3870 = vmax.f32 %v3559, 0.0
    %v3871 = vmax.f32 %v3783, 0.0
    %v3872 = vmax.f32 %v3785, 0.0
    %v3873 = vmax.f32 %v3111, 0.0
    %v3874 = vmax.f32 %v3113, 0.0
    %v3875 = vmax.f32 %v3337, 0.0
    %v3876 = vmax.f32 %v3339, 0.0
    %v3877 = vmax.f32 %v3563, 0.0
    %v3878 = vmax.f32 %v3565, 0.0
    %v3879 = vmax.f32 %v3789, 0.0
    %v3880 = vmax.f32 %v3791, 0.0
    %v3881 = vmax.f32 %v3115, 0.0
    %v3882 = vmax.f32 %v3117, 0.0
    %v3883 = vmax.f32 %v3341, 0.0
    %v3884 = vmax.f32 %v3343, 0.0
    %v3885 = vmax.f32 %v3567, 0.0
    %v3886 = vmax.f32 %v3569, 0.0
    %v3887 = vmax.f32 %v3793, 0.0
    %v3888 = vmax.f32 %v3795, 0.0
    %v3889 = vmax.f32 %v3121, 0.0
    %v3890 = vmax.f32 %v3123, 0.0
    %v3891 = vmax.f32 %v3347, 0.0
    %v3892 = vmax.f32 %v3349, 0.0
    %v3893 = vmax.f32 %v3573, 0.0
    %v3894 = vmax.f32 %v3575, 0.0
    %v3895 = vmax.f32 %v3799, 0.0
    %v3896 = vmax.f32 %v3801, 0.0
    %v3897 = vmax.f32 %v3125, 0.0
    %v3898 = vmax.f32 %v3127, 0.0
    %v3899 = vmax.f32 %v3351, 0.0
    %v3900 = vmax.f32 %v3353, 0.0
    %v3901 = vmax.f32 %v3577, 0.0
    %v3902 = vmax.f32 %v3579, 0.0
    %v3903 = vmax.f32 %v3803, 0.0
    %v3904 = vmax.f32 %v3805, 0.0
    %v3905 = vmax.f32 %v3131, 0.0
    %v3906 = vmax.f32 %v3133, 0.0
    %v3907 = vmax.f32 %v3357, 0.0
    %v3908 = vmax.f32 %v3359, 0.0
    %v3909 = vmax.f32 %v3583, 0.0
    %v3910 = vmax.f32 %v3585, 0.0
    %v3911 = vmax.f32 %v3809, 0.0
    %v3912 = vmax.f32 %v3811, 0.0
    %v3913 = vmax.f32 %v3135, 0.0
    %v3914 = vmax.f32 %v3137, 0.0
    %v3915 = vmax.f32 %v3361, 0.0
    %v3916 = vmax.f32 %v3363, 0.0
    %v3917 = vmax.f32 %v3587, 0.0
    %v3918 = vmax.f32 %v3589, 0.0
    %v3919 = vmax.f32 %v3813, 0.0
    %v3920 = vmax.f32 %v3815, 0.0
    %v3921 = vmax.f32 %v3141, 0.0
    %v3922 = vmax.f32 %v3143, 0.0
    %v3923 = vmax.f32 %v3367, 0.0
    %v3924 = vmax.f32 %v3369, 0.0
    %v3925 = vmax.f32 %v3593, 0.0
    %v3926 = vmax.f32 %v3595, 0.0
    %v3927 = vmax.f32 %v3819, 0.0
    %v3928 = vmax.f32 %v3821, 0.0
    %v3929 = vmax.f32 %v3145, 0.0
    %v3930 = vmax.f32 %v3147, 0.0
    %v3931 = vmax.f32 %v3371, 0.0
    %v3932 = vmax.f32 %v3373, 0.0
    %v3933 = vmax.f32 %v3597, 0.0
    %v3934 = vmax.f32 %v3599, 0.0
    %v3935 = vmax.f32 %v3823, 0.0
    %v3936 = vmax.f32 %v3825, 0.0
    %v3937 = vmax.f32 %v3151, 0.0
    %v3938 = vmax.f32 %v3153, 0.0
    %v3939 = vmax.f32 %v3377, 0.0
    %v3940 = vmax.f32 %v3379, 0.0
    %v3941 = vmax.f32 %v3603, 0.0
    %v3942 = vmax.f32 %v3605, 0.0
    %v3943 = vmax.f32 %v3829, 0.0
    %v3944 = vmax.f32 %v3831, 0.0
    %v3945 = vmax.f32 %v3155, 0.0
    %v3946 = vmax.f32 %v3157, 0.0
    %v3947 = vmax.f32 %v3381, 0.0
    %v3948 = vmax.f32 %v3383, 0.0
    %v3949 = vmax.f32 %v3607, 0.0
    %v3950 = vmax.f32 %v3609, 0.0
    %v3951 = vmax.f32 %v3833, 0.0
    %v3952 = vmax.f32 %v3835, 0.0
    %v3953 = vmax.f32 %v3161, 0.0
    %v3954 = vmax.f32 %v3163, 0.0
    %v3955 = vmax.f32 %v3387, 0.0
    %v3956 = vmax.f32 %v3389, 0.0
    %v3957 = vmax.f32 %v3613, 0.0
    %v3958 = vmax.f32 %v3615, 0.0
    %v3959 = vmax.f32 %v3839, 0.0
    %v3960 = vmax.f32 %v3841, 0.0
    %v3961 = vmax.f32 %v3165, 0.0
    %v3962 = vmax.f32 %v3167, 0.0
    %v3963 = vmax.f32 %v3391, 0.0
    %v3964 = vmax.f32 %v3393, 0.0
    %v3965 = vmax.f32 %v3617, 0.0
    %v3966 = vmax.f32 %v3619, 0.0
    %v3967 = vmax.f32 %v3843, 0.0
    %v3968 = vmax.f32 %v3845, 0.0
    %v3969 = vmax.f32 %v3171, 0.0
    %v3970 = vmax.f32 %v3173, 0.0
    %v3971 = vmax.f32 %v3397, 0.0
    %v3972 = vmax.f32 %v3399, 0.0
    %v3973 = vmax.f32 %v3623, 0.0
    %v3974 = vmax.f32 %v3625, 0.0
    %v3975 = vmax.f32 %v3849, 0.0
    %v3976 = vmax.f32 %v3851, 0.0
    %v3977 = vmax.f32 %v3175, 0.0
    %v3978 = vmax.f32 %v3177, 0.0
    %v3979 = vmax.f32 %v3401, 0.0
    %v3980 = vmax.f32 %v3403, 0.0
    %v3981 = vmax.f32 %v3627, 0.0
    %v3982 = vmax.f32 %v3629, 0.0
    %v3983 = vmax.f32 %v3853, 0.0
    %v3984 = vmax.f32 %v3855, 0.0
    %v3985 = vpack.c.bf16 %v3865, %v3857
    %v3986 = vpack.c.bf16 %v3866, %v3858
    %v3987 = vpack.c.bf16 %v3867, %v3859
    %v3988 = vpack.c.bf16 %v3868, %v3860
    %v3989 = vpack.c.bf16 %v3869, %v3861
    %v3990 = vpack.c.bf16 %v3870, %v3862
    %v3991 = vpack.c.bf16 %v3871, %v3863
    %v3992 = vpack.c.bf16 %v3872, %v3864
    %v3993 = vpack.c.bf16 %v3881, %v3873
    %v3994 = vpack.c.bf16 %v3882, %v3874
    %v3995 = vpack.c.bf16 %v3883, %v3875
    %v3996 = vpack.c.bf16 %v3884, %v3876
    %v3997 = vpack.c.bf16 %v3885, %v3877
    %v3998 = vpack.c.bf16 %v3886, %v3878
    %v3999 = vpack.c.bf16 %v3887, %v3879
    %v4000 = vpack.c.bf16 %v3888, %v3880
    %v4001 = vpack.c.bf16 %v3897, %v3889
    %v4002 = vpack.c.bf16 %v3898, %v3890
    %v4003 = vpack.c.bf16 %v3899, %v3891
    %v4004 = vpack.c.bf16 %v3900, %v3892
    %v4005 = vpack.c.bf16 %v3901, %v3893
    %v4006 = vpack.c.bf16 %v3902, %v3894
    %v4007 = vpack.c.bf16 %v3903, %v3895
    %v4008 = vpack.c.bf16 %v3904, %v3896
    %v4009 = vpack.c.bf16 %v3913, %v3905
    %v4010 = vpack.c.bf16 %v3914, %v3906
    %v4011 = vpack.c.bf16 %v3915, %v3907
    %v4012 = vpack.c.bf16 %v3916, %v3908
    %v4013 = vpack.c.bf16 %v3917, %v3909
    %v4014 = vpack.c.bf16 %v3918, %v3910
    %v4015 = vpack.c.bf16 %v3919, %v3911
    %v4016 = vpack.c.bf16 %v3920, %v3912
    %v4017 = vpack.c.bf16 %v3929, %v3921
    %v4018 = vpack.c.bf16 %v3930, %v3922
    %v4019 = vpack.c.bf16 %v3931, %v3923
    %v4020 = vpack.c.bf16 %v3932, %v3924
    %v4021 = vpack.c.bf16 %v3933, %v3925
    %v4022 = vpack.c.bf16 %v3934, %v3926
    %v4023 = vpack.c.bf16 %v3935, %v3927
    %v4024 = vpack.c.bf16 %v3936, %v3928
    %v4025 = vpack.c.bf16 %v3945, %v3937
    %v4026 = vpack.c.bf16 %v3946, %v3938
    %v4027 = vpack.c.bf16 %v3947, %v3939
    %v4028 = vpack.c.bf16 %v3948, %v3940
    %v4029 = vpack.c.bf16 %v3949, %v3941
    %v4030 = vpack.c.bf16 %v3950, %v3942
    %v4031 = vpack.c.bf16 %v3951, %v3943
    %v4032 = vpack.c.bf16 %v3952, %v3944
    %v4033 = vpack.c.bf16 %v3961, %v3953
    %v4034 = vpack.c.bf16 %v3962, %v3954
    %v4035 = vpack.c.bf16 %v3963, %v3955
    %v4036 = vpack.c.bf16 %v3964, %v3956
    %v4037 = vpack.c.bf16 %v3965, %v3957
    %v4038 = vpack.c.bf16 %v3966, %v3958
    %v4039 = vpack.c.bf16 %v3967, %v3959
    %v4040 = vpack.c.bf16 %v3968, %v3960
    %v4041 = vpack.c.bf16 %v3977, %v3969
    %v4042 = vpack.c.bf16 %v3978, %v3970
    %v4043 = vpack.c.bf16 %v3979, %v3971
    %v4044 = vpack.c.bf16 %v3980, %v3972
    %v4045 = vpack.c.bf16 %v3981, %v3973
    %v4046 = vpack.c.bf16 %v3982, %v3974
    %v4047 = vpack.c.bf16 %v3983, %v3975
    %v4048 = vpack.c.bf16 %v3984, %v3976
    %v4049 = vld [vmem:[#allocation11] sm:$0xf]
    %v4050 = vld [vmem:[#allocation11 + $0x4] sm:$0xf]
    %v4051 = vld [vmem:[#allocation11 + $0x8] sm:$0xf]
    %v4052 = vld [vmem:[#allocation11 + $0xc] sm:$0xf]
    %v4053 = vld [vmem:[#allocation11 + $0x10] sm:$0xf]
    %v4054 = vld [vmem:[#allocation11 + $0x14] sm:$0xf]
    %v4055 = vld [vmem:[#allocation11 + $0x18] sm:$0xf]
    %v4056 = vld [vmem:[#allocation11 + $0x1c] sm:$0xf]
    %v4057 = vld [vmem:[#allocation11 + $0x20] sm:$0xf]
    %v4058 = vld [vmem:[#allocation11 + $0x24] sm:$0xf]
    %v4059 = vld [vmem:[#allocation11 + $0x28] sm:$0xf]
    %v4060 = vld [vmem:[#allocation11 + $0x2c] sm:$0xf]
    %v4061 = vld [vmem:[#allocation11 + $0x30] sm:$0xf]
    %v4062 = vld [vmem:[#allocation11 + $0x34] sm:$0xf]
    %v4063 = vld [vmem:[#allocation11 + $0x38] sm:$0xf]
    %v4064 = vld [vmem:[#allocation11 + $0x3c] sm:$0xf]
    %v4065 = vld [vmem:[#allocation11 + $0x40] sm:$0xf]
    %v4066 = vld [vmem:[#allocation11 + $0x44] sm:$0xf]
    %v4067 = vld [vmem:[#allocation11 + $0x48] sm:$0xf]
    %v4068 = vld [vmem:[#allocation11 + $0x4c] sm:$0xf]
    %v4069 = vld [vmem:[#allocation11 + $0x50] sm:$0xf]
    %v4070 = vld [vmem:[#allocation11 + $0x54] sm:$0xf]
    %v4071 = vld [vmem:[#allocation11 + $0x58] sm:$0xf]
    %v4072 = vld [vmem:[#allocation11 + $0x5c] sm:$0xf]
    %v4073 = vld [vmem:[#allocation11 + $0x60] sm:$0xf]
    %v4074 = vld [vmem:[#allocation11 + $0x64] sm:$0xf]
    %v4075 = vld [vmem:[#allocation11 + $0x68] sm:$0xf]
    %v4076 = vld [vmem:[#allocation11 + $0x6c] sm:$0xf]
    %v4077 = vld [vmem:[#allocation11 + $0x70] sm:$0xf]
    %v4078 = vld [vmem:[#allocation11 + $0x74] sm:$0xf]
    %v4079 = vld [vmem:[#allocation11 + $0x78] sm:$0xf]
    %v4080 = vld [vmem:[#allocation11 + $0x7c] sm:$0xf]
    %v4081 = vld [vmem:[#allocation11 + $0x80] sm:$0xf]
    %v4082 = vld [vmem:[#allocation11 + $0x84] sm:$0xf]
    %v4083 = vld [vmem:[#allocation11 + $0x88] sm:$0xf]
    %v4084 = vld [vmem:[#allocation11 + $0x8c] sm:$0xf]
    %v4085 = vld [vmem:[#allocation11 + $0x90] sm:$0xf]
    %v4086 = vld [vmem:[#allocation11 + $0x94] sm:$0xf]
    %v4087 = vld [vmem:[#allocation11 + $0x98] sm:$0xf]
    %v4088 = vld [vmem:[#allocation11 + $0x9c] sm:$0xf]
    %v4089 = vld [vmem:[#allocation11 + $0xa0] sm:$0xf]
    %v4090 = vld [vmem:[#allocation11 + $0xa4] sm:$0xf]
    %v4091 = vld [vmem:[#allocation11 + $0xa8] sm:$0xf]
    %v4092 = vld [vmem:[#allocation11 + $0xac] sm:$0xf]
    %v4093 = vld [vmem:[#allocation11 + $0xb0] sm:$0xf]
    %v4094 = vld [vmem:[#allocation11 + $0xb4] sm:$0xf]
    %v4095 = vld [vmem:[#allocation11 + $0xb8] sm:$0xf]
    %v4096 = vld [vmem:[#allocation11 + $0xbc] sm:$0xf]
    %v4097 = vld [vmem:[#allocation11 + $0xc0] sm:$0xf]
    %v4098 = vld [vmem:[#allocation11 + $0xc4] sm:$0xf]
    %v4099 = vld [vmem:[#allocation11 + $0xc8] sm:$0xf]
    %v4100 = vld [vmem:[#allocation11 + $0xcc] sm:$0xf]
    %v4101 = vld [vmem:[#allocation11 + $0xd0] sm:$0xf]
    %v4102 = vld [vmem:[#allocation11 + $0xd4] sm:$0xf]
    %v4103 = vld [vmem:[#allocation11 + $0xd8] sm:$0xf]
    %v4104 = vld [vmem:[#allocation11 + $0xdc] sm:$0xf]
    %v4105 = vld [vmem:[#allocation11 + $0xe0] sm:$0xf]
    %v4106 = vld [vmem:[#allocation11 + $0xe4] sm:$0xf]
    %v4107 = vld [vmem:[#allocation11 + $0xe8] sm:$0xf]
    %v4108 = vld [vmem:[#allocation11 + $0xec] sm:$0xf]
    %v4109 = vld [vmem:[#allocation11 + $0xf0] sm:$0xf]
    %v4110 = vld [vmem:[#allocation11 + $0xf4] sm:$0xf]
    %v4111 = vld [vmem:[#allocation11 + $0xf8] sm:$0xf]
    %v4112 = vld [vmem:[#allocation11 + $0xfc] sm:$0xf]
    %v4113 = vld [vmem:[#allocation11 + $0x100] sm:$0xf]
    %v4114 = vld [vmem:[#allocation11 + $0x104] sm:$0xf]
    %v4115 = vld [vmem:[#allocation11 + $0x108] sm:$0xf]
    %v4116 = vld [vmem:[#allocation11 + $0x10c] sm:$0xf]
    %v4117 = vld [vmem:[#allocation11 + $0x110] sm:$0xf]
    %v4118 = vld [vmem:[#allocation11 + $0x114] sm:$0xf]
    %v4119 = vld [vmem:[#allocation11 + $0x118] sm:$0xf]
    %v4120 = vld [vmem:[#allocation11 + $0x11c] sm:$0xf]
    %v4121 = vld [vmem:[#allocation11 + $0x120] sm:$0xf]
    %v4122 = vld [vmem:[#allocation11 + $0x124] sm:$0xf]
    %v4123 = vld [vmem:[#allocation11 + $0x128] sm:$0xf]
    %v4124 = vld [vmem:[#allocation11 + $0x12c] sm:$0xf]
    %v4125 = vld [vmem:[#allocation11 + $0x130] sm:$0xf]
    %v4126 = vld [vmem:[#allocation11 + $0x134] sm:$0xf]
    %v4127 = vld [vmem:[#allocation11 + $0x138] sm:$0xf]
    %v4128 = vld [vmem:[#allocation11 + $0x13c] sm:$0xf]
    %v4129 = vld [vmem:[#allocation11 + $0x140] sm:$0xf]
    %v4130 = vld [vmem:[#allocation11 + $0x144] sm:$0xf]
    %v4131 = vld [vmem:[#allocation11 + $0x148] sm:$0xf]
    %v4132 = vld [vmem:[#allocation11 + $0x14c] sm:$0xf]
    %v4133 = vld [vmem:[#allocation11 + $0x150] sm:$0xf]
    %v4134 = vld [vmem:[#allocation11 + $0x154] sm:$0xf]
    %v4135 = vld [vmem:[#allocation11 + $0x158] sm:$0xf]
    %v4136 = vld [vmem:[#allocation11 + $0x15c] sm:$0xf]
    %v4137 = vld [vmem:[#allocation11 + $0x160] sm:$0xf]
    %v4138 = vld [vmem:[#allocation11 + $0x164] sm:$0xf]
    %v4139 = vld [vmem:[#allocation11 + $0x168] sm:$0xf]
    %v4140 = vld [vmem:[#allocation11 + $0x16c] sm:$0xf]
    %v4141 = vld [vmem:[#allocation11 + $0x170] sm:$0xf]
    %v4142 = vld [vmem:[#allocation11 + $0x174] sm:$0xf]
    %v4143 = vld [vmem:[#allocation11 + $0x178] sm:$0xf]
    %v4144 = vld [vmem:[#allocation11 + $0x17c] sm:$0xf]
    %v4145 = vld [vmem:[#allocation11 + $0x180] sm:$0xf]
    %v4146 = vld [vmem:[#allocation11 + $0x184] sm:$0xf]
    %v4147 = vld [vmem:[#allocation11 + $0x188] sm:$0xf]
    %v4148 = vld [vmem:[#allocation11 + $0x18c] sm:$0xf]
    %v4149 = vld [vmem:[#allocation11 + $0x190] sm:$0xf]
    %v4150 = vld [vmem:[#allocation11 + $0x194] sm:$0xf]
    %v4151 = vld [vmem:[#allocation11 + $0x198] sm:$0xf]
    %v4152 = vld [vmem:[#allocation11 + $0x19c] sm:$0xf]
    %v4153 = vld [vmem:[#allocation11 + $0x1a0] sm:$0xf]
    %v4154 = vld [vmem:[#allocation11 + $0x1a4] sm:$0xf]
    %v4155 = vld [vmem:[#allocation11 + $0x1a8] sm:$0xf]
    %v4156 = vld [vmem:[#allocation11 + $0x1ac] sm:$0xf]
    %v4157 = vld [vmem:[#allocation11 + $0x1b0] sm:$0xf]
    %v4158 = vld [vmem:[#allocation11 + $0x1b4] sm:$0xf]
    %v4159 = vld [vmem:[#allocation11 + $0x1b8] sm:$0xf]
    %v4160 = vld [vmem:[#allocation11 + $0x1bc] sm:$0xf]
    %v4161 = vld [vmem:[#allocation11 + $0x1c0] sm:$0xf]
    %v4162 = vld [vmem:[#allocation11 + $0x1c4] sm:$0xf]
    %v4163 = vld [vmem:[#allocation11 + $0x1c8] sm:$0xf]
    %v4164 = vld [vmem:[#allocation11 + $0x1cc] sm:$0xf]
    %v4165 = vld [vmem:[#allocation11 + $0x1d0] sm:$0xf]
    %v4166 = vld [vmem:[#allocation11 + $0x1d4] sm:$0xf]
    %v4167 = vld [vmem:[#allocation11 + $0x1d8] sm:$0xf]
    %v4168 = vld [vmem:[#allocation11 + $0x1dc] sm:$0xf]
    %v4169 = vld [vmem:[#allocation11 + $0x1e0] sm:$0xf]
    %v4170 = vld [vmem:[#allocation11 + $0x1e4] sm:$0xf]
    %v4171 = vld [vmem:[#allocation11 + $0x1e8] sm:$0xf]
    %v4172 = vld [vmem:[#allocation11 + $0x1ec] sm:$0xf]
    %v4173 = vld [vmem:[#allocation11 + $0x1f0] sm:$0xf]
    %v4174 = vld [vmem:[#allocation11 + $0x1f4] sm:$0xf]
    %v4175 = vld [vmem:[#allocation11 + $0x1f8] sm:$0xf]
    %v4176 = vld [vmem:[#allocation11 + $0x1fc] sm:$0xf]
    %v4177 = vld [vmem:[%s10] sm:$0x1]
    %v4179 = vlaneseq
    %v4180 = vshrl.u32 %v4179, 7
    %v4181 = vsub.s32 0, %v4180
    %v4182 = vrot.slane %v4177, %v4181
    %v4312 = vunpack.c.l.b16 %v4049
    %v4313 = vunpack.c.l.b16 %v4050
    %v4314 = vunpack.c.l.b16 %v4051
    %v4315 = vunpack.c.l.b16 %v4052
    %v4316 = vunpack.c.l.b16 %v4053
    %v4317 = vunpack.c.l.b16 %v4054
    %v4318 = vunpack.c.l.b16 %v4055
    %v4319 = vunpack.c.l.b16 %v4056
    %v4320 = vunpack.c.l.b16 %v4057
    %v4321 = vunpack.c.l.b16 %v4058
    %v4322 = vunpack.c.l.b16 %v4059
    %v4323 = vunpack.c.l.b16 %v4060
    %v4324 = vunpack.c.l.b16 %v4061
    %v4325 = vunpack.c.l.b16 %v4062
    %v4326 = vunpack.c.l.b16 %v4063
    %v4327 = vunpack.c.l.b16 %v4064
    %v4328 = vunpack.c.l.b16 %v4065
    %v4329 = vunpack.c.l.b16 %v4066
    %v4330 = vunpack.c.l.b16 %v4067
    %v4331 = vunpack.c.l.b16 %v4068
    %v4332 = vunpack.c.l.b16 %v4069
    %v4333 = vunpack.c.l.b16 %v4070
    %v4334 = vunpack.c.l.b16 %v4071
    %v4335 = vunpack.c.l.b16 %v4072
    %v4336 = vunpack.c.l.b16 %v4073
    %v4337 = vunpack.c.l.b16 %v4074
    %v4338 = vunpack.c.l.b16 %v4075
    %v4339 = vunpack.c.l.b16 %v4076
    %v4340 = vunpack.c.l.b16 %v4077
    %v4341 = vunpack.c.l.b16 %v4078
    %v4342 = vunpack.c.l.b16 %v4079
    %v4343 = vunpack.c.l.b16 %v4080
    %v4344 = vunpack.c.l.b16 %v4081
    %v4345 = vunpack.c.l.b16 %v4082
    %v4346 = vunpack.c.l.b16 %v4083
    %v4347 = vunpack.c.l.b16 %v4084
    %v4348 = vunpack.c.l.b16 %v4085
    %v4349 = vunpack.c.l.b16 %v4086
    %v4350 = vunpack.c.l.b16 %v4087
    %v4351 = vunpack.c.l.b16 %v4088
    %v4352 = vunpack.c.l.b16 %v4089
    %v4353 = vunpack.c.l.b16 %v4090
    %v4354 = vunpack.c.l.b16 %v4091
    %v4355 = vunpack.c.l.b16 %v4092
    %v4356 = vunpack.c.l.b16 %v4093
    %v4357 = vunpack.c.l.b16 %v4094
    %v4358 = vunpack.c.l.b16 %v4095
    %v4359 = vunpack.c.l.b16 %v4096
    %v4360 = vunpack.c.l.b16 %v4097
    %v4361 = vunpack.c.l.b16 %v4098
    %v4362 = vunpack.c.l.b16 %v4099
    %v4363 = vunpack.c.l.b16 %v4100
    %v4364 = vunpack.c.l.b16 %v4101
    %v4365 = vunpack.c.l.b16 %v4102
    %v4366 = vunpack.c.l.b16 %v4103
    %v4367 = vunpack.c.l.b16 %v4104
    %v4368 = vunpack.c.l.b16 %v4105
    %v4369 = vunpack.c.l.b16 %v4106
    %v4370 = vunpack.c.l.b16 %v4107
    %v4371 = vunpack.c.l.b16 %v4108
    %v4372 = vunpack.c.l.b16 %v4109
    %v4373 = vunpack.c.l.b16 %v4110
    %v4374 = vunpack.c.l.b16 %v4111
    %v4375 = vunpack.c.l.b16 %v4112
    %v4376 = vunpack.c.l.b16 %v4113
    %v4377 = vunpack.c.l.b16 %v4114
    %v4378 = vunpack.c.l.b16 %v4115
    %v4379 = vunpack.c.l.b16 %v4116
    %v4380 = vunpack.c.l.b16 %v4117
    %v4381 = vunpack.c.l.b16 %v4118
    %v4382 = vunpack.c.l.b16 %v4119
    %v4383 = vunpack.c.l.b16 %v4120
    %v4384 = vunpack.c.l.b16 %v4121
    %v4385 = vunpack.c.l.b16 %v4122
    %v4386 = vunpack.c.l.b16 %v4123
    %v4387 = vunpack.c.l.b16 %v4124
    %v4388 = vunpack.c.l.b16 %v4125
    %v4389 = vunpack.c.l.b16 %v4126
    %v4390 = vunpack.c.l.b16 %v4127
    %v4391 = vunpack.c.l.b16 %v4128
    %v4392 = vunpack.c.l.b16 %v4129
    %v4393 = vunpack.c.l.b16 %v4130
    %v4394 = vunpack.c.l.b16 %v4131
    %v4395 = vunpack.c.l.b16 %v4132
    %v4396 = vunpack.c.l.b16 %v4133
    %v4397 = vunpack.c.l.b16 %v4134
    %v4398 = vunpack.c.l.b16 %v4135
    %v4399 = vunpack.c.l.b16 %v4136
    %v4400 = vunpack.c.l.b16 %v4137
    %v4401 = vunpack.c.l.b16 %v4138
    %v4402 = vunpack.c.l.b16 %v4139
    %v4403 = vunpack.c.l.b16 %v4140
    %v4404 = vunpack.c.l.b16 %v4141
    %v4405 = vunpack.c.l.b16 %v4142
    %v4406 = vunpack.c.l.b16 %v4143
    %v4407 = vunpack.c.l.b16 %v4144
    %v4408 = vunpack.c.l.b16 %v4145
    %v4409 = vunpack.c.l.b16 %v4146
    %v4410 = vunpack.c.l.b16 %v4147
    %v4411 = vunpack.c.l.b16 %v4148
    %v4412 = vunpack.c.l.b16 %v4149
    %v4413 = vunpack.c.l.b16 %v4150
    %v4414 = vunpack.c.l.b16 %v4151
    %v4415 = vunpack.c.l.b16 %v4152
    %v4416 = vunpack.c.l.b16 %v4153
    %v4417 = vunpack.c.l.b16 %v4154
    %v4418 = vunpack.c.l.b16 %v4155
    %v4419 = vunpack.c.l.b16 %v4156
    %v4420 = vunpack.c.l.b16 %v4157
    %v4421 = vunpack.c.l.b16 %v4158
    %v4422 = vunpack.c.l.b16 %v4159
    %v4423 = vunpack.c.l.b16 %v4160
    %v4424 = vunpack.c.l.b16 %v4161
    %v4425 = vunpack.c.l.b16 %v4162
    %v4426 = vunpack.c.l.b16 %v4163
    %v4427 = vunpack.c.l.b16 %v4164
    %v4428 = vunpack.c.l.b16 %v4165
    %v4429 = vunpack.c.l.b16 %v4166
    %v4430 = vunpack.c.l.b16 %v4167
    %v4431 = vunpack.c.l.b16 %v4168
    %v4432 = vunpack.c.l.b16 %v4169
    %v4433 = vunpack.c.l.b16 %v4170
    %v4434 = vunpack.c.l.b16 %v4171
    %v4435 = vunpack.c.l.b16 %v4172
    %v4436 = vunpack.c.l.b16 %v4173
    %v4437 = vunpack.c.l.b16 %v4174
    %v4438 = vunpack.c.l.b16 %v4175
    %v4439 = vunpack.c.l.b16 %v4176
    %v4440 = vpack.c.b16 %v4313, %v4312
    %v4441 = vpack.c.b16 %v4315, %v4314
    %v4442 = vpack.c.b16 %v4317, %v4316
    %v4443 = vpack.c.b16 %v4319, %v4318
    %v4444 = vpack.c.b16 %v4321, %v4320
    %v4445 = vpack.c.b16 %v4323, %v4322
    %v4446 = vpack.c.b16 %v4325, %v4324
    %v4447 = vpack.c.b16 %v4327, %v4326
    %v4448 = vpack.c.b16 %v4329, %v4328
    %v4449 = vpack.c.b16 %v4331, %v4330
    %v4450 = vpack.c.b16 %v4333, %v4332
    %v4451 = vpack.c.b16 %v4335, %v4334
    %v4452 = vpack.c.b16 %v4337, %v4336
    %v4453 = vpack.c.b16 %v4339, %v4338
    %v4454 = vpack.c.b16 %v4341, %v4340
    %v4455 = vpack.c.b16 %v4343, %v4342
    %v4456 = vpack.c.b16 %v4345, %v4344
    %v4457 = vpack.c.b16 %v4347, %v4346
    %v4458 = vpack.c.b16 %v4349, %v4348
    %v4459 = vpack.c.b16 %v4351, %v4350
    %v4460 = vpack.c.b16 %v4353, %v4352
    %v4461 = vpack.c.b16 %v4355, %v4354
    %v4462 = vpack.c.b16 %v4357, %v4356
    %v4463 = vpack.c.b16 %v4359, %v4358
    %v4464 = vpack.c.b16 %v4361, %v4360
    %v4465 = vpack.c.b16 %v4363, %v4362
    %v4466 = vpack.c.b16 %v4365, %v4364
    %v4467 = vpack.c.b16 %v4367, %v4366
    %v4468 = vpack.c.b16 %v4369, %v4368
    %v4469 = vpack.c.b16 %v4371, %v4370
    %v4470 = vpack.c.b16 %v4373, %v4372
    %v4471 = vpack.c.b16 %v4375, %v4374
    %v4472 = vpack.c.b16 %v4377, %v4376
    %v4473 = vpack.c.b16 %v4379, %v4378
    %v4474 = vpack.c.b16 %v4381, %v4380
    %v4475 = vpack.c.b16 %v4383, %v4382
    %v4476 = vpack.c.b16 %v4385, %v4384
    %v4477 = vpack.c.b16 %v4387, %v4386
    %v4478 = vpack.c.b16 %v4389, %v4388
    %v4479 = vpack.c.b16 %v4391, %v4390
    %v4480 = vpack.c.b16 %v4393, %v4392
    %v4481 = vpack.c.b16 %v4395, %v4394
    %v4482 = vpack.c.b16 %v4397, %v4396
    %v4483 = vpack.c.b16 %v4399, %v4398
    %v4484 = vpack.c.b16 %v4401, %v4400
    %v4485 = vpack.c.b16 %v4403, %v4402
    %v4486 = vpack.c.b16 %v4405, %v4404
    %v4487 = vpack.c.b16 %v4407, %v4406
    %v4488 = vpack.c.b16 %v4409, %v4408
    %v4489 = vpack.c.b16 %v4411, %v4410
    %v4490 = vpack.c.b16 %v4413, %v4412
    %v4491 = vpack.c.b16 %v4415, %v4414
    %v4492 = vpack.c.b16 %v4417, %v4416
    %v4493 = vpack.c.b16 %v4419, %v4418
    %v4494 = vpack.c.b16 %v4421, %v4420
    %v4495 = vpack.c.b16 %v4423, %v4422
    %v4496 = vpack.c.b16 %v4425, %v4424
    %v4497 = vpack.c.b16 %v4427, %v4426
    %v4498 = vpack.c.b16 %v4429, %v4428
    %v4499 = vpack.c.b16 %v4431, %v4430
    %v4500 = vpack.c.b16 %v4433, %v4432
    %v4501 = vpack.c.b16 %v4435, %v4434
    %v4502 = vpack.c.b16 %v4437, %v4436
    %v4503 = vpack.c.b16 %v4439, %v4438
    %4568 = vmatprep.subr.bf16.mxu0 0
    %4569 = vmatpush1.bf16.msra.mxu0 %v4440
    %4570 = vmatprep.subr.bf16.mxu0 0
    %4571 = vmatpush1.bf16.msra.mxu0 %v4441
    %4572 = vmatprep.subr.bf16.mxu0 0
    %4573 = vmatpush1.bf16.msra.mxu0 %v4442
    %4574 = vmatprep.subr.bf16.mxu0 0
    %4575 = vmatpush1.bf16.msra.mxu0 %v4443
    %4576 = vmatprep.subr.bf16.mxu0 0
    %4577 = vmatpush1.bf16.msra.mxu0 %v4444
    %4578 = vmatprep.subr.bf16.mxu0 0
    %4579 = vmatpush1.bf16.msra.mxu0 %v4445
    %4580 = vmatprep.subr.bf16.mxu0 0
    %4581 = vmatpush1.bf16.msra.mxu0 %v4446
    %4582 = vmatprep.subr.bf16.mxu0 0
    %4583 = vmatpush1.bf16.msra.mxu0 %v4447
    %4584 = vmatprep.subr.bf16.mxu0 0
    %4585 = vmatpush1.bf16.msra.mxu0 %v4448
    %4586 = vmatprep.subr.bf16.mxu0 0
    %4587 = vmatpush1.bf16.msra.mxu0 %v4449
    %4588 = vmatprep.subr.bf16.mxu0 0
    %4589 = vmatpush1.bf16.msra.mxu0 %v4450
    %4590 = vmatprep.subr.bf16.mxu0 0
    %4591 = vmatpush1.bf16.msra.mxu0 %v4451
    %4592 = vmatprep.subr.bf16.mxu0 0
    %4593 = vmatpush1.bf16.msra.mxu0 %v4452
    %4594 = vmatprep.subr.bf16.mxu0 0
    %4595 = vmatpush1.bf16.msra.mxu0 %v4453
    %4596 = vmatprep.subr.bf16.mxu0 0
    %4597 = vmatpush1.bf16.msra.mxu0 %v4454
    %4598 = vmatprep.subr.bf16.mxu0 0
    %4599 = vmatpush1.bf16.msra.mxu0 %v4455
    %4600 = vmatprep.mubr.bf16.mxu0 %v3986
    %4601 = vmatmul.mubr.bf16.gmra.mrb[0].mxu0 %v3985
    %v4602 = vpop.f32.mrb[0].mxu0
    %v4603 = vadd.f32 %v4182, %v4602
    %v4604 = vpop.f32.mrb[0].mxu0
    %v4605 = vpop.f32.mrb[0].mxu0
    %v4606 = vadd.f32 %v4182, %v4605
    %v4607 = vpop.f32.mrb[0].mxu0
    %4608 = vmatprep.mubr.bf16.mxu0 %v3994
    %4609 = vmatmul.mubr.bf16.gmra.mrb[0].mxu0 %v3993
    %v4610 = vpop.f32.mrb[0].mxu0
    %v4611 = vadd.f32 %v4182, %v4610
    %v4612 = vpop.f32.mrb[0].mxu0
    %v4613 = vpop.f32.mrb[0].mxu0
    %v4614 = vadd.f32 %v4182, %v4613
    %v4615 = vpop.f32.mrb[0].mxu0
    %4616 = vmatprep.mubr.bf16.mxu0 %v4002
    %4617 = vmatmul.mubr.bf16.gmra.mrb[0].mxu0 %v4001
    %v4618 = vpop.f32.mrb[0].mxu0
    %v4619 = vadd.f32 %v4182, %v4618
    %v4620 = vpop.f32.mrb[0].mxu0
    %v4621 = vpop.f32.mrb[0].mxu0
    %v4622 = vadd.f32 %v4182, %v4621
    %v4623 = vpop.f32.mrb[0].mxu0
    %4624 = vmatprep.mubr.bf16.mxu0 %v4010
    %4625 = vmatmul.mubr.bf16.gmra.mrb[0].mxu0 %v4009
    %v4626 = vpop.f32.mrb[0].mxu0
    %v4627 = vadd.f32 %v4182, %v4626
    %v4628 = vpop.f32.mrb[0].mxu0
    %v4629 = vpop.f32.mrb[0].mxu0
    %v4630 = vadd.f32 %v4182, %v4629
    %v4631 = vpop.f32.mrb[0].mxu0
    %4632 = vmatprep.mubr.bf16.mxu0 %v4018
    %4633 = vmatmul.mubr.bf16.gmra.mrb[0].mxu0 %v4017
    %v4634 = vpop.f32.mrb[0].mxu0
    %v4635 = vadd.f32 %v4182, %v4634
    %v4636 = vpop.f32.mrb[0].mxu0
    %v4637 = vpop.f32.mrb[0].mxu0
    %v4638 = vadd.f32 %v4182, %v4637
    %v4639 = vpop.f32.mrb[0].mxu0
    %4640 = vmatprep.mubr.bf16.mxu0 %v4026
    %4641 = vmatmul.mubr.bf16.gmra.mrb[0].mxu0 %v4025
    %v4642 = vpop.f32.mrb[0].mxu0
    %v4643 = vadd.f32 %v4182, %v4642
    %v4644 = vpop.f32.mrb[0].mxu0
    %v4645 = vpop.f32.mrb[0].mxu0
    %v4646 = vadd.f32 %v4182, %v4645
    %v4647 = vpop.f32.mrb[0].mxu0
    %4648 = vmatprep.mubr.bf16.mxu0 %v4034
    %4649 = vmatmul.mubr.bf16.gmra.mrb[0].mxu0 %v4033
    %v4650 = vpop.f32.mrb[0].mxu0
    %v4651 = vadd.f32 %v4182, %v4650
    %v4652 = vpop.f32.mrb[0].mxu0
    %v4653 = vpop.f32.mrb[0].mxu0
    %v4654 = vadd.f32 %v4182, %v4653
    %v4655 = vpop.f32.mrb[0].mxu0
    %4656 = vmatprep.mubr.bf16.mxu0 %v4042
    %4657 = vmatmul.mubr.bf16.gmra.mrb[0].mxu0 %v4041
    %v4658 = vpop.f32.mrb[0].mxu0
    %v4659 = vadd.f32 %v4182, %v4658
    %v4660 = vpop.f32.mrb[0].mxu0
    %v4661 = vpop.f32.mrb[0].mxu0
    %v4662 = vadd.f32 %v4182, %v4661
    %v4663 = vpop.f32.mrb[0].mxu0
    %4664 = vdwg.mxu0
    %4665 = vmatprep.subr.bf16.mxu0 0
    %4666 = vmatpush1.bf16.msra.mxu0 %v4456
    %4667 = vmatprep.subr.bf16.mxu0 0
    %4668 = vmatpush1.bf16.msra.mxu0 %v4457
    %4669 = vmatprep.subr.bf16.mxu0 0
    %4670 = vmatpush1.bf16.msra.mxu0 %v4458
    %4671 = vmatprep.subr.bf16.mxu0 0
    %4672 = vmatpush1.bf16.msra.mxu0 %v4459
    %4673 = vmatprep.subr.bf16.mxu0 0
    %4674 = vmatpush1.bf16.msra.mxu0 %v4460
    %4675 = vmatprep.subr.bf16.mxu0 0
    %4676 = vmatpush1.bf16.msra.mxu0 %v4461
    %4677 = vmatprep.subr.bf16.mxu0 0
    %4678 = vmatpush1.bf16.msra.mxu0 %v4462
    %4679 = vmatprep.subr.bf16.mxu0 0
    %4680 = vmatpush1.bf16.msra.mxu0 %v4463
    %4681 = vmatprep.subr.bf16.mxu0 0
    %4682 = vmatpush1.bf16.msra.mxu0 %v4464
    %4683 = vmatprep.subr.bf16.mxu0 0
    %4684 = vmatpush1.bf16.msra.mxu0 %v4465
    %4685 = vmatprep.subr.bf16.mxu0 0
    %4686 = vmatpush1.bf16.msra.mxu0 %v4466
    %4687 = vmatprep.subr.bf16.mxu0 0
    %4688 = vmatpush1.bf16.msra.mxu0 %v4467
    %4689 = vmatprep.subr.bf16.mxu0 0
    %4690 = vmatpush1.bf16.msra.mxu0 %v4468
    %4691 = vmatprep.subr.bf16.mxu0 0
    %4692 = vmatpush1.bf16.msra.mxu0 %v4469
    %4693 = vmatprep.subr.bf16.mxu0 0
    %4694 = vmatpush1.bf16.msra.mxu0 %v4470
    %4695 = vmatprep.subr.bf16.mxu0 0
    %4696 = vmatpush1.bf16.msra.mxu0 %v4471
    %4697 = vmatprep.mubr.bf16.mxu0 %v3988
    %4698 = vmatmul.mubr.bf16.gmra.mrb[0].mxu0 %v3987
    %v4699 = vpop.f32.mrb[0].mxu0
    %v4700 = vadd.f32 %v4603, %v4699
    %v4701 = vpop.f32.mrb[0].mxu0
    %v4702 = vpop.f32.mrb[0].mxu0
    %v4703 = vadd.f32 %v4606, %v4702
    %v4704 = vpop.f32.mrb[0].mxu0
    %4705 = vmatprep.mubr.bf16.mxu0 %v3996
    %4706 = vmatmul.mubr.bf16.gmra.mrb[0].mxu0 %v3995
    %v4707 = vpop.f32.mrb[0].mxu0
    %v4708 = vadd.f32 %v4611, %v4707
    %v4709 = vpop.f32.mrb[0].mxu0
    %v4710 = vpop.f32.mrb[0].mxu0
    %v4711 = vadd.f32 %v4614, %v4710
    %v4712 = vpop.f32.mrb[0].mxu0
    %4713 = vmatprep.mubr.bf16.mxu0 %v4004
    %4714 = vmatmul.mubr.bf16.gmra.mrb[0].mxu0 %v4003
    %v4715 = vpop.f32.mrb[0].mxu0
    %v4716 = vadd.f32 %v4619, %v4715
    %v4717 = vpop.f32.mrb[0].mxu0
    %v4718 = vpop.f32.mrb[0].mxu0
    %v4719 = vadd.f32 %v4622, %v4718
    %v4720 = vpop.f32.mrb[0].mxu0
    %4721 = vmatprep.mubr.bf16.mxu0 %v4012
    %4722 = vmatmul.mubr.bf16.gmra.mrb[0].mxu0 %v4011
    %v4723 = vpop.f32.mrb[0].mxu0
    %v4724 = vadd.f32 %v4627, %v4723
    %v4725 = vpop.f32.mrb[0].mxu0
    %v4726 = vpop.f32.mrb[0].mxu0
    %v4727 = vadd.f32 %v4630, %v4726
    %v4728 = vpop.f32.mrb[0].mxu0
    %4729 = vmatprep.mubr.bf16.mxu0 %v4020
    %4730 = vmatmul.mubr.bf16.gmra.mrb[0].mxu0 %v4019
    %v4731 = vpop.f32.mrb[0].mxu0
    %v4732 = vadd.f32 %v4635, %v4731
    %v4733 = vpop.f32.mrb[0].mxu0
    %v4734 = vpop.f32.mrb[0].mxu0
    %v4735 = vadd.f32 %v4638, %v4734
    %v4736 = vpop.f32.mrb[0].mxu0
    %4737 = vmatprep.mubr.bf16.mxu0 %v4028
    %4738 = vmatmul.mubr.bf16.gmra.mrb[0].mxu0 %v4027
    %v4739 = vpop.f32.mrb[0].mxu0
    %v4740 = vadd.f32 %v4643, %v4739
    %v4741 = vpop.f32.mrb[0].mxu0
    %v4742 = vpop.f32.mrb[0].mxu0
    %v4743 = vadd.f32 %v4646, %v4742
    %v4744 = vpop.f32.mrb[0].mxu0
    %4745 = vmatprep.mubr.bf16.mxu0 %v4036
    %4746 = vmatmul.mubr.bf16.gmra.mrb[0].mxu0 %v4035
    %v4747 = vpop.f32.mrb[0].mxu0
    %v4748 = vadd.f32 %v4651, %v4747
    %v4749 = vpop.f32.mrb[0].mxu0
    %v4750 = vpop.f32.mrb[0].mxu0
    %v4751 = vadd.f32 %v4654, %v4750
    %v4752 = vpop.f32.mrb[0].mxu0
    %4753 = vmatprep.mubr.bf16.mxu0 %v4044
    %4754 = vmatmul.mubr.bf16.gmra.mrb[0].mxu0 %v4043
    %v4755 = vpop.f32.mrb[0].mxu0
    %v4756 = vadd.f32 %v4659, %v4755
    %v4757 = vpop.f32.mrb[0].mxu0
    %v4758 = vpop.f32.mrb[0].mxu0
    %v4759 = vadd.f32 %v4662, %v4758
    %v4760 = vpop.f32.mrb[0].mxu0
    %4761 = vdwg.mxu0
    %4762 = vmatprep.subr.bf16.mxu0 0
    %4763 = vmatpush1.bf16.msra.mxu0 %v4472
    %4764 = vmatprep.subr.bf16.mxu0 0
    %4765 = vmatpush1.bf16.msra.mxu0 %v4473
    %4766 = vmatprep.subr.bf16.mxu0 0
    %4767 = vmatpush1.bf16.msra.mxu0 %v4474
    %4768 = vmatprep.subr.bf16.mxu0 0
    %4769 = vmatpush1.bf16.msra.mxu0 %v4475
    %4770 = vmatprep.subr.bf16.mxu0 0
    %4771 = vmatpush1.bf16.msra.mxu0 %v4476
    %4772 = vmatprep.subr.bf16.mxu0 0
    %4773 = vmatpush1.bf16.msra.mxu0 %v4477
    %4774 = vmatprep.subr.bf16.mxu0 0
    %4775 = vmatpush1.bf16.msra.mxu0 %v4478
    %4776 = vmatprep.subr.bf16.mxu0 0
    %4777 = vmatpush1.bf16.msra.mxu0 %v4479
    %4778 = vmatprep.subr.bf16.mxu0 0
    %4779 = vmatpush1.bf16.msra.mxu0 %v4480
    %4780 = vmatprep.subr.bf16.mxu0 0
    %4781 = vmatpush1.bf16.msra.mxu0 %v4481
    %4782 = vmatprep.subr.bf16.mxu0 0
    %4783 = vmatpush1.bf16.msra.mxu0 %v4482
    %4784 = vmatprep.subr.bf16.mxu0 0
    %4785 = vmatpush1.bf16.msra.mxu0 %v4483
    %4786 = vmatprep.subr.bf16.mxu0 0
    %4787 = vmatpush1.bf16.msra.mxu0 %v4484
    %4788 = vmatprep.subr.bf16.mxu0 0
    %4789 = vmatpush1.bf16.msra.mxu0 %v4485
    %4790 = vmatprep.subr.bf16.mxu0 0
    %4791 = vmatpush1.bf16.msra.mxu0 %v4486
    %4792 = vmatprep.subr.bf16.mxu0 0
    %4793 = vmatpush1.bf16.msra.mxu0 %v4487
    %4794 = vmatprep.mubr.bf16.mxu0 %v3990
    %4795 = vmatmul.mubr.bf16.gmra.mrb[0].mxu0 %v3989
    %v4796 = vpop.f32.mrb[0].mxu0
    %v4797 = vadd.f32 %v4700, %v4796
    %v4798 = vpop.f32.mrb[0].mxu0
    %v4799 = vpop.f32.mrb[0].mxu0
    %v4800 = vadd.f32 %v4703, %v4799
    %v4801 = vpop.f32.mrb[0].mxu0
    %4802 = vmatprep.mubr.bf16.mxu0 %v3998
    %4803 = vmatmul.mubr.bf16.gmra.mrb[0].mxu0 %v3997
    %v4804 = vpop.f32.mrb[0].mxu0
    %v4805 = vadd.f32 %v4708, %v4804
    %v4806 = vpop.f32.mrb[0].mxu0
    %v4807 = vpop.f32.mrb[0].mxu0
    %v4808 = vadd.f32 %v4711, %v4807
    %v4809 = vpop.f32.mrb[0].mxu0
    %4810 = vmatprep.mubr.bf16.mxu0 %v4006
    %4811 = vmatmul.mubr.bf16.gmra.mrb[0].mxu0 %v4005
    %v4812 = vpop.f32.mrb[0].mxu0
    %v4813 = vadd.f32 %v4716, %v4812
    %v4814 = vpop.f32.mrb[0].mxu0
    %v4815 = vpop.f32.mrb[0].mxu0
    %v4816 = vadd.f32 %v4719, %v4815
    %v4817 = vpop.f32.mrb[0].mxu0
    %4818 = vmatprep.mubr.bf16.mxu0 %v4014
    %4819 = vmatmul.mubr.bf16.gmra.mrb[0].mxu0 %v4013
    %v4820 = vpop.f32.mrb[0].mxu0
    %v4821 = vadd.f32 %v4724, %v4820
    %v4822 = vpop.f32.mrb[0].mxu0
    %v4823 = vpop.f32.mrb[0].mxu0
    %v4824 = vadd.f32 %v4727, %v4823
    %v4825 = vpop.f32.mrb[0].mxu0
    %4826 = vmatprep.mubr.bf16.mxu0 %v4022
    %4827 = vmatmul.mubr.bf16.gmra.mrb[0].mxu0 %v4021
    %v4828 = vpop.f32.mrb[0].mxu0
    %v4829 = vadd.f32 %v4732, %v4828
    %v4830 = vpop.f32.mrb[0].mxu0
    %v4831 = vpop.f32.mrb[0].mxu0
    %v4832 = vadd.f32 %v4735, %v4831
    %v4833 = vpop.f32.mrb[0].mxu0
    %4834 = vmatprep.mubr.bf16.mxu0 %v4030
    %4835 = vmatmul.mubr.bf16.gmra.mrb[0].mxu0 %v4029
    %v4836 = vpop.f32.mrb[0].mxu0
    %v4837 = vadd.f32 %v4740, %v4836
    %v4838 = vpop.f32.mrb[0].mxu0
    %v4839 = vpop.f32.mrb[0].mxu0
    %v4840 = vadd.f32 %v4743, %v4839
    %v4841 = vpop.f32.mrb[0].mxu0
    %4842 = vmatprep.mubr.bf16.mxu0 %v4038
    %4843 = vmatmul.mubr.bf16.gmra.mrb[0].mxu0 %v4037
    %v4844 = vpop.f32.mrb[0].mxu0
    %v4845 = vadd.f32 %v4748, %v4844
    %v4846 = vpop.f32.mrb[0].mxu0
    %v4847 = vpop.f32.mrb[0].mxu0
    %v4848 = vadd.f32 %v4751, %v4847
    %v4849 = vpop.f32.mrb[0].mxu0
    %4850 = vmatprep.mubr.bf16.mxu0 %v4046
    %4851 = vmatmul.mubr.bf16.gmra.mrb[0].mxu0 %v4045
    %v4852 = vpop.f32.mrb[0].mxu0
    %v4853 = vadd.f32 %v4756, %v4852
    %v4854 = vpop.f32.mrb[0].mxu0
    %v4855 = vpop.f32.mrb[0].mxu0
    %v4856 = vadd.f32 %v4759, %v4855
    %v4857 = vpop.f32.mrb[0].mxu0
    %4858 = vdwg.mxu0
    %4859 = vmatprep.subr.bf16.mxu0 0
    %4860 = vmatpush1.bf16.msra.mxu0 %v4488
    %4861 = vmatprep.subr.bf16.mxu0 0
    %4862 = vmatpush1.bf16.msra.mxu0 %v4489
    %4863 = vmatprep.subr.bf16.mxu0 0
    %4864 = vmatpush1.bf16.msra.mxu0 %v4490
    %4865 = vmatprep.subr.bf16.mxu0 0
    %4866 = vmatpush1.bf16.msra.mxu0 %v4491
    %4867 = vmatprep.subr.bf16.mxu0 0
    %4868 = vmatpush1.bf16.msra.mxu0 %v4492
    %4869 = vmatprep.subr.bf16.mxu0 0
    %4870 = vmatpush1.bf16.msra.mxu0 %v4493
    %4871 = vmatprep.subr.bf16.mxu0 0
    %4872 = vmatpush1.bf16.msra.mxu0 %v4494
    %4873 = vmatprep.subr.bf16.mxu0 0
    %4874 = vmatpush1.bf16.msra.mxu0 %v4495
    %4875 = vmatprep.subr.bf16.mxu0 0
    %4876 = vmatpush1.bf16.msra.mxu0 %v4496
    %4877 = vmatprep.subr.bf16.mxu0 0
    %4878 = vmatpush1.bf16.msra.mxu0 %v4497
    %4879 = vmatprep.subr.bf16.mxu0 0
    %4880 = vmatpush1.bf16.msra.mxu0 %v4498
    %4881 = vmatprep.subr.bf16.mxu0 0
    %4882 = vmatpush1.bf16.msra.mxu0 %v4499
    %4883 = vmatprep.subr.bf16.mxu0 0
    %4884 = vmatpush1.bf16.msra.mxu0 %v4500
    %4885 = vmatprep.subr.bf16.mxu0 0
    %4886 = vmatpush1.bf16.msra.mxu0 %v4501
    %4887 = vmatprep.subr.bf16.mxu0 0
    %4888 = vmatpush1.bf16.msra.mxu0 %v4502
    %4889 = vmatprep.subr.bf16.mxu0 0
    %4890 = vmatpush1.bf16.msra.mxu0 %v4503
    %4891 = vmatprep.mubr.bf16.mxu0 %v3992
    %4892 = vmatmul.mubr.bf16.gmra.mrb[0].mxu0 %v3991
    %v4893 = vpop.f32.mrb[0].mxu0
    %v4894 = vadd.f32 %v4797, %v4893
    %v4895 = vpop.f32.mrb[0].mxu0
    %v4896 = vpop.f32.mrb[0].mxu0
    %v4897 = vadd.f32 %v4800, %v4896
    %v4898 = vpop.f32.mrb[0].mxu0
    %4899 = vmatprep.mubr.bf16.mxu0 %v4000
    %4900 = vmatmul.mubr.bf16.gmra.mrb[0].mxu0 %v3999
    %v4901 = vpop.f32.mrb[0].mxu0
    %v4902 = vadd.f32 %v4805, %v4901
    %v4903 = vpop.f32.mrb[0].mxu0
    %v4904 = vpop.f32.mrb[0].mxu0
    %v4905 = vadd.f32 %v4808, %v4904
    %v4906 = vpop.f32.mrb[0].mxu0
    %4907 = vmatprep.mubr.bf16.mxu0 %v4008
    %4908 = vmatmul.mubr.bf16.gmra.mrb[0].mxu0 %v4007
    %v4909 = vpop.f32.mrb[0].mxu0
    %v4910 = vadd.f32 %v4813, %v4909
    %v4911 = vpop.f32.mrb[0].mxu0
    %v4912 = vpop.f32.mrb[0].mxu0
    %v4913 = vadd.f32 %v4816, %v4912
    %v4914 = vpop.f32.mrb[0].mxu0
    %4915 = vmatprep.mubr.bf16.mxu0 %v4016
    %4916 = vmatmul.mubr.bf16.gmra.mrb[0].mxu0 %v4015
    %v4917 = vpop.f32.mrb[0].mxu0
    %v4918 = vadd.f32 %v4821, %v4917
    %v4919 = vpop.f32.mrb[0].mxu0
    %v4920 = vpop.f32.mrb[0].mxu0
    %v4921 = vadd.f32 %v4824, %v4920
    %v4922 = vpop.f32.mrb[0].mxu0
    %4923 = vmatprep.mubr.bf16.mxu0 %v4024
    %4924 = vmatmul.mubr.bf16.gmra.mrb[0].mxu0 %v4023
    %v4925 = vpop.f32.mrb[0].mxu0
    %v4926 = vadd.f32 %v4829, %v4925
    %v4927 = vpop.f32.mrb[0].mxu0
    %v4928 = vpop.f32.mrb[0].mxu0
    %v4929 = vadd.f32 %v4832, %v4928
    %v4930 = vpop.f32.mrb[0].mxu0
    %4931 = vmatprep.mubr.bf16.mxu0 %v4032
    %4932 = vmatmul.mubr.bf16.gmra.mrb[0].mxu0 %v4031
    %v4933 = vpop.f32.mrb[0].mxu0
    %v4934 = vadd.f32 %v4837, %v4933
    %v4935 = vpop.f32.mrb[0].mxu0
    %v4936 = vpop.f32.mrb[0].mxu0
    %v4937 = vadd.f32 %v4840, %v4936
    %v4938 = vpop.f32.mrb[0].mxu0
    %4939 = vmatprep.mubr.bf16.mxu0 %v4040
    %4940 = vmatmul.mubr.bf16.gmra.mrb[0].mxu0 %v4039
    %v4941 = vpop.f32.mrb[0].mxu0
    %v4942 = vadd.f32 %v4845, %v4941
    %v4943 = vpop.f32.mrb[0].mxu0
    %v4944 = vpop.f32.mrb[0].mxu0
    %v4945 = vadd.f32 %v4848, %v4944
    %v4946 = vpop.f32.mrb[0].mxu0
    %4947 = vmatprep.mubr.bf16.mxu0 %v4048
    %4948 = vmatmul.mubr.bf16.gmra.mrb[0].mxu0 %v4047
    %v4949 = vpop.f32.mrb[0].mxu0
    %v4950 = vadd.f32 %v4853, %v4949
    %v4951 = vpop.f32.mrb[0].mxu0
    %v4952 = vpop.f32.mrb[0].mxu0
    %v4953 = vadd.f32 %v4856, %v4952
    %v4954 = vpop.f32.mrb[0].mxu0
    %4955 = vdwg.mxu0
    %4956 = vst [vmem:[#allocation13] sm:$0xff] %v4894
    %4957 = vst [vmem:[#allocation13 + $0x8] sm:$0xff] %v4897
    %4958 = vst [vmem:[#allocation13 + $0x10] sm:$0xff] %v4902
    %4959 = vst [vmem:[#allocation13 + $0x18] sm:$0xff] %v4905
    %4960 = vst [vmem:[#allocation13 + $0x20] sm:$0xff] %v4910
    %4961 = vst [vmem:[#allocation13 + $0x28] sm:$0xff] %v4913
    %4962 = vst [vmem:[#allocation13 + $0x30] sm:$0xff] %v4918
    %4963 = vst [vmem:[#allocation13 + $0x38] sm:$0xff] %v4921
    %4964 = vst [vmem:[#allocation13 + $0x40] sm:$0xff] %v4926
    %4965 = vst [vmem:[#allocation13 + $0x48] sm:$0xff] %v4929
    %4966 = vst [vmem:[#allocation13 + $0x50] sm:$0xff] %v4934
    %4967 = vst [vmem:[#allocation13 + $0x58] sm:$0xff] %v4937
    %4968 = vst [vmem:[#allocation13 + $0x60] sm:$0xff] %v4942
    %4969 = vst [vmem:[#allocation13 + $0x68] sm:$0xff] %v4945
    %4970 = vst [vmem:[#allocation13 + $0x70] sm:$0xff] %v4950
    %4971 = vst [vmem:[#allocation13 + $0x78] sm:$0xff] %v4953
    // Predicated region
    $region70: #{tpu_custom_call.1} parent=1 // pred_check
      _
    $region71: #{tpu_custom_call.1} parent=1 // pred_check_branch
      %4973 = sbr.rel (0) target = $region73
    $region72: #{tpu_custom_call.1} parent=1 // pred_region
      %s4975 = ssub.s32 2048, 2048
      %4976 = vsyncadd [#allocation4], %s4975
      %s4977 = sshll.u32 [#allocation13], 4
      %s4978 = int_to_ptr.vmem [resolvable:$true] %s4977
      %4983 = dma.vmem_to_hbm [thread:$0]  %s4978, 2048, %s11, [#allocation4], 128, 128, 8
    $region73: #{tpu_custom_call.1} parent=1 // pred_fallthru
      _
    // Predicated region
    $region74: #{tpu_custom_call.1} parent=1 // pred_check
      _
    $region75: #{tpu_custom_call.1} parent=1 // pred_check_branch
      %4985 = sbr.rel (0) target = $region77
    $region76: #{tpu_custom_call.1} parent=1 // pred_region
      %4986 = dma.done [#allocation4], 2048
    $region77: #{tpu_custom_call.1} parent=1 // pred_fallthru
      _
    %4987 = vsyncpa [#allocation3], 1
    %4988 = vsyncpa [#allocation6], 1
    %4989 = vsyncpa [#allocation9], 1
    %4990 = vsyncpa [#allocation12], 1
    %4991 = vsyncpa [#allocation4], 1

</llo_original>
